<compile_context>
chip_gen: v5e
topology: v5e:2x2
jax: 0.10.0
libtpu: 0.0.40
codegen_flags: <defaults>
</compile_context>

<pallas_src>
import functools

import jax
import jax.numpy as jnp
from jax import lax
from jax.experimental import pallas as pl
from jax.experimental.pallas import tpu as pltpu

K = 8          # neighbours per point (DynamicEdgeConv k=8)
HIDDEN = 16    # hidden_dim
OUT_DIM = 1    # out_dim


def _build_layout():
    """Static row layout of the packed parameter buffer [_PACK_ROWS, HIDDEN]."""
    layout = {}
    off = 0
    for name, rows, cols in (
        ("W1", 4, HIDDEN), ("b1", 1, HIDDEN),
        ("W2", HIDDEN, HIDDEN), ("b2", 1, HIDDEN),
        ("Wcm", HIDDEN, HIDDEN),          # Wa - Wb (precomputed in wrapper)
        ("Wcb", HIDDEN, HIDDEN), ("bc", 1, HIDDEN),
        ("Wo1", HIDDEN, 8), ("bo1", 1, 8),
        ("Wo2", 8, 4), ("bo2", 1, 4),
        ("Wo3", 4, OUT_DIM), ("bo3", 1, OUT_DIM),
    ):
        layout[name] = (off, rows, cols)
        off += rows
    return layout, off


_LAYOUT, _PACK_ROWS = _build_layout()


def _elu(v):
    return jnp.where(v > 0, v, jnp.exp(v) - 1.0)


def suep_kernel(xb_ref, brow_ref, p_ref, out_ref):
    f32 = jnp.float32
    N = xb_ref.shape[0]
    B = out_ref.shape[0]
    BIG = f32(1e30)
    VALID_THRESH = f32(1e29)

    def w(name):
        off, rows, cols = _LAYOUT[name]
        return p_ref[off:off + rows, 0:cols]

    x = xb_ref[:, 0:4]                                   # [N, 4]
    bcol = xb_ref[:, 4:5]                                # [N, 1] batch id (f32)
    brow = brow_ref[...]                                 # [1, N] batch id (f32)

    # ---- pf_encode: Linear(4,H)+ELU, Linear(H,H)+ELU ----
    h = _elu(jnp.dot(x, w("W1"), preferred_element_type=f32) + w("b1"))
    h = _elu(jnp.dot(h, w("W2"), preferred_element_type=f32) + w("b2"))

    same = bcol == brow                                  # [N, N] same-graph mask
    # Candidate (lane) index, used for lowest-index tie-breaking.  Indices are
    # exactly representable in f32 for any realistic N (< 2^24).
    row_jf = lax.broadcasted_iota(jnp.int32, (N, N), 1).astype(f32)   # [N, N]
    ones_h = jnp.ones((1, HIDDEN), f32)
    ones_n = jnp.ones((N, 1), f32)

    wcm = w("Wcm")                                       # Wa - Wb
    wcb = w("Wcb")                                       # acts on x_j
    bcv = w("bc")

    def edge_conv(e):
        # Linear([x_i, x_j - x_i]) = x_i @ (Wa - Wb) + x_j @ Wb + b
        c = jnp.dot(e, wcm, preferred_element_type=f32) + bcv        # [N, H]
        d = jnp.dot(e, wcb, preferred_element_type=f32)              # [N, H]
        # pairwise relative squared distances: ||e_j||^2 - 2 e_i . e_j
        # (per-row constant offset vs ||e_i - e_j||^2, so same ordering)
        g = lax.dot_general(e, e, (((1,), (1,)), ((), ())),
                            preferred_element_type=f32)              # [N, N]
        nrm = lax.dot_general(ones_h, e * e, (((1,), (1,)), ((), ())),
                              preferred_element_type=f32)            # [1, N]
        dist = jnp.where(same, nrm - 2.0 * g, BIG)

        # -- Phase 1: selection only (XLU row-mins + VPU masking, no MXU) --
        onehots = []
        valids = []
        for _ in range(K):
            minval = jnp.min(dist, axis=1, keepdims=True)            # [N, 1]
            hit = dist == minval                                     # ties possible
            # lowest-index tie-break via index-min (exact, no quantisation)
            sel_idx = jnp.min(jnp.where(hit, row_jf, f32(N)),
                              axis=1, keepdims=True)                 # [N, 1]
            onehot = row_jf == sel_idx                               # [N, N]
            onehots.append(onehot)
            valids.append(minval < VALID_THRESH)                     # <K-point guard
            dist = jnp.where(onehot, BIG, dist)

        # -- Phase 2: K independent MXU gathers, then a short max tree --
        d_sels = [jnp.dot(oh.astype(f32), d, preferred_element_type=f32)
                  for oh in onehots]                                 # K x [N, H]
        acc = jnp.full((N, HIDDEN), -BIG, f32)
        for d_sel, valid in zip(d_sels, valids):
            acc = jnp.where(valid, jnp.maximum(acc, d_sel), acc)
        # ELU hoisted out of the loop (monotone elementwise, c constant over k).
        return _elu(c + acc)

    f1 = edge_conv(h)       # DynamicEdgeConv #1
    f2 = edge_conv(f1)      # DynamicEdgeConv #2 (shared weights, as in Net)

    # ---- avg_pool_x: per-graph mean ----
    gids = lax.broadcasted_iota(jnp.int32, (B, 1), 0).astype(f32)
    selg = (gids == brow).astype(f32)                                 # [B, N]
    counts = jnp.dot(selg, ones_n, preferred_element_type=f32)        # [B, 1]
    pooled = (jnp.dot(selg, f2, preferred_element_type=f32)
              * pl.reciprocal(counts, approx=False))                  # [B, H]

    # ---- output MLP: H->8 ELU, 8->4 ELU, 4->out_dim ----
    o = _elu(jnp.dot(pooled, w("Wo1"), preferred_element_type=f32) + w("bo1"))
    o = _elu(jnp.dot(o, w("Wo2"), preferred_element_type=f32) + w("bo2"))
    o = jnp.dot(o, w("Wo3"), preferred_element_type=f32) + w("bo3")
    out_ref[...] = o


def init_params(key, hidden=HIDDEN, out_dim=OUT_DIM):
    ks = jax.random.split(key, 16)
    s = 0.2
    return {
        "W1": jax.random.normal(ks[0], (4, hidden), jnp.float32) * s,
        "b1": jax.random.normal(ks[1], (1, hidden), jnp.float32) * s,
        "W2": jax.random.normal(ks[2], (hidden, hidden), jnp.float32) * s,
        "b2": jax.random.normal(ks[3], (1, hidden), jnp.float32) * s,
        "Wc": jax.random.normal(ks[4], (2 * hidden, hidden), jnp.float32) * s,
        "bc": jax.random.normal(ks[5], (1, hidden), jnp.float32) * s,
        "Wo1": jax.random.normal(ks[6], (hidden, 8), jnp.float32) * s,
        "bo1": jax.random.normal(ks[7], (1, 8), jnp.float32) * s,
        "Wo2": jax.random.normal(ks[8], (8, 4), jnp.float32) * s,
        "bo2": jax.random.normal(ks[9], (1, 4), jnp.float32) * s,
        "Wo3": jax.random.normal(ks[10], (4, out_dim), jnp.float32) * s,
        "bo3": jax.random.normal(ks[11], (1, out_dim), jnp.float32) * s,
    }


def _pack_params(params):
    """Pack all weights/biases into one [_PACK_ROWS, HIDDEN] f32 buffer."""
    H = HIDDEN
    wc = params["Wc"]
    tensors = {
        "W1": params["W1"], "b1": params["b1"],
        "W2": params["W2"], "b2": params["b2"],
        "Wcm": wc[:H, :] - wc[H:, :],   # precompute Wa - Wb in the wrapper
        "Wcb": wc[H:, :], "bc": params["bc"],
        "Wo1": params["Wo1"], "bo1": params["bo1"],
        "Wo2": params["Wo2"], "bo2": params["bo2"],
        "Wo3": params["Wo3"], "bo3": params["bo3"],
    }
    blocks = []
    for name, (_, rows, cols) in _LAYOUT.items():
        t = tensors[name].astype(jnp.float32)
        assert t.shape == (rows, cols), (name, t.shape, (rows, cols))
        blocks.append(jnp.pad(t, ((0, 0), (0, H - cols))))
    return jnp.concatenate(blocks, axis=0)


@functools.partial(jax.jit, static_argnames=("num_graphs",))
def suep_net_forward(x_pf, batch_pf, params, num_graphs):
    N = x_pf.shape[0]
    out_dim = params["Wo3"].shape[1]

    bf = batch_pf.astype(jnp.float32)
    xb = jnp.concatenate([x_pf.astype(jnp.float32), bf.reshape(N, 1)], axis=1)
    brow = bf.reshape(1, N)
    packed = _pack_params(params)

    # Scoped VMEM sized from the actual [N, N] live set (dist, g, same, masks,
    # K one-hots), with headroom; capped well below v7x's 64 MiB physical VMEM.
    live_est = 24 * N * N * 4 + 4 * N * HIDDEN * 4 + (1 << 20)
    vmem_bytes = int(min(48 * 2**20, max(16 * 2**20, live_est)))

    vmem = pl.BlockSpec(memory_space=pltpu.MemorySpace.VMEM)
    out = pl.pallas_call(
        suep_kernel,
        out_shape=jax.ShapeDtypeStruct((num_graphs, out_dim), jnp.float32),
        in_specs=[vmem, vmem, vmem],
        out_specs=vmem,
        compiler_params=pltpu.CompilerParams(vmem_limit_bytes=vmem_bytes),
    )(xb, brow, packed)
    batch_out = jnp.arange(num_graphs, dtype=batch_pf.dtype)
    return out, batch_out


def suep_net_reference(x_pf, batch_pf, params, num_graphs, k=K):
    """Pure-JAX reference mirroring the torch_geometric semantics."""
    h = _elu(x_pf @ params["W1"] + params["b1"])
    h = _elu(h @ params["W2"] + params["b2"])
    same = batch_pf[:, None] == batch_pf[None, :]

    def conv(e):
        diff = e[:, None, :] - e[None, :, :]
        dist = jnp.sum(diff * diff, axis=-1)
        dist = jnp.where(same, dist, jnp.inf)
        idx = jnp.argsort(dist, axis=1)[:, :k]                  # [N, k]
        xj = e[idx]                                             # [N, k, H]
        xi = jnp.broadcast_to(e[:, None, :], xj.shape)
        msg = _elu(jnp.concatenate([xi, xj - xi], axis=-1) @ params["Wc"]
                   + params["bc"])
        return jnp.max(msg, axis=1)

    f1 = conv(h)
    f2 = conv(f1)
    sel = (jnp.arange(num_graphs)[:, None] == batch_pf[None, :]).astype(jnp.float32)
    pooled = sel @ f2 / jnp.sum(sel, axis=1, keepdims=True)
    o = _elu(pooled @ params["Wo1"] + params["bo1"])
    o = _elu(o @ params["Wo2"] + params["bo2"])
    o = o @ params["Wo3"] + params["bo3"]
    return o, jnp.arange(num_graphs, dtype=batch_pf.dtype)


if __name__ == "__main__":
    key = jax.random.PRNGKey(0)
    k_x, k_p = jax.random.split(key)

    N = 64                 # total points (2 graphs x 32 points, each >= k)
    B = 2                  # number of graphs
    x_pf = jax.random.normal(k_x, (N, 4), jnp.float32)
    batch_pf = jnp.concatenate([jnp.zeros(32, jnp.int32),
                                jnp.ones(32, jnp.int32)])
    params = init_params(k_p)

    out, batch_out = suep_net_forward(x_pf, batch_pf, params, num_graphs=B)
    out = jax.block_until_ready(out)

    ref_out, ref_batch = suep_net_reference(x_pf, batch_pf, params, B)
    assert out.shape == (B, OUT_DIM)
    assert batch_out.shape == (B,)
    assert jnp.allclose(out, ref_out, atol=1e-4, rtol=1e-4), (
        f"mismatch: max abs diff {jnp.max(jnp.abs(out - ref_out))}")
    assert jnp.array_equal(batch_out, ref_batch)

    print("KERNEL_OK")
</pallas_src>

<mosaic_0001>
module attributes {stable_mosaic.version = 11 : i64} {
  func.func @suep_kernel(%arg0: memref<64x5xf32, #tpu.memory_space<vmem>>, %arg1: memref<1x64xf32, #tpu.memory_space<vmem>>, %arg2: memref<86x16xf32, #tpu.memory_space<vmem>>, %arg3: memref<2x1xf32, #tpu.memory_space<vmem>>) attributes {dimension_semantics = [], scalar_prefetch = 0 : i64, scratch_operands = 0 : i64, tpu.core_type = #tpu.core_type<tc>} {
    %c0 = arith.constant 0 : index
    %c0_0 = arith.constant 0 : index
    %0 = vector.load %arg0[%c0, %c0_0] : memref<64x5xf32, #tpu.memory_space<vmem>>, vector<64x4xf32>
    %c0_1 = arith.constant 0 : index
    %c4 = arith.constant 4 : index
    %1 = vector.load %arg0[%c0_1, %c4] : memref<64x5xf32, #tpu.memory_space<vmem>>, vector<64x1xf32>
    %c0_2 = arith.constant 0 : index
    %c0_3 = arith.constant 0 : index
    %2 = vector.load %arg1[%c0_2, %c0_3] : memref<1x64xf32, #tpu.memory_space<vmem>>, vector<1x64xf32>
    %c0_4 = arith.constant 0 : index
    %c0_5 = arith.constant 0 : index
    %3 = vector.load %arg2[%c0_4, %c0_5] : memref<86x16xf32, #tpu.memory_space<vmem>>, vector<4x16xf32>
    %cst = arith.constant dense<0.000000e+00> : vector<64x16xf32>
    %4 = tpu.matmul %0, %3, %cst {dimension_numbers = #tpu.dot_dimension_numbers<[1], [0], [0], [1], [0, 0, 1, 1], [], []>} : vector<64x4xf32>, vector<4x16xf32>, vector<64x16xf32> -> vector<64x16xf32>
    %c4_6 = arith.constant 4 : index
    %c0_7 = arith.constant 0 : index
    %5 = vector.load %arg2[%c4_6, %c0_7] : memref<86x16xf32, #tpu.memory_space<vmem>>, vector<1x16xf32>
    %6 = vector.broadcast %5 : vector<1x16xf32> to vector<64x16xf32>
    %7 = arith.addf %4, %6 : vector<64x16xf32>
    %cst_8 = arith.constant 0.000000e+00 : f32
    %8 = vector.broadcast %cst_8 : f32 to vector<64x16xf32>
    %9 = arith.cmpf ogt, %7, %8 : vector<64x16xf32>
    %10 = math.exp %7 : vector<64x16xf32>
    %cst_9 = arith.constant 1.000000e+00 : f32
    %11 = vector.broadcast %cst_9 : f32 to vector<64x16xf32>
    %12 = arith.subf %10, %11 : vector<64x16xf32>
    %13 = arith.select %9, %7, %12 : vector<64x16xi1>, vector<64x16xf32>
    %c5 = arith.constant 5 : index
    %c0_10 = arith.constant 0 : index
    %14 = vector.load %arg2[%c5, %c0_10] : memref<86x16xf32, #tpu.memory_space<vmem>>, vector<16x16xf32>
    %cst_11 = arith.constant dense<0.000000e+00> : vector<64x16xf32>
    %15 = tpu.matmul %13, %14, %cst_11 {dimension_numbers = #tpu.dot_dimension_numbers<[1], [0], [0], [1], [0, 0, 1, 1], [], []>} : vector<64x16xf32>, vector<16x16xf32>, vector<64x16xf32> -> vector<64x16xf32>
    %c21 = arith.constant 21 : index
    %c0_12 = arith.constant 0 : index
    %16 = vector.load %arg2[%c21, %c0_12] : memref<86x16xf32, #tpu.memory_space<vmem>>, vector<1x16xf32>
    %17 = vector.broadcast %16 : vector<1x16xf32> to vector<64x16xf32>
    %18 = arith.addf %15, %17 : vector<64x16xf32>
    %cst_13 = arith.constant 0.000000e+00 : f32
    %19 = vector.broadcast %cst_13 : f32 to vector<64x16xf32>
    %20 = arith.cmpf ogt, %18, %19 : vector<64x16xf32>
    %21 = math.exp %18 : vector<64x16xf32>
    %cst_14 = arith.constant 1.000000e+00 : f32
    %22 = vector.broadcast %cst_14 : f32 to vector<64x16xf32>
    %23 = arith.subf %21, %22 : vector<64x16xf32>
    %24 = arith.select %20, %18, %23 : vector<64x16xi1>, vector<64x16xf32>
    %25 = vector.broadcast %1 : vector<64x1xf32> to vector<64x64xf32>
    %26 = vector.broadcast %2 : vector<1x64xf32> to vector<64x64xf32>
    %27 = arith.cmpf oeq, %25, %26 : vector<64x64xf32>
    %28 = tpu.iota {dimensions = array<i32: 1>} : vector<64x64xi32>
    %29 = arith.sitofp %28 : vector<64x64xi32> to vector<64x64xf32>
    %cst_15 = arith.constant 1.000000e+00 : f32
    %30 = vector.broadcast %cst_15 : f32 to vector<1x16xf32>
    %cst_16 = arith.constant 1.000000e+00 : f32
    %31 = vector.broadcast %cst_16 : f32 to vector<64x1xf32>
    %c22 = arith.constant 22 : index
    %c0_17 = arith.constant 0 : index
    %32 = vector.load %arg2[%c22, %c0_17] : memref<86x16xf32, #tpu.memory_space<vmem>>, vector<16x16xf32>
    %c38 = arith.constant 38 : index
    %c0_18 = arith.constant 0 : index
    %33 = vector.load %arg2[%c38, %c0_18] : memref<86x16xf32, #tpu.memory_space<vmem>>, vector<16x16xf32>
    %c54 = arith.constant 54 : index
    %c0_19 = arith.constant 0 : index
    %34 = vector.load %arg2[%c54, %c0_19] : memref<86x16xf32, #tpu.memory_space<vmem>>, vector<1x16xf32>
    %cst_20 = arith.constant dense<0.000000e+00> : vector<64x16xf32>
    %35 = tpu.matmul %24, %32, %cst_20 {dimension_numbers = #tpu.dot_dimension_numbers<[1], [0], [0], [1], [0, 0, 1, 1], [], []>} : vector<64x16xf32>, vector<16x16xf32>, vector<64x16xf32> -> vector<64x16xf32>
    %36 = vector.broadcast %34 : vector<1x16xf32> to vector<64x16xf32>
    %37 = arith.addf %35, %36 : vector<64x16xf32>
    %cst_21 = arith.constant dense<0.000000e+00> : vector<64x16xf32>
    %38 = tpu.matmul %24, %33, %cst_21 {dimension_numbers = #tpu.dot_dimension_numbers<[1], [0], [0], [1], [0, 0, 1, 1], [], []>} : vector<64x16xf32>, vector<16x16xf32>, vector<64x16xf32> -> vector<64x16xf32>
    %cst_22 = arith.constant dense<0.000000e+00> : vector<64x64xf32>
    %39 = tpu.matmul %24, %24, %cst_22 {dimension_numbers = #tpu.dot_dimension_numbers<[1], [1], [0], [0], [0, 0, 1, 0], [], []>} : vector<64x16xf32>, vector<64x16xf32>, vector<64x64xf32> -> vector<64x64xf32>
    %40 = arith.mulf %24, %24 : vector<64x16xf32>
    %cst_23 = arith.constant dense<0.000000e+00> : vector<1x64xf32>
    %41 = tpu.matmul %30, %40, %cst_23 {dimension_numbers = #tpu.dot_dimension_numbers<[1], [1], [0], [0], [0, 0, 1, 0], [], []>} : vector<1x16xf32>, vector<64x16xf32>, vector<1x64xf32> -> vector<1x64xf32>
    %cst_24 = arith.constant 2.000000e+00 : f32
    %42 = vector.broadcast %cst_24 : f32 to vector<64x64xf32>
    %43 = arith.mulf %42, %39 : vector<64x64xf32>
    %44 = vector.broadcast %41 : vector<1x64xf32> to vector<64x64xf32>
    %45 = arith.subf %44, %43 : vector<64x64xf32>
    %cst_25 = arith.constant 1.000000e+30 : f32
    %46 = vector.broadcast %cst_25 : f32 to vector<64x64xf32>
    %47 = arith.select %27, %45, %46 : vector<64x64xi1>, vector<64x64xf32>
    %cst_26 = arith.constant dense<0x7F800000> : vector<64xf32>
    %48 = vector.multi_reduction <minimumf>, %47, %cst_26 [1] : vector<64x64xf32> to vector<64xf32>
    %49 = vector.shape_cast %48 : vector<64xf32> to vector<64x1xf32>
    %50 = vector.broadcast %49 : vector<64x1xf32> to vector<64x64xf32>
    %51 = arith.cmpf oeq, %47, %50 : vector<64x64xf32>
    %cst_27 = arith.constant 6.400000e+01 : f32
    %52 = vector.broadcast %cst_27 : f32 to vector<64x64xf32>
    %53 = arith.select %51, %29, %52 : vector<64x64xi1>, vector<64x64xf32>
    %cst_28 = arith.constant dense<0x7F800000> : vector<64xf32>
    %54 = vector.multi_reduction <minimumf>, %53, %cst_28 [1] : vector<64x64xf32> to vector<64xf32>
    %55 = vector.shape_cast %54 : vector<64xf32> to vector<64x1xf32>
    %56 = vector.broadcast %55 : vector<64x1xf32> to vector<64x64xf32>
    %57 = arith.cmpf oeq, %29, %56 : vector<64x64xf32>
    %cst_29 = arith.constant 1.000000e+29 : f32
    %58 = vector.broadcast %cst_29 : f32 to vector<64x1xf32>
    %59 = arith.cmpf olt, %49, %58 : vector<64x1xf32>
    %cst_30 = arith.constant 1.000000e+30 : f32
    %60 = vector.broadcast %cst_30 : f32 to vector<64x64xf32>
    %61 = arith.select %57, %60, %47 : vector<64x64xi1>, vector<64x64xf32>
    %cst_31 = arith.constant dense<0x7F800000> : vector<64xf32>
    %62 = vector.multi_reduction <minimumf>, %61, %cst_31 [1] : vector<64x64xf32> to vector<64xf32>
    %63 = vector.shape_cast %62 : vector<64xf32> to vector<64x1xf32>
    %64 = vector.broadcast %63 : vector<64x1xf32> to vector<64x64xf32>
    %65 = arith.cmpf oeq, %61, %64 : vector<64x64xf32>
    %cst_32 = arith.constant 6.400000e+01 : f32
    %66 = vector.broadcast %cst_32 : f32 to vector<64x64xf32>
    %67 = arith.select %65, %29, %66 : vector<64x64xi1>, vector<64x64xf32>
    %cst_33 = arith.constant dense<0x7F800000> : vector<64xf32>
    %68 = vector.multi_reduction <minimumf>, %67, %cst_33 [1] : vector<64x64xf32> to vector<64xf32>
    %69 = vector.shape_cast %68 : vector<64xf32> to vector<64x1xf32>
    %70 = vector.broadcast %69 : vector<64x1xf32> to vector<64x64xf32>
    %71 = arith.cmpf oeq, %29, %70 : vector<64x64xf32>
    %cst_34 = arith.constant 1.000000e+29 : f32
    %72 = vector.broadcast %cst_34 : f32 to vector<64x1xf32>
    %73 = arith.cmpf olt, %63, %72 : vector<64x1xf32>
    %cst_35 = arith.constant 1.000000e+30 : f32
    %74 = vector.broadcast %cst_35 : f32 to vector<64x64xf32>
    %75 = arith.select %71, %74, %61 : vector<64x64xi1>, vector<64x64xf32>
    %cst_36 = arith.constant dense<0x7F800000> : vector<64xf32>
    %76 = vector.multi_reduction <minimumf>, %75, %cst_36 [1] : vector<64x64xf32> to vector<64xf32>
    %77 = vector.shape_cast %76 : vector<64xf32> to vector<64x1xf32>
    %78 = vector.broadcast %77 : vector<64x1xf32> to vector<64x64xf32>
    %79 = arith.cmpf oeq, %75, %78 : vector<64x64xf32>
    %cst_37 = arith.constant 6.400000e+01 : f32
    %80 = vector.broadcast %cst_37 : f32 to vector<64x64xf32>
    %81 = arith.select %79, %29, %80 : vector<64x64xi1>, vector<64x64xf32>
    %cst_38 = arith.constant dense<0x7F800000> : vector<64xf32>
    %82 = vector.multi_reduction <minimumf>, %81, %cst_38 [1] : vector<64x64xf32> to vector<64xf32>
    %83 = vector.shape_cast %82 : vector<64xf32> to vector<64x1xf32>
    %84 = vector.broadcast %83 : vector<64x1xf32> to vector<64x64xf32>
    %85 = arith.cmpf oeq, %29, %84 : vector<64x64xf32>
    %cst_39 = arith.constant 1.000000e+29 : f32
    %86 = vector.broadcast %cst_39 : f32 to vector<64x1xf32>
    %87 = arith.cmpf olt, %77, %86 : vector<64x1xf32>
    %cst_40 = arith.constant 1.000000e+30 : f32
    %88 = vector.broadcast %cst_40 : f32 to vector<64x64xf32>
    %89 = arith.select %85, %88, %75 : vector<64x64xi1>, vector<64x64xf32>
    %cst_41 = arith.constant dense<0x7F800000> : vector<64xf32>
    %90 = vector.multi_reduction <minimumf>, %89, %cst_41 [1] : vector<64x64xf32> to vector<64xf32>
    %91 = vector.shape_cast %90 : vector<64xf32> to vector<64x1xf32>
    %92 = vector.broadcast %91 : vector<64x1xf32> to vector<64x64xf32>
    %93 = arith.cmpf oeq, %89, %92 : vector<64x64xf32>
    %cst_42 = arith.constant 6.400000e+01 : f32
    %94 = vector.broadcast %cst_42 : f32 to vector<64x64xf32>
    %95 = arith.select %93, %29, %94 : vector<64x64xi1>, vector<64x64xf32>
    %cst_43 = arith.constant dense<0x7F800000> : vector<64xf32>
    %96 = vector.multi_reduction <minimumf>, %95, %cst_43 [1] : vector<64x64xf32> to vector<64xf32>
    %97 = vector.shape_cast %96 : vector<64xf32> to vector<64x1xf32>
    %98 = vector.broadcast %97 : vector<64x1xf32> to vector<64x64xf32>
    %99 = arith.cmpf oeq, %29, %98 : vector<64x64xf32>
    %cst_44 = arith.constant 1.000000e+29 : f32
    %100 = vector.broadcast %cst_44 : f32 to vector<64x1xf32>
    %101 = arith.cmpf olt, %91, %100 : vector<64x1xf32>
    %cst_45 = arith.constant 1.000000e+30 : f32
    %102 = vector.broadcast %cst_45 : f32 to vector<64x64xf32>
    %103 = arith.select %99, %102, %89 : vector<64x64xi1>, vector<64x64xf32>
    %cst_46 = arith.constant dense<0x7F800000> : vector<64xf32>
    %104 = vector.multi_reduction <minimumf>, %103, %cst_46 [1] : vector<64x64xf32> to vector<64xf32>
    %105 = vector.shape_cast %104 : vector<64xf32> to vector<64x1xf32>
    %106 = vector.broadcast %105 : vector<64x1xf32> to vector<64x64xf32>
    %107 = arith.cmpf oeq, %103, %106 : vector<64x64xf32>
    %cst_47 = arith.constant 6.400000e+01 : f32
    %108 = vector.broadcast %cst_47 : f32 to vector<64x64xf32>
    %109 = arith.select %107, %29, %108 : vector<64x64xi1>, vector<64x64xf32>
    %cst_48 = arith.constant dense<0x7F800000> : vector<64xf32>
    %110 = vector.multi_reduction <minimumf>, %109, %cst_48 [1] : vector<64x64xf32> to vector<64xf32>
    %111 = vector.shape_cast %110 : vector<64xf32> to vector<64x1xf32>
    %112 = vector.broadcast %111 : vector<64x1xf32> to vector<64x64xf32>
    %113 = arith.cmpf oeq, %29, %112 : vector<64x64xf32>
    %cst_49 = arith.constant 1.000000e+29 : f32
    %114 = vector.broadcast %cst_49 : f32 to vector<64x1xf32>
    %115 = arith.cmpf olt, %105, %114 : vector<64x1xf32>
    %cst_50 = arith.constant 1.000000e+30 : f32
    %116 = vector.broadcast %cst_50 : f32 to vector<64x64xf32>
    %117 = arith.select %113, %116, %103 : vector<64x64xi1>, vector<64x64xf32>
    %cst_51 = arith.constant dense<0x7F800000> : vector<64xf32>
    %118 = vector.multi_reduction <minimumf>, %117, %cst_51 [1] : vector<64x64xf32> to vector<64xf32>
    %119 = vector.shape_cast %118 : vector<64xf32> to vector<64x1xf32>
    %120 = vector.broadcast %119 : vector<64x1xf32> to vector<64x64xf32>
    %121 = arith.cmpf oeq, %117, %120 : vector<64x64xf32>
    %cst_52 = arith.constant 6.400000e+01 : f32
    %122 = vector.broadcast %cst_52 : f32 to vector<64x64xf32>
    %123 = arith.select %121, %29, %122 : vector<64x64xi1>, vector<64x64xf32>
    %cst_53 = arith.constant dense<0x7F800000> : vector<64xf32>
    %124 = vector.multi_reduction <minimumf>, %123, %cst_53 [1] : vector<64x64xf32> to vector<64xf32>
    %125 = vector.shape_cast %124 : vector<64xf32> to vector<64x1xf32>
    %126 = vector.broadcast %125 : vector<64x1xf32> to vector<64x64xf32>
    %127 = arith.cmpf oeq, %29, %126 : vector<64x64xf32>
    %cst_54 = arith.constant 1.000000e+29 : f32
    %128 = vector.broadcast %cst_54 : f32 to vector<64x1xf32>
    %129 = arith.cmpf olt, %119, %128 : vector<64x1xf32>
    %cst_55 = arith.constant 1.000000e+30 : f32
    %130 = vector.broadcast %cst_55 : f32 to vector<64x64xf32>
    %131 = arith.select %127, %130, %117 : vector<64x64xi1>, vector<64x64xf32>
    %cst_56 = arith.constant dense<0x7F800000> : vector<64xf32>
    %132 = vector.multi_reduction <minimumf>, %131, %cst_56 [1] : vector<64x64xf32> to vector<64xf32>
    %133 = vector.shape_cast %132 : vector<64xf32> to vector<64x1xf32>
    %134 = vector.broadcast %133 : vector<64x1xf32> to vector<64x64xf32>
    %135 = arith.cmpf oeq, %131, %134 : vector<64x64xf32>
    %cst_57 = arith.constant 6.400000e+01 : f32
    %136 = vector.broadcast %cst_57 : f32 to vector<64x64xf32>
    %137 = arith.select %135, %29, %136 : vector<64x64xi1>, vector<64x64xf32>
    %cst_58 = arith.constant dense<0x7F800000> : vector<64xf32>
    %138 = vector.multi_reduction <minimumf>, %137, %cst_58 [1] : vector<64x64xf32> to vector<64xf32>
    %139 = vector.shape_cast %138 : vector<64xf32> to vector<64x1xf32>
    %140 = vector.broadcast %139 : vector<64x1xf32> to vector<64x64xf32>
    %141 = arith.cmpf oeq, %29, %140 : vector<64x64xf32>
    %cst_59 = arith.constant 1.000000e+29 : f32
    %142 = vector.broadcast %cst_59 : f32 to vector<64x1xf32>
    %143 = arith.cmpf olt, %133, %142 : vector<64x1xf32>
    %cst_60 = arith.constant 1.000000e+30 : f32
    %144 = vector.broadcast %cst_60 : f32 to vector<64x64xf32>
    %145 = arith.select %141, %144, %131 : vector<64x64xi1>, vector<64x64xf32>
    %cst_61 = arith.constant dense<0x7F800000> : vector<64xf32>
    %146 = vector.multi_reduction <minimumf>, %145, %cst_61 [1] : vector<64x64xf32> to vector<64xf32>
    %147 = vector.shape_cast %146 : vector<64xf32> to vector<64x1xf32>
    %148 = vector.broadcast %147 : vector<64x1xf32> to vector<64x64xf32>
    %149 = arith.cmpf oeq, %145, %148 : vector<64x64xf32>
    %cst_62 = arith.constant 6.400000e+01 : f32
    %150 = vector.broadcast %cst_62 : f32 to vector<64x64xf32>
    %151 = arith.select %149, %29, %150 : vector<64x64xi1>, vector<64x64xf32>
    %cst_63 = arith.constant dense<0x7F800000> : vector<64xf32>
    %152 = vector.multi_reduction <minimumf>, %151, %cst_63 [1] : vector<64x64xf32> to vector<64xf32>
    %153 = vector.shape_cast %152 : vector<64xf32> to vector<64x1xf32>
    %154 = vector.broadcast %153 : vector<64x1xf32> to vector<64x64xf32>
    %155 = arith.cmpf oeq, %29, %154 : vector<64x64xf32>
    %cst_64 = arith.constant 1.000000e+29 : f32
    %156 = vector.broadcast %cst_64 : f32 to vector<64x1xf32>
    %157 = arith.cmpf olt, %147, %156 : vector<64x1xf32>
    %158 = arith.extui %57 : vector<64x64xi1> to vector<64x64xi32>
    %159 = arith.sitofp %158 : vector<64x64xi32> to vector<64x64xf32>
    %cst_65 = arith.constant dense<0.000000e+00> : vector<64x16xf32>
    %160 = tpu.matmul %159, %38, %cst_65 {dimension_numbers = #tpu.dot_dimension_numbers<[1], [0], [0], [1], [0, 0, 1, 1], [], []>} : vector<64x64xf32>, vector<64x16xf32>, vector<64x16xf32> -> vector<64x16xf32>
    %161 = arith.extui %71 : vector<64x64xi1> to vector<64x64xi32>
    %162 = arith.sitofp %161 : vector<64x64xi32> to vector<64x64xf32>
    %cst_66 = arith.constant dense<0.000000e+00> : vector<64x16xf32>
    %163 = tpu.matmul %162, %38, %cst_66 {dimension_numbers = #tpu.dot_dimension_numbers<[1], [0], [0], [1], [0, 0, 1, 1], [], []>} : vector<64x64xf32>, vector<64x16xf32>, vector<64x16xf32> -> vector<64x16xf32>
    %164 = arith.extui %85 : vector<64x64xi1> to vector<64x64xi32>
    %165 = arith.sitofp %164 : vector<64x64xi32> to vector<64x64xf32>
    %cst_67 = arith.constant dense<0.000000e+00> : vector<64x16xf32>
    %166 = tpu.matmul %165, %38, %cst_67 {dimension_numbers = #tpu.dot_dimension_numbers<[1], [0], [0], [1], [0, 0, 1, 1], [], []>} : vector<64x64xf32>, vector<64x16xf32>, vector<64x16xf32> -> vector<64x16xf32>
    %167 = arith.extui %99 : vector<64x64xi1> to vector<64x64xi32>
    %168 = arith.sitofp %167 : vector<64x64xi32> to vector<64x64xf32>
    %cst_68 = arith.constant dense<0.000000e+00> : vector<64x16xf32>
    %169 = tpu.matmul %168, %38, %cst_68 {dimension_numbers = #tpu.dot_dimension_numbers<[1], [0], [0], [1], [0, 0, 1, 1], [], []>} : vector<64x64xf32>, vector<64x16xf32>, vector<64x16xf32> -> vector<64x16xf32>
    %170 = arith.extui %113 : vector<64x64xi1> to vector<64x64xi32>
    %171 = arith.sitofp %170 : vector<64x64xi32> to vector<64x64xf32>
    %cst_69 = arith.constant dense<0.000000e+00> : vector<64x16xf32>
    %172 = tpu.matmul %171, %38, %cst_69 {dimension_numbers = #tpu.dot_dimension_numbers<[1], [0], [0], [1], [0, 0, 1, 1], [], []>} : vector<64x64xf32>, vector<64x16xf32>, vector<64x16xf32> -> vector<64x16xf32>
    %173 = arith.extui %127 : vector<64x64xi1> to vector<64x64xi32>
    %174 = arith.sitofp %173 : vector<64x64xi32> to vector<64x64xf32>
    %cst_70 = arith.constant dense<0.000000e+00> : vector<64x16xf32>
    %175 = tpu.matmul %174, %38, %cst_70 {dimension_numbers = #tpu.dot_dimension_numbers<[1], [0], [0], [1], [0, 0, 1, 1], [], []>} : vector<64x64xf32>, vector<64x16xf32>, vector<64x16xf32> -> vector<64x16xf32>
    %176 = arith.extui %141 : vector<64x64xi1> to vector<64x64xi32>
    %177 = arith.sitofp %176 : vector<64x64xi32> to vector<64x64xf32>
    %cst_71 = arith.constant dense<0.000000e+00> : vector<64x16xf32>
    %178 = tpu.matmul %177, %38, %cst_71 {dimension_numbers = #tpu.dot_dimension_numbers<[1], [0], [0], [1], [0, 0, 1, 1], [], []>} : vector<64x64xf32>, vector<64x16xf32>, vector<64x16xf32> -> vector<64x16xf32>
    %179 = arith.extui %155 : vector<64x64xi1> to vector<64x64xi32>
    %180 = arith.sitofp %179 : vector<64x64xi32> to vector<64x64xf32>
    %cst_72 = arith.constant dense<0.000000e+00> : vector<64x16xf32>
    %181 = tpu.matmul %180, %38, %cst_72 {dimension_numbers = #tpu.dot_dimension_numbers<[1], [0], [0], [1], [0, 0, 1, 1], [], []>} : vector<64x64xf32>, vector<64x16xf32>, vector<64x16xf32> -> vector<64x16xf32>
    %cst_73 = arith.constant 0.000000e+00 : f32
    %cst_74 = arith.constant 1.000000e+30 : f32
    %182 = arith.subf %cst_73, %cst_74 : f32
    %183 = vector.broadcast %182 : f32 to vector<64x16xf32>
    %184 = arith.maximumf %183, %160 : vector<64x16xf32>
    %185 = vector.shape_cast %59 : vector<64x1xi1> to vector<64x1xi1>
    %186 = vector.broadcast %185 : vector<64x1xi1> to vector<64x16xi1>
    %187 = arith.select %186, %184, %183 : vector<64x16xi1>, vector<64x16xf32>
    %188 = arith.maximumf %187, %163 : vector<64x16xf32>
    %189 = vector.shape_cast %73 : vector<64x1xi1> to vector<64x1xi1>
    %190 = vector.broadcast %189 : vector<64x1xi1> to vector<64x16xi1>
    %191 = arith.select %190, %188, %187 : vector<64x16xi1>, vector<64x16xf32>
    %192 = arith.maximumf %191, %166 : vector<64x16xf32>
    %193 = vector.shape_cast %87 : vector<64x1xi1> to vector<64x1xi1>
    %194 = vector.broadcast %193 : vector<64x1xi1> to vector<64x16xi1>
    %195 = arith.select %194, %192, %191 : vector<64x16xi1>, vector<64x16xf32>
    %196 = arith.maximumf %195, %169 : vector<64x16xf32>
    %197 = vector.shape_cast %101 : vector<64x1xi1> to vector<64x1xi1>
    %198 = vector.broadcast %197 : vector<64x1xi1> to vector<64x16xi1>
    %199 = arith.select %198, %196, %195 : vector<64x16xi1>, vector<64x16xf32>
    %200 = arith.maximumf %199, %172 : vector<64x16xf32>
    %201 = vector.shape_cast %115 : vector<64x1xi1> to vector<64x1xi1>
    %202 = vector.broadcast %201 : vector<64x1xi1> to vector<64x16xi1>
    %203 = arith.select %202, %200, %199 : vector<64x16xi1>, vector<64x16xf32>
    %204 = arith.maximumf %203, %175 : vector<64x16xf32>
    %205 = vector.shape_cast %129 : vector<64x1xi1> to vector<64x1xi1>
    %206 = vector.broadcast %205 : vector<64x1xi1> to vector<64x16xi1>
    %207 = arith.select %206, %204, %203 : vector<64x16xi1>, vector<64x16xf32>
    %208 = arith.maximumf %207, %178 : vector<64x16xf32>
    %209 = vector.shape_cast %143 : vector<64x1xi1> to vector<64x1xi1>
    %210 = vector.broadcast %209 : vector<64x1xi1> to vector<64x16xi1>
    %211 = arith.select %210, %208, %207 : vector<64x16xi1>, vector<64x16xf32>
    %212 = arith.maximumf %211, %181 : vector<64x16xf32>
    %213 = vector.shape_cast %157 : vector<64x1xi1> to vector<64x1xi1>
    %214 = vector.broadcast %213 : vector<64x1xi1> to vector<64x16xi1>
    %215 = arith.select %214, %212, %211 : vector<64x16xi1>, vector<64x16xf32>
    %216 = arith.addf %37, %215 : vector<64x16xf32>
    %cst_75 = arith.constant 0.000000e+00 : f32
    %217 = vector.broadcast %cst_75 : f32 to vector<64x16xf32>
    %218 = arith.cmpf ogt, %216, %217 : vector<64x16xf32>
    %219 = math.exp %216 : vector<64x16xf32>
    %cst_76 = arith.constant 1.000000e+00 : f32
    %220 = vector.broadcast %cst_76 : f32 to vector<64x16xf32>
    %221 = arith.subf %219, %220 : vector<64x16xf32>
    %222 = arith.select %218, %216, %221 : vector<64x16xi1>, vector<64x16xf32>
    %cst_77 = arith.constant dense<0.000000e+00> : vector<64x16xf32>
    %223 = tpu.matmul %222, %32, %cst_77 {dimension_numbers = #tpu.dot_dimension_numbers<[1], [0], [0], [1], [0, 0, 1, 1], [], []>} : vector<64x16xf32>, vector<16x16xf32>, vector<64x16xf32> -> vector<64x16xf32>
    %224 = vector.broadcast %34 : vector<1x16xf32> to vector<64x16xf32>
    %225 = arith.addf %223, %224 : vector<64x16xf32>
    %cst_78 = arith.constant dense<0.000000e+00> : vector<64x16xf32>
    %226 = tpu.matmul %222, %33, %cst_78 {dimension_numbers = #tpu.dot_dimension_numbers<[1], [0], [0], [1], [0, 0, 1, 1], [], []>} : vector<64x16xf32>, vector<16x16xf32>, vector<64x16xf32> -> vector<64x16xf32>
    %cst_79 = arith.constant dense<0.000000e+00> : vector<64x64xf32>
    %227 = tpu.matmul %222, %222, %cst_79 {dimension_numbers = #tpu.dot_dimension_numbers<[1], [1], [0], [0], [0, 0, 1, 0], [], []>} : vector<64x16xf32>, vector<64x16xf32>, vector<64x64xf32> -> vector<64x64xf32>
    %228 = arith.mulf %222, %222 : vector<64x16xf32>
    %cst_80 = arith.constant dense<0.000000e+00> : vector<1x64xf32>
    %229 = tpu.matmul %30, %228, %cst_80 {dimension_numbers = #tpu.dot_dimension_numbers<[1], [1], [0], [0], [0, 0, 1, 0], [], []>} : vector<1x16xf32>, vector<64x16xf32>, vector<1x64xf32> -> vector<1x64xf32>
    %cst_81 = arith.constant 2.000000e+00 : f32
    %230 = vector.broadcast %cst_81 : f32 to vector<64x64xf32>
    %231 = arith.mulf %230, %227 : vector<64x64xf32>
    %232 = vector.broadcast %229 : vector<1x64xf32> to vector<64x64xf32>
    %233 = arith.subf %232, %231 : vector<64x64xf32>
    %cst_82 = arith.constant 1.000000e+30 : f32
    %234 = vector.broadcast %cst_82 : f32 to vector<64x64xf32>
    %235 = arith.select %27, %233, %234 : vector<64x64xi1>, vector<64x64xf32>
    %cst_83 = arith.constant dense<0x7F800000> : vector<64xf32>
    %236 = vector.multi_reduction <minimumf>, %235, %cst_83 [1] : vector<64x64xf32> to vector<64xf32>
    %237 = vector.shape_cast %236 : vector<64xf32> to vector<64x1xf32>
    %238 = vector.broadcast %237 : vector<64x1xf32> to vector<64x64xf32>
    %239 = arith.cmpf oeq, %235, %238 : vector<64x64xf32>
    %cst_84 = arith.constant 6.400000e+01 : f32
    %240 = vector.broadcast %cst_84 : f32 to vector<64x64xf32>
    %241 = arith.select %239, %29, %240 : vector<64x64xi1>, vector<64x64xf32>
    %cst_85 = arith.constant dense<0x7F800000> : vector<64xf32>
    %242 = vector.multi_reduction <minimumf>, %241, %cst_85 [1] : vector<64x64xf32> to vector<64xf32>
    %243 = vector.shape_cast %242 : vector<64xf32> to vector<64x1xf32>
    %244 = vector.broadcast %243 : vector<64x1xf32> to vector<64x64xf32>
    %245 = arith.cmpf oeq, %29, %244 : vector<64x64xf32>
    %cst_86 = arith.constant 1.000000e+29 : f32
    %246 = vector.broadcast %cst_86 : f32 to vector<64x1xf32>
    %247 = arith.cmpf olt, %237, %246 : vector<64x1xf32>
    %cst_87 = arith.constant 1.000000e+30 : f32
    %248 = vector.broadcast %cst_87 : f32 to vector<64x64xf32>
    %249 = arith.select %245, %248, %235 : vector<64x64xi1>, vector<64x64xf32>
    %cst_88 = arith.constant dense<0x7F800000> : vector<64xf32>
    %250 = vector.multi_reduction <minimumf>, %249, %cst_88 [1] : vector<64x64xf32> to vector<64xf32>
    %251 = vector.shape_cast %250 : vector<64xf32> to vector<64x1xf32>
    %252 = vector.broadcast %251 : vector<64x1xf32> to vector<64x64xf32>
    %253 = arith.cmpf oeq, %249, %252 : vector<64x64xf32>
    %cst_89 = arith.constant 6.400000e+01 : f32
    %254 = vector.broadcast %cst_89 : f32 to vector<64x64xf32>
    %255 = arith.select %253, %29, %254 : vector<64x64xi1>, vector<64x64xf32>
    %cst_90 = arith.constant dense<0x7F800000> : vector<64xf32>
    %256 = vector.multi_reduction <minimumf>, %255, %cst_90 [1] : vector<64x64xf32> to vector<64xf32>
    %257 = vector.shape_cast %256 : vector<64xf32> to vector<64x1xf32>
    %258 = vector.broadcast %257 : vector<64x1xf32> to vector<64x64xf32>
    %259 = arith.cmpf oeq, %29, %258 : vector<64x64xf32>
    %cst_91 = arith.constant 1.000000e+29 : f32
    %260 = vector.broadcast %cst_91 : f32 to vector<64x1xf32>
    %261 = arith.cmpf olt, %251, %260 : vector<64x1xf32>
    %cst_92 = arith.constant 1.000000e+30 : f32
    %262 = vector.broadcast %cst_92 : f32 to vector<64x64xf32>
    %263 = arith.select %259, %262, %249 : vector<64x64xi1>, vector<64x64xf32>
    %cst_93 = arith.constant dense<0x7F800000> : vector<64xf32>
    %264 = vector.multi_reduction <minimumf>, %263, %cst_93 [1] : vector<64x64xf32> to vector<64xf32>
    %265 = vector.shape_cast %264 : vector<64xf32> to vector<64x1xf32>
    %266 = vector.broadcast %265 : vector<64x1xf32> to vector<64x64xf32>
    %267 = arith.cmpf oeq, %263, %266 : vector<64x64xf32>
    %cst_94 = arith.constant 6.400000e+01 : f32
    %268 = vector.broadcast %cst_94 : f32 to vector<64x64xf32>
    %269 = arith.select %267, %29, %268 : vector<64x64xi1>, vector<64x64xf32>
    %cst_95 = arith.constant dense<0x7F800000> : vector<64xf32>
    %270 = vector.multi_reduction <minimumf>, %269, %cst_95 [1] : vector<64x64xf32> to vector<64xf32>
    %271 = vector.shape_cast %270 : vector<64xf32> to vector<64x1xf32>
    %272 = vector.broadcast %271 : vector<64x1xf32> to vector<64x64xf32>
    %273 = arith.cmpf oeq, %29, %272 : vector<64x64xf32>
    %cst_96 = arith.constant 1.000000e+29 : f32
    %274 = vector.broadcast %cst_96 : f32 to vector<64x1xf32>
    %275 = arith.cmpf olt, %265, %274 : vector<64x1xf32>
    %cst_97 = arith.constant 1.000000e+30 : f32
    %276 = vector.broadcast %cst_97 : f32 to vector<64x64xf32>
    %277 = arith.select %273, %276, %263 : vector<64x64xi1>, vector<64x64xf32>
    %cst_98 = arith.constant dense<0x7F800000> : vector<64xf32>
    %278 = vector.multi_reduction <minimumf>, %277, %cst_98 [1] : vector<64x64xf32> to vector<64xf32>
    %279 = vector.shape_cast %278 : vector<64xf32> to vector<64x1xf32>
    %280 = vector.broadcast %279 : vector<64x1xf32> to vector<64x64xf32>
    %281 = arith.cmpf oeq, %277, %280 : vector<64x64xf32>
    %cst_99 = arith.constant 6.400000e+01 : f32
    %282 = vector.broadcast %cst_99 : f32 to vector<64x64xf32>
    %283 = arith.select %281, %29, %282 : vector<64x64xi1>, vector<64x64xf32>
    %cst_100 = arith.constant dense<0x7F800000> : vector<64xf32>
    %284 = vector.multi_reduction <minimumf>, %283, %cst_100 [1] : vector<64x64xf32> to vector<64xf32>
    %285 = vector.shape_cast %284 : vector<64xf32> to vector<64x1xf32>
    %286 = vector.broadcast %285 : vector<64x1xf32> to vector<64x64xf32>
    %287 = arith.cmpf oeq, %29, %286 : vector<64x64xf32>
    %cst_101 = arith.constant 1.000000e+29 : f32
    %288 = vector.broadcast %cst_101 : f32 to vector<64x1xf32>
    %289 = arith.cmpf olt, %279, %288 : vector<64x1xf32>
    %cst_102 = arith.constant 1.000000e+30 : f32
    %290 = vector.broadcast %cst_102 : f32 to vector<64x64xf32>
    %291 = arith.select %287, %290, %277 : vector<64x64xi1>, vector<64x64xf32>
    %cst_103 = arith.constant dense<0x7F800000> : vector<64xf32>
    %292 = vector.multi_reduction <minimumf>, %291, %cst_103 [1] : vector<64x64xf32> to vector<64xf32>
    %293 = vector.shape_cast %292 : vector<64xf32> to vector<64x1xf32>
    %294 = vector.broadcast %293 : vector<64x1xf32> to vector<64x64xf32>
    %295 = arith.cmpf oeq, %291, %294 : vector<64x64xf32>
    %cst_104 = arith.constant 6.400000e+01 : f32
    %296 = vector.broadcast %cst_104 : f32 to vector<64x64xf32>
    %297 = arith.select %295, %29, %296 : vector<64x64xi1>, vector<64x64xf32>
    %cst_105 = arith.constant dense<0x7F800000> : vector<64xf32>
    %298 = vector.multi_reduction <minimumf>, %297, %cst_105 [1] : vector<64x64xf32> to vector<64xf32>
    %299 = vector.shape_cast %298 : vector<64xf32> to vector<64x1xf32>
    %300 = vector.broadcast %299 : vector<64x1xf32> to vector<64x64xf32>
    %301 = arith.cmpf oeq, %29, %300 : vector<64x64xf32>
    %cst_106 = arith.constant 1.000000e+29 : f32
    %302 = vector.broadcast %cst_106 : f32 to vector<64x1xf32>
    %303 = arith.cmpf olt, %293, %302 : vector<64x1xf32>
    %cst_107 = arith.constant 1.000000e+30 : f32
    %304 = vector.broadcast %cst_107 : f32 to vector<64x64xf32>
    %305 = arith.select %301, %304, %291 : vector<64x64xi1>, vector<64x64xf32>
    %cst_108 = arith.constant dense<0x7F800000> : vector<64xf32>
    %306 = vector.multi_reduction <minimumf>, %305, %cst_108 [1] : vector<64x64xf32> to vector<64xf32>
    %307 = vector.shape_cast %306 : vector<64xf32> to vector<64x1xf32>
    %308 = vector.broadcast %307 : vector<64x1xf32> to vector<64x64xf32>
    %309 = arith.cmpf oeq, %305, %308 : vector<64x64xf32>
    %cst_109 = arith.constant 6.400000e+01 : f32
    %310 = vector.broadcast %cst_109 : f32 to vector<64x64xf32>
    %311 = arith.select %309, %29, %310 : vector<64x64xi1>, vector<64x64xf32>
    %cst_110 = arith.constant dense<0x7F800000> : vector<64xf32>
    %312 = vector.multi_reduction <minimumf>, %311, %cst_110 [1] : vector<64x64xf32> to vector<64xf32>
    %313 = vector.shape_cast %312 : vector<64xf32> to vector<64x1xf32>
    %314 = vector.broadcast %313 : vector<64x1xf32> to vector<64x64xf32>
    %315 = arith.cmpf oeq, %29, %314 : vector<64x64xf32>
    %cst_111 = arith.constant 1.000000e+29 : f32
    %316 = vector.broadcast %cst_111 : f32 to vector<64x1xf32>
    %317 = arith.cmpf olt, %307, %316 : vector<64x1xf32>
    %cst_112 = arith.constant 1.000000e+30 : f32
    %318 = vector.broadcast %cst_112 : f32 to vector<64x64xf32>
    %319 = arith.select %315, %318, %305 : vector<64x64xi1>, vector<64x64xf32>
    %cst_113 = arith.constant dense<0x7F800000> : vector<64xf32>
    %320 = vector.multi_reduction <minimumf>, %319, %cst_113 [1] : vector<64x64xf32> to vector<64xf32>
    %321 = vector.shape_cast %320 : vector<64xf32> to vector<64x1xf32>
    %322 = vector.broadcast %321 : vector<64x1xf32> to vector<64x64xf32>
    %323 = arith.cmpf oeq, %319, %322 : vector<64x64xf32>
    %cst_114 = arith.constant 6.400000e+01 : f32
    %324 = vector.broadcast %cst_114 : f32 to vector<64x64xf32>
    %325 = arith.select %323, %29, %324 : vector<64x64xi1>, vector<64x64xf32>
    %cst_115 = arith.constant dense<0x7F800000> : vector<64xf32>
    %326 = vector.multi_reduction <minimumf>, %325, %cst_115 [1] : vector<64x64xf32> to vector<64xf32>
    %327 = vector.shape_cast %326 : vector<64xf32> to vector<64x1xf32>
    %328 = vector.broadcast %327 : vector<64x1xf32> to vector<64x64xf32>
    %329 = arith.cmpf oeq, %29, %328 : vector<64x64xf32>
    %cst_116 = arith.constant 1.000000e+29 : f32
    %330 = vector.broadcast %cst_116 : f32 to vector<64x1xf32>
    %331 = arith.cmpf olt, %321, %330 : vector<64x1xf32>
    %cst_117 = arith.constant 1.000000e+30 : f32
    %332 = vector.broadcast %cst_117 : f32 to vector<64x64xf32>
    %333 = arith.select %329, %332, %319 : vector<64x64xi1>, vector<64x64xf32>
    %cst_118 = arith.constant dense<0x7F800000> : vector<64xf32>
    %334 = vector.multi_reduction <minimumf>, %333, %cst_118 [1] : vector<64x64xf32> to vector<64xf32>
    %335 = vector.shape_cast %334 : vector<64xf32> to vector<64x1xf32>
    %336 = vector.broadcast %335 : vector<64x1xf32> to vector<64x64xf32>
    %337 = arith.cmpf oeq, %333, %336 : vector<64x64xf32>
    %cst_119 = arith.constant 6.400000e+01 : f32
    %338 = vector.broadcast %cst_119 : f32 to vector<64x64xf32>
    %339 = arith.select %337, %29, %338 : vector<64x64xi1>, vector<64x64xf32>
    %cst_120 = arith.constant dense<0x7F800000> : vector<64xf32>
    %340 = vector.multi_reduction <minimumf>, %339, %cst_120 [1] : vector<64x64xf32> to vector<64xf32>
    %341 = vector.shape_cast %340 : vector<64xf32> to vector<64x1xf32>
    %342 = vector.broadcast %341 : vector<64x1xf32> to vector<64x64xf32>
    %343 = arith.cmpf oeq, %29, %342 : vector<64x64xf32>
    %cst_121 = arith.constant 1.000000e+29 : f32
    %344 = vector.broadcast %cst_121 : f32 to vector<64x1xf32>
    %345 = arith.cmpf olt, %335, %344 : vector<64x1xf32>
    %346 = arith.extui %245 : vector<64x64xi1> to vector<64x64xi32>
    %347 = arith.sitofp %346 : vector<64x64xi32> to vector<64x64xf32>
    %cst_122 = arith.constant dense<0.000000e+00> : vector<64x16xf32>
    %348 = tpu.matmul %347, %226, %cst_122 {dimension_numbers = #tpu.dot_dimension_numbers<[1], [0], [0], [1], [0, 0, 1, 1], [], []>} : vector<64x64xf32>, vector<64x16xf32>, vector<64x16xf32> -> vector<64x16xf32>
    %349 = arith.extui %259 : vector<64x64xi1> to vector<64x64xi32>
    %350 = arith.sitofp %349 : vector<64x64xi32> to vector<64x64xf32>
    %cst_123 = arith.constant dense<0.000000e+00> : vector<64x16xf32>
    %351 = tpu.matmul %350, %226, %cst_123 {dimension_numbers = #tpu.dot_dimension_numbers<[1], [0], [0], [1], [0, 0, 1, 1], [], []>} : vector<64x64xf32>, vector<64x16xf32>, vector<64x16xf32> -> vector<64x16xf32>
    %352 = arith.extui %273 : vector<64x64xi1> to vector<64x64xi32>
    %353 = arith.sitofp %352 : vector<64x64xi32> to vector<64x64xf32>
    %cst_124 = arith.constant dense<0.000000e+00> : vector<64x16xf32>
    %354 = tpu.matmul %353, %226, %cst_124 {dimension_numbers = #tpu.dot_dimension_numbers<[1], [0], [0], [1], [0, 0, 1, 1], [], []>} : vector<64x64xf32>, vector<64x16xf32>, vector<64x16xf32> -> vector<64x16xf32>
    %355 = arith.extui %287 : vector<64x64xi1> to vector<64x64xi32>
    %356 = arith.sitofp %355 : vector<64x64xi32> to vector<64x64xf32>
    %cst_125 = arith.constant dense<0.000000e+00> : vector<64x16xf32>
    %357 = tpu.matmul %356, %226, %cst_125 {dimension_numbers = #tpu.dot_dimension_numbers<[1], [0], [0], [1], [0, 0, 1, 1], [], []>} : vector<64x64xf32>, vector<64x16xf32>, vector<64x16xf32> -> vector<64x16xf32>
    %358 = arith.extui %301 : vector<64x64xi1> to vector<64x64xi32>
    %359 = arith.sitofp %358 : vector<64x64xi32> to vector<64x64xf32>
    %cst_126 = arith.constant dense<0.000000e+00> : vector<64x16xf32>
    %360 = tpu.matmul %359, %226, %cst_126 {dimension_numbers = #tpu.dot_dimension_numbers<[1], [0], [0], [1], [0, 0, 1, 1], [], []>} : vector<64x64xf32>, vector<64x16xf32>, vector<64x16xf32> -> vector<64x16xf32>
    %361 = arith.extui %315 : vector<64x64xi1> to vector<64x64xi32>
    %362 = arith.sitofp %361 : vector<64x64xi32> to vector<64x64xf32>
    %cst_127 = arith.constant dense<0.000000e+00> : vector<64x16xf32>
    %363 = tpu.matmul %362, %226, %cst_127 {dimension_numbers = #tpu.dot_dimension_numbers<[1], [0], [0], [1], [0, 0, 1, 1], [], []>} : vector<64x64xf32>, vector<64x16xf32>, vector<64x16xf32> -> vector<64x16xf32>
    %364 = arith.extui %329 : vector<64x64xi1> to vector<64x64xi32>
    %365 = arith.sitofp %364 : vector<64x64xi32> to vector<64x64xf32>
    %cst_128 = arith.constant dense<0.000000e+00> : vector<64x16xf32>
    %366 = tpu.matmul %365, %226, %cst_128 {dimension_numbers = #tpu.dot_dimension_numbers<[1], [0], [0], [1], [0, 0, 1, 1], [], []>} : vector<64x64xf32>, vector<64x16xf32>, vector<64x16xf32> -> vector<64x16xf32>
    %367 = arith.extui %343 : vector<64x64xi1> to vector<64x64xi32>
    %368 = arith.sitofp %367 : vector<64x64xi32> to vector<64x64xf32>
    %cst_129 = arith.constant dense<0.000000e+00> : vector<64x16xf32>
    %369 = tpu.matmul %368, %226, %cst_129 {dimension_numbers = #tpu.dot_dimension_numbers<[1], [0], [0], [1], [0, 0, 1, 1], [], []>} : vector<64x64xf32>, vector<64x16xf32>, vector<64x16xf32> -> vector<64x16xf32>
    %cst_130 = arith.constant 0.000000e+00 : f32
    %cst_131 = arith.constant 1.000000e+30 : f32
    %370 = arith.subf %cst_130, %cst_131 : f32
    %371 = vector.broadcast %370 : f32 to vector<64x16xf32>
    %372 = arith.maximumf %371, %348 : vector<64x16xf32>
    %373 = vector.shape_cast %247 : vector<64x1xi1> to vector<64x1xi1>
    %374 = vector.broadcast %373 : vector<64x1xi1> to vector<64x16xi1>
    %375 = arith.select %374, %372, %371 : vector<64x16xi1>, vector<64x16xf32>
    %376 = arith.maximumf %375, %351 : vector<64x16xf32>
    %377 = vector.shape_cast %261 : vector<64x1xi1> to vector<64x1xi1>
    %378 = vector.broadcast %377 : vector<64x1xi1> to vector<64x16xi1>
    %379 = arith.select %378, %376, %375 : vector<64x16xi1>, vector<64x16xf32>
    %380 = arith.maximumf %379, %354 : vector<64x16xf32>
    %381 = vector.shape_cast %275 : vector<64x1xi1> to vector<64x1xi1>
    %382 = vector.broadcast %381 : vector<64x1xi1> to vector<64x16xi1>
    %383 = arith.select %382, %380, %379 : vector<64x16xi1>, vector<64x16xf32>
    %384 = arith.maximumf %383, %357 : vector<64x16xf32>
    %385 = vector.shape_cast %289 : vector<64x1xi1> to vector<64x1xi1>
    %386 = vector.broadcast %385 : vector<64x1xi1> to vector<64x16xi1>
    %387 = arith.select %386, %384, %383 : vector<64x16xi1>, vector<64x16xf32>
    %388 = arith.maximumf %387, %360 : vector<64x16xf32>
    %389 = vector.shape_cast %303 : vector<64x1xi1> to vector<64x1xi1>
    %390 = vector.broadcast %389 : vector<64x1xi1> to vector<64x16xi1>
    %391 = arith.select %390, %388, %387 : vector<64x16xi1>, vector<64x16xf32>
    %392 = arith.maximumf %391, %363 : vector<64x16xf32>
    %393 = vector.shape_cast %317 : vector<64x1xi1> to vector<64x1xi1>
    %394 = vector.broadcast %393 : vector<64x1xi1> to vector<64x16xi1>
    %395 = arith.select %394, %392, %391 : vector<64x16xi1>, vector<64x16xf32>
    %396 = arith.maximumf %395, %366 : vector<64x16xf32>
    %397 = vector.shape_cast %331 : vector<64x1xi1> to vector<64x1xi1>
    %398 = vector.broadcast %397 : vector<64x1xi1> to vector<64x16xi1>
    %399 = arith.select %398, %396, %395 : vector<64x16xi1>, vector<64x16xf32>
    %400 = arith.maximumf %399, %369 : vector<64x16xf32>
    %401 = vector.shape_cast %345 : vector<64x1xi1> to vector<64x1xi1>
    %402 = vector.broadcast %401 : vector<64x1xi1> to vector<64x16xi1>
    %403 = arith.select %402, %400, %399 : vector<64x16xi1>, vector<64x16xf32>
    %404 = arith.addf %225, %403 : vector<64x16xf32>
    %cst_132 = arith.constant 0.000000e+00 : f32
    %405 = vector.broadcast %cst_132 : f32 to vector<64x16xf32>
    %406 = arith.cmpf ogt, %404, %405 : vector<64x16xf32>
    %407 = math.exp %404 : vector<64x16xf32>
    %cst_133 = arith.constant 1.000000e+00 : f32
    %408 = vector.broadcast %cst_133 : f32 to vector<64x16xf32>
    %409 = arith.subf %407, %408 : vector<64x16xf32>
    %410 = arith.select %406, %404, %409 : vector<64x16xi1>, vector<64x16xf32>
    %411 = tpu.iota {dimensions = array<i32: 0>} : vector<2x1xi32>
    %412 = arith.sitofp %411 : vector<2x1xi32> to vector<2x1xf32>
    %413 = vector.broadcast %412 : vector<2x1xf32> to vector<2x64xf32>
    %414 = vector.broadcast %2 : vector<1x64xf32> to vector<2x64xf32>
    %415 = arith.cmpf oeq, %413, %414 : vector<2x64xf32>
    %416 = arith.extui %415 : vector<2x64xi1> to vector<2x64xi32>
    %417 = arith.sitofp %416 : vector<2x64xi32> to vector<2x64xf32>
    %cst_134 = arith.constant dense<0.000000e+00> : vector<2x1xf32>
    %418 = tpu.matmul %417, %31, %cst_134 {dimension_numbers = #tpu.dot_dimension_numbers<[1], [0], [0], [1], [0, 0, 1, 1], [], []>} : vector<2x64xf32>, vector<64x1xf32>, vector<2x1xf32> -> vector<2x1xf32>
    %cst_135 = arith.constant dense<0.000000e+00> : vector<2x16xf32>
    %419 = tpu.matmul %417, %410, %cst_135 {dimension_numbers = #tpu.dot_dimension_numbers<[1], [0], [0], [1], [0, 0, 1, 1], [], []>} : vector<2x64xf32>, vector<64x16xf32>, vector<2x16xf32> -> vector<2x16xf32>
    %420 = tpu.reciprocal %418 : vector<2x1xf32> -> vector<2x1xf32>
    %421 = vector.broadcast %420 : vector<2x1xf32> to vector<2x16xf32>
    %422 = arith.mulf %419, %421 : vector<2x16xf32>
    %c55 = arith.constant 55 : index
    %c0_136 = arith.constant 0 : index
    %423 = vector.load %arg2[%c55, %c0_136] : memref<86x16xf32, #tpu.memory_space<vmem>>, vector<16x8xf32>
    %cst_137 = arith.constant dense<0.000000e+00> : vector<2x8xf32>
    %424 = tpu.matmul %422, %423, %cst_137 {dimension_numbers = #tpu.dot_dimension_numbers<[1], [0], [0], [1], [0, 0, 1, 1], [], []>} : vector<2x16xf32>, vector<16x8xf32>, vector<2x8xf32> -> vector<2x8xf32>
    %c71 = arith.constant 71 : index
    %c0_138 = arith.constant 0 : index
    %425 = vector.load %arg2[%c71, %c0_138] : memref<86x16xf32, #tpu.memory_space<vmem>>, vector<1x8xf32>
    %426 = vector.broadcast %425 : vector<1x8xf32> to vector<2x8xf32>
    %427 = arith.addf %424, %426 : vector<2x8xf32>
    %cst_139 = arith.constant 0.000000e+00 : f32
    %428 = vector.broadcast %cst_139 : f32 to vector<2x8xf32>
    %429 = arith.cmpf ogt, %427, %428 : vector<2x8xf32>
    %430 = math.exp %427 : vector<2x8xf32>
    %cst_140 = arith.constant 1.000000e+00 : f32
    %431 = vector.broadcast %cst_140 : f32 to vector<2x8xf32>
    %432 = arith.subf %430, %431 : vector<2x8xf32>
    %433 = arith.select %429, %427, %432 : vector<2x8xi1>, vector<2x8xf32>
    %c72 = arith.constant 72 : index
    %c0_141 = arith.constant 0 : index
    %434 = vector.load %arg2[%c72, %c0_141] : memref<86x16xf32, #tpu.memory_space<vmem>>, vector<8x4xf32>
    %cst_142 = arith.constant dense<0.000000e+00> : vector<2x4xf32>
    %435 = tpu.matmul %433, %434, %cst_142 {dimension_numbers = #tpu.dot_dimension_numbers<[1], [0], [0], [1], [0, 0, 1, 1], [], []>} : vector<2x8xf32>, vector<8x4xf32>, vector<2x4xf32> -> vector<2x4xf32>
    %c80 = arith.constant 80 : index
    %c0_143 = arith.constant 0 : index
    %436 = vector.load %arg2[%c80, %c0_143] : memref<86x16xf32, #tpu.memory_space<vmem>>, vector<1x4xf32>
    %437 = vector.broadcast %436 : vector<1x4xf32> to vector<2x4xf32>
    %438 = arith.addf %435, %437 : vector<2x4xf32>
    %cst_144 = arith.constant 0.000000e+00 : f32
    %439 = vector.broadcast %cst_144 : f32 to vector<2x4xf32>
    %440 = arith.cmpf ogt, %438, %439 : vector<2x4xf32>
    %441 = math.exp %438 : vector<2x4xf32>
    %cst_145 = arith.constant 1.000000e+00 : f32
    %442 = vector.broadcast %cst_145 : f32 to vector<2x4xf32>
    %443 = arith.subf %441, %442 : vector<2x4xf32>
    %444 = arith.select %440, %438, %443 : vector<2x4xi1>, vector<2x4xf32>
    %c81 = arith.constant 81 : index
    %c0_146 = arith.constant 0 : index
    %445 = vector.load %arg2[%c81, %c0_146] : memref<86x16xf32, #tpu.memory_space<vmem>>, vector<4x1xf32>
    %cst_147 = arith.constant dense<0.000000e+00> : vector<2x1xf32>
    %446 = tpu.matmul %444, %445, %cst_147 {dimension_numbers = #tpu.dot_dimension_numbers<[1], [0], [0], [1], [0, 0, 1, 1], [], []>} : vector<2x4xf32>, vector<4x1xf32>, vector<2x1xf32> -> vector<2x1xf32>
    %c85 = arith.constant 85 : index
    %c0_148 = arith.constant 0 : index
    %447 = vector.load %arg2[%c85, %c0_148] : memref<86x16xf32, #tpu.memory_space<vmem>>, vector<1x1xf32>
    %448 = vector.broadcast %447 : vector<1x1xf32> to vector<2x1xf32>
    %449 = arith.addf %446, %448 : vector<2x1xf32>
    %c0_149 = arith.constant 0 : index
    %c0_150 = arith.constant 0 : index
    %450 = vector.load %arg3[%c0_149, %c0_150] : memref<2x1xf32, #tpu.memory_space<vmem>>, vector<2x1xf32>
    tpu.vector_store %arg3[%c0_149, %c0_150], %449 {strides = array<i32>} : memref<2x1xf32, #tpu.memory_space<vmem>>, vector<2x1xf32>,
    return
  }
}

</mosaic_0001>

<llo_original>
// kernel: suep_net_forward.1
$region0: #{suep_net_forward.1}
  #allocation0 [shape = 'u32[]', space=smem, size = 0x4, offset = 0x4, fixed_abs, tag = 'smem constant byte address 0x4 - core index']
  #allocation1 [shape = 'u32[72,128]{1,0:T(1,128)}', space=vmem, size = 0x9000, scoped, tag = 'internal scratch']
  %s0 = inlined_call_operand.vmem [shape: f32[64,5], index: 0, kind: input, shape index: {}]
  %s1 = inlined_call_operand.vmem [shape: f32[1,64], index: 1, kind: input, shape index: {}]
  %s2 = inlined_call_operand.vmem [shape: f32[86,16], index: 2, kind: input, shape index: {}]
  %s3 = inlined_call_operand.vmem [shape: f32[2,1], index: 3, kind: output, shape index: {}]
  %s4 = sld [smem:[#allocation0]]
  $region22: #{suep_net_forward.1} parent=0
    _
  %s6 = ssub.s32 1, %s4
  %s7 = scalar_select 0, %s6, %s4
  // Predicated region
  $region2: #{suep_net_forward.1} parent=0 // pred_check
    _
  $region3: #{suep_net_forward.1} parent=0 // pred_check_branch
    %9 = sbr.rel (0) target = $region5
  $region4: #{suep_net_forward.1} parent=0 // pred_region
    _
  $region5: #{suep_net_forward.1} parent=0 // pred_fallthru
    _
  // Predicated region
  $region6: #{suep_net_forward.1} parent=0 // pred_check
    _
  $region7: #{suep_net_forward.1} parent=0 // pred_check_branch
    %11 = sbr.rel (0) target = $region9
  $region8: #{suep_net_forward.1} parent=0 // pred_region
    _
  $region9: #{suep_net_forward.1} parent=0 // pred_fallthru
    _
  // Predicated region
  $region10: #{suep_net_forward.1} parent=0 // pred_check
    _
  $region11: #{suep_net_forward.1} parent=0 // pred_check_branch
    %13 = sbr.rel (0) target = $region13
  $region12: #{suep_net_forward.1} parent=0 // pred_region
    _
  $region13: #{suep_net_forward.1} parent=0 // pred_fallthru
    _
  %v14 = vld [vmem:[%s0] sm:$0xff]
  %v15 = vld [vmem:[%s0 + $0x8] sm:$0xff]
  %v16 = vld [vmem:[%s0 + $0x10] sm:$0xff]
  %v17 = vld [vmem:[%s0 + $0x18] sm:$0xff]
  %v18 = vld [vmem:[%s0 + $0x20] sm:$0xff]
  %v19 = vld [vmem:[%s0 + $0x28] sm:$0xff]
  %v20 = vld [vmem:[%s0 + $0x30] sm:$0xff]
  %v21 = vld [vmem:[%s0 + $0x38] sm:$0xff]
  %v22 = vld [vmem:[%s1] sm:$0x1]
  %v23 = vld [vmem:[%s2] sm:$0xf]
  %v24 = vld [vmem:[%s2 + $0x4] sm:$0x1]
  %v25 = vperm.slane %v24, 0
  %vm26 = vcmask 31744
  %v28 = vsel %vm26, %v14, 0
  %v31 = vsel %vm26, %v15, 0
  %v34 = vsel %vm26, %v16, 0
  %v37 = vsel %vm26, %v17, 0
  %v40 = vsel %vm26, %v18, 0
  %v43 = vsel %vm26, %v19, 0
  %v46 = vsel %vm26, %v20, 0
  %v49 = vsel %vm26, %v21, 0
  %vm51 = vcmask 1043456
  %v53 = vsel %vm51, %v23, 0
  %55 = vmatpush.msra.mxu0 0.0
  %56 = vmatpush.msra.mxu0 0.0
  %57 = vmatpush.msra.mxu0 0.0
  %58 = vmatpush.msra.mxu0 0.0
  %59 = vmatpush.msra.mxu0 0.0
  %60 = vmatpush.msra.mxu0 0.0
  %61 = vmatpush.msra.mxu0 0.0
  %62 = vmatpush.msra.mxu0 0.0
  %63 = vmatpush.msra.mxu0 0.0
  %64 = vmatpush.msra.mxu0 0.0
  %65 = vmatpush.msra.mxu0 0.0
  %66 = vmatpush.msra.mxu0 0.0
  %67 = vmatpush.msra.mxu0 0.0
  %68 = vmatpush.msra.mxu0 0.0
  %69 = vmatpush.msra.mxu0 0.0
  %70 = vmatpush.msra.mxu0 %v53
  %71 = vmatmul.f32.gmra.mxu0 %v28
  %v72 = vpop.f32.mrf.mxu0
  %v73 = vadd.f32 %v25, %v72
  %74 = vmatmul.f32.gmra.mxu0 %v31
  %v75 = vpop.f32.mrf.mxu0
  %v76 = vadd.f32 %v25, %v75
  %77 = vmatmul.f32.gmra.mxu0 %v34
  %v78 = vpop.f32.mrf.mxu0
  %v79 = vadd.f32 %v25, %v78
  %80 = vmatmul.f32.gmra.mxu0 %v37
  %v81 = vpop.f32.mrf.mxu0
  %v82 = vadd.f32 %v25, %v81
  %83 = vmatmul.f32.gmra.mxu0 %v40
  %v84 = vpop.f32.mrf.mxu0
  %v85 = vadd.f32 %v25, %v84
  %86 = vmatmul.f32.gmra.mxu0 %v43
  %v87 = vpop.f32.mrf.mxu0
  %v88 = vadd.f32 %v25, %v87
  %89 = vmatmul.f32.gmra.mxu0 %v46
  %v90 = vpop.f32.mrf.mxu0
  %v91 = vadd.f32 %v25, %v90
  %92 = vmatmul.f32.gmra.mxu0 %v49
  %v93 = vpop.f32.mrf.mxu0
  %v94 = vadd.f32 %v25, %v93
  %95 = vdwg.mxu0
  %vm96 = vcmp.gt.f32.partialorder %v73, 0.0
  %vm97 = vcmp.gt.f32.partialorder %v76, 0.0
  %vm98 = vcmp.gt.f32.partialorder %v79, 0.0
  %vm99 = vcmp.gt.f32.partialorder %v82, 0.0
  %vm100 = vcmp.gt.f32.partialorder %v85, 0.0
  %vm101 = vcmp.gt.f32.partialorder %v88, 0.0
  %vm102 = vcmp.gt.f32.partialorder %v91, 0.0
  %vm103 = vcmp.gt.f32.partialorder %v94, 0.0
  %v104 = vmul.f32 %v73, 1.442695
  %v105 = vpow.pop %v104
  %v106 = vmul.f32 %v76, 1.442695
  %v107 = vpow.pop %v106
  %v108 = vmul.f32 %v79, 1.442695
  %v109 = vpow.pop %v108
  %v110 = vmul.f32 %v82, 1.442695
  %v111 = vpow.pop %v110
  %v112 = vmul.f32 %v85, 1.442695
  %v113 = vpow.pop %v112
  %v114 = vmul.f32 %v88, 1.442695
  %v115 = vpow.pop %v114
  %v116 = vmul.f32 %v91, 1.442695
  %v117 = vpow.pop %v116
  %v118 = vmul.f32 %v94, 1.442695
  %v119 = vpow.pop %v118
  %v120 = vsub.f32 %v105, 1.0
  %v121 = vsub.f32 %v107, 1.0
  %v122 = vsub.f32 %v109, 1.0
  %v123 = vsub.f32 %v111, 1.0
  %v124 = vsub.f32 %v113, 1.0
  %v125 = vsub.f32 %v115, 1.0
  %v126 = vsub.f32 %v117, 1.0
  %v127 = vsub.f32 %v119, 1.0
  %v128 = vsel %vm96, %v73, %v120
  %v129 = vsel %vm97, %v76, %v121
  %v130 = vsel %vm98, %v79, %v122
  %v131 = vsel %vm99, %v82, %v123
  %v132 = vsel %vm100, %v85, %v124
  %v133 = vsel %vm101, %v88, %v125
  %v134 = vsel %vm102, %v91, %v126
  %v135 = vsel %vm103, %v94, %v127
  %v136 = vld [vmem:[%s2 + $0x5] sm:$0xff]
  %v137 = vld [vmem:[%s2 + $0xd] sm:$0xff]
  %v138 = vld [vmem:[%s2 + $0x15] sm:$0x1]
  %v139 = vperm.slane %v138, 0
  %vm140 = vcmask 130048
  %v142 = vsel %vm140, %v128, 0
  %v145 = vsel %vm140, %v129, 0
  %v148 = vsel %vm140, %v130, 0
  %v151 = vsel %vm140, %v131, 0
  %v154 = vsel %vm140, %v132, 0
  %v157 = vsel %vm140, %v133, 0
  %v160 = vsel %vm140, %v134, 0
  %v163 = vsel %vm140, %v135, 0
  %165 = vmatpush.msra.mxu0 0.0
  %166 = vmatpush.msra.mxu0 0.0
  %167 = vmatpush.msra.mxu0 0.0
  %168 = vmatpush.msra.mxu0 0.0
  %169 = vmatpush.msra.mxu0 0.0
  %170 = vmatpush.msra.mxu0 0.0
  %171 = vmatpush.msra.mxu0 0.0
  %172 = vmatpush.msra.mxu0 0.0
  %173 = vmatpush.msra.mxu0 0.0
  %174 = vmatpush.msra.mxu0 0.0
  %175 = vmatpush.msra.mxu0 0.0
  %176 = vmatpush.msra.mxu0 0.0
  %177 = vmatpush.msra.mxu0 0.0
  %178 = vmatpush.msra.mxu0 0.0
  %179 = vmatpush.msra.mxu0 %v137
  %180 = vmatpush.msra.mxu0 %v136
  %181 = vmatmul.f32.gmra.mxu0 %v142
  %v182 = vpop.f32.mrf.mxu0
  %v183 = vadd.f32 %v139, %v182
  %184 = vmatmul.f32.gmra.mxu0 %v145
  %v185 = vpop.f32.mrf.mxu0
  %v186 = vadd.f32 %v139, %v185
  %187 = vmatmul.f32.gmra.mxu0 %v148
  %v188 = vpop.f32.mrf.mxu0
  %v189 = vadd.f32 %v139, %v188
  %190 = vmatmul.f32.gmra.mxu0 %v151
  %v191 = vpop.f32.mrf.mxu0
  %v192 = vadd.f32 %v139, %v191
  %193 = vmatmul.f32.gmra.mxu0 %v154
  %v194 = vpop.f32.mrf.mxu0
  %v195 = vadd.f32 %v139, %v194
  %196 = vmatmul.f32.gmra.mxu0 %v157
  %v197 = vpop.f32.mrf.mxu0
  %v198 = vadd.f32 %v139, %v197
  %199 = vmatmul.f32.gmra.mxu0 %v160
  %v200 = vpop.f32.mrf.mxu0
  %v201 = vadd.f32 %v139, %v200
  %202 = vmatmul.f32.gmra.mxu0 %v163
  %v203 = vpop.f32.mrf.mxu0
  %v204 = vadd.f32 %v139, %v203
  %205 = vdwg.mxu0
  %vm206 = vcmp.gt.f32.partialorder %v183, 0.0
  %vm207 = vcmp.gt.f32.partialorder %v186, 0.0
  %vm208 = vcmp.gt.f32.partialorder %v189, 0.0
  %vm209 = vcmp.gt.f32.partialorder %v192, 0.0
  %vm210 = vcmp.gt.f32.partialorder %v195, 0.0
  %vm211 = vcmp.gt.f32.partialorder %v198, 0.0
  %vm212 = vcmp.gt.f32.partialorder %v201, 0.0
  %vm213 = vcmp.gt.f32.partialorder %v204, 0.0
  %v214 = vmul.f32 %v183, 1.442695
  %v215 = vpow.pop %v214
  %v216 = vmul.f32 %v186, 1.442695
  %v217 = vpow.pop %v216
  %v218 = vmul.f32 %v189, 1.442695
  %v219 = vpow.pop %v218
  %v220 = vmul.f32 %v192, 1.442695
  %v221 = vpow.pop %v220
  %v222 = vmul.f32 %v195, 1.442695
  %v223 = vpow.pop %v222
  %v224 = vmul.f32 %v198, 1.442695
  %v225 = vpow.pop %v224
  %v226 = vmul.f32 %v201, 1.442695
  %v227 = vpow.pop %v226
  %v228 = vmul.f32 %v204, 1.442695
  %v229 = vpow.pop %v228
  %v230 = vsub.f32 %v215, 1.0
  %v231 = vsub.f32 %v217, 1.0
  %v232 = vsub.f32 %v219, 1.0
  %v233 = vsub.f32 %v221, 1.0
  %v234 = vsub.f32 %v223, 1.0
  %v235 = vsub.f32 %v225, 1.0
  %v236 = vsub.f32 %v227, 1.0
  %v237 = vsub.f32 %v229, 1.0
  %v238 = vsel %vm206, %v183, %v230
  %v239 = vsel %vm207, %v186, %v231
  %v240 = vsel %vm208, %v189, %v232
  %v241 = vsel %vm209, %v192, %v233
  %v242 = vsel %vm210, %v195, %v234
  %v243 = vsel %vm211, %v198, %v235
  %v244 = vsel %vm212, %v201, %v236
  %v245 = vsel %vm213, %v204, %v237
  %246 = vset.pattern.permute.xlu0 4
  %247 = vperm.xlu0 %246, %v14
  %v248 = vpop.permute.xlu0 %247
  %250 = vset.pattern.permute.xlu0 4
  %251 = vperm.xlu0 %250, %v15
  %v252 = vpop.permute.xlu0 %251
  %254 = vset.pattern.permute.xlu0 4
  %255 = vperm.xlu0 %254, %v16
  %v256 = vpop.permute.xlu0 %255
  %258 = vset.pattern.permute.xlu0 4
  %259 = vperm.xlu0 %258, %v17
  %v260 = vpop.permute.xlu0 %259
  %262 = vset.pattern.permute.xlu0 4
  %263 = vperm.xlu0 %262, %v18
  %v264 = vpop.permute.xlu0 %263
  %266 = vset.pattern.permute.xlu0 4
  %267 = vperm.xlu0 %266, %v19
  %v268 = vpop.permute.xlu0 %267
  %270 = vset.pattern.permute.xlu0 4
  %271 = vperm.xlu0 %270, %v20
  %v272 = vpop.permute.xlu0 %271
  %274 = vset.pattern.permute.xlu0 4
  %275 = vperm.xlu0 %274, %v21
  %v276 = vpop.permute.xlu0 %275
  %v279 = vperm.slane %v22, 0
  %vm281 = vcmp.eq.f32.partialorder %v248, %v279
  %vm282 = vcmp.eq.f32.partialorder %v252, %v279
  %vm283 = vcmp.eq.f32.partialorder %v256, %v279
  %vm284 = vcmp.eq.f32.partialorder %v260, %v279
  %vm285 = vcmp.eq.f32.partialorder %v264, %v279
  %vm286 = vcmp.eq.f32.partialorder %v268, %v279
  %vm287 = vcmp.eq.f32.partialorder %v272, %v279
  %vm288 = vcmp.eq.f32.partialorder %v276, %v279
  %v289 = vlaneseq
  %v290 = vand.u32 %v289, 127
  %v291 = vcvt.s32.f32 %v290
  %v292 = vld [vmem:[%s2 + $0x16] sm:$0xff]
  %v293 = vld [vmem:[%s2 + $0x1e] sm:$0xff]
  %v294 = vld [vmem:[%s2 + $0x26] sm:$0xff]
  %v295 = vld [vmem:[%s2 + $0x2e] sm:$0xff]
  %v296 = vld [vmem:[%s2 + $0x36] sm:$0x1]
  %v297 = vperm.slane %v296, 0
  %v299 = vsel %vm140, %v238, 0
  %v302 = vsel %vm140, %v239, 0
  %v305 = vsel %vm140, %v240, 0
  %v308 = vsel %vm140, %v241, 0
  %v311 = vsel %vm140, %v242, 0
  %v314 = vsel %vm140, %v243, 0
  %v317 = vsel %vm140, %v244, 0
  %v320 = vsel %vm140, %v245, 0
  %322 = vmatpush.msra.mxu0 0.0
  %323 = vmatpush.msra.mxu0 0.0
  %324 = vmatpush.msra.mxu0 0.0
  %325 = vmatpush.msra.mxu0 0.0
  %326 = vmatpush.msra.mxu0 0.0
  %327 = vmatpush.msra.mxu0 0.0
  %328 = vmatpush.msra.mxu0 0.0
  %329 = vmatpush.msra.mxu0 0.0
  %330 = vmatpush.msra.mxu0 0.0
  %331 = vmatpush.msra.mxu0 0.0
  %332 = vmatpush.msra.mxu0 0.0
  %333 = vmatpush.msra.mxu0 0.0
  %334 = vmatpush.msra.mxu0 0.0
  %335 = vmatpush.msra.mxu0 0.0
  %336 = vmatpush.msra.mxu0 %v293
  %337 = vmatpush.msra.mxu0 %v292
  %338 = vmatmul.f32.gmra.mxu0 %v299
  %v339 = vpop.f32.mrf.mxu0
  %v340 = vadd.f32 %v297, %v339
  %341 = vmatmul.f32.gmra.mxu0 %v302
  %v342 = vpop.f32.mrf.mxu0
  %v343 = vadd.f32 %v297, %v342
  %344 = vmatmul.f32.gmra.mxu0 %v305
  %v345 = vpop.f32.mrf.mxu0
  %v346 = vadd.f32 %v297, %v345
  %347 = vmatmul.f32.gmra.mxu0 %v308
  %v348 = vpop.f32.mrf.mxu0
  %v349 = vadd.f32 %v297, %v348
  %350 = vmatmul.f32.gmra.mxu0 %v311
  %v351 = vpop.f32.mrf.mxu0
  %v352 = vadd.f32 %v297, %v351
  %353 = vmatmul.f32.gmra.mxu0 %v314
  %v354 = vpop.f32.mrf.mxu0
  %v355 = vadd.f32 %v297, %v354
  %356 = vmatmul.f32.gmra.mxu0 %v317
  %v357 = vpop.f32.mrf.mxu0
  %v358 = vadd.f32 %v297, %v357
  %359 = vmatmul.f32.gmra.mxu0 %v320
  %v360 = vpop.f32.mrf.mxu0
  %v361 = vadd.f32 %v297, %v360
  %362 = vdwg.mxu0
  %363 = vmatpush.msra.mxu0 0.0
  %364 = vmatpush.msra.mxu0 0.0
  %365 = vmatpush.msra.mxu0 0.0
  %366 = vmatpush.msra.mxu0 0.0
  %367 = vmatpush.msra.mxu0 0.0
  %368 = vmatpush.msra.mxu0 0.0
  %369 = vmatpush.msra.mxu0 0.0
  %370 = vmatpush.msra.mxu0 0.0
  %371 = vmatpush.msra.mxu0 0.0
  %372 = vmatpush.msra.mxu0 0.0
  %373 = vmatpush.msra.mxu0 0.0
  %374 = vmatpush.msra.mxu0 0.0
  %375 = vmatpush.msra.mxu0 0.0
  %376 = vmatpush.msra.mxu0 0.0
  %377 = vmatpush.msra.mxu0 %v295
  %378 = vmatpush.msra.mxu0 %v294
  %379 = vmatmul.f32.gmra.mxu0 %v299
  %v380 = vpop.f32.mrf.mxu0
  %v381 = vadd.f32 0.0, %v380
  %382 = vmatmul.f32.gmra.mxu0 %v302
  %v383 = vpop.f32.mrf.mxu0
  %v384 = vadd.f32 0.0, %v383
  %385 = vmatmul.f32.gmra.mxu0 %v305
  %v386 = vpop.f32.mrf.mxu0
  %v387 = vadd.f32 0.0, %v386
  %388 = vmatmul.f32.gmra.mxu0 %v308
  %v389 = vpop.f32.mrf.mxu0
  %v390 = vadd.f32 0.0, %v389
  %391 = vmatmul.f32.gmra.mxu0 %v311
  %v392 = vpop.f32.mrf.mxu0
  %v393 = vadd.f32 0.0, %v392
  %394 = vmatmul.f32.gmra.mxu0 %v314
  %v395 = vpop.f32.mrf.mxu0
  %v396 = vadd.f32 0.0, %v395
  %397 = vmatmul.f32.gmra.mxu0 %v317
  %v398 = vpop.f32.mrf.mxu0
  %v399 = vadd.f32 0.0, %v398
  %400 = vmatmul.f32.gmra.mxu0 %v320
  %v401 = vpop.f32.mrf.mxu0
  %v402 = vadd.f32 0.0, %v401
  %403 = vdwg.mxu0
  %404 = vmatpush.xpose.msra.mxu0 0.0
  %405 = vmatpush.xpose.msra.mxu0 0.0
  %406 = vmatpush.xpose.msra.mxu0 0.0
  %407 = vmatpush.xpose.msra.mxu0 0.0
  %408 = vmatpush.xpose.msra.mxu0 0.0
  %409 = vmatpush.xpose.msra.mxu0 0.0
  %410 = vmatpush.xpose.msra.mxu0 0.0
  %411 = vmatpush.xpose.msra.mxu0 0.0
  %412 = vmatpush.xpose.msra.mxu0 %v320
  %413 = vmatpush.xpose.msra.mxu0 %v317
  %414 = vmatpush.xpose.msra.mxu0 %v314
  %415 = vmatpush.xpose.msra.mxu0 %v311
  %416 = vmatpush.xpose.msra.mxu0 %v308
  %417 = vmatpush.xpose.msra.mxu0 %v305
  %418 = vmatpush.xpose.msra.mxu0 %v302
  %419 = vmatpush.xpose.msra.mxu0 %v299
  %420 = vmatmul.f32.gmra.mxu0 %v299
  %v421 = vpop.f32.mrf.mxu0
  %v422 = vadd.f32 0.0, %v421
  %423 = vmatmul.f32.gmra.mxu0 %v302
  %v424 = vpop.f32.mrf.mxu0
  %v425 = vadd.f32 0.0, %v424
  %426 = vmatmul.f32.gmra.mxu0 %v305
  %v427 = vpop.f32.mrf.mxu0
  %v428 = vadd.f32 0.0, %v427
  %429 = vmatmul.f32.gmra.mxu0 %v308
  %v430 = vpop.f32.mrf.mxu0
  %v431 = vadd.f32 0.0, %v430
  %432 = vmatmul.f32.gmra.mxu0 %v311
  %v433 = vpop.f32.mrf.mxu0
  %v434 = vadd.f32 0.0, %v433
  %435 = vmatmul.f32.gmra.mxu0 %v314
  %v436 = vpop.f32.mrf.mxu0
  %v437 = vadd.f32 0.0, %v436
  %438 = vmatmul.f32.gmra.mxu0 %v317
  %v439 = vpop.f32.mrf.mxu0
  %v440 = vadd.f32 0.0, %v439
  %441 = vmatmul.f32.gmra.mxu0 %v320
  %v442 = vpop.f32.mrf.mxu0
  %v443 = vadd.f32 0.0, %v442
  %444 = vdwg.mxu0
  %v445 = vmul.f32 %v238, %v238
  %v446 = vmul.f32 %v239, %v239
  %v447 = vmul.f32 %v240, %v240
  %v448 = vmul.f32 %v241, %v241
  %v449 = vmul.f32 %v242, %v242
  %v450 = vmul.f32 %v243, %v243
  %v451 = vmul.f32 %v244, %v244
  %v452 = vmul.f32 %v245, %v245
  %v454 = vsel %vm140, 1.0, 0
  %v457 = vsel %vm140, %v445, 0
  %v460 = vsel %vm140, %v446, 0
  %v463 = vsel %vm140, %v447, 0
  %v466 = vsel %vm140, %v448, 0
  %v469 = vsel %vm140, %v449, 0
  %v472 = vsel %vm140, %v450, 0
  %v475 = vsel %vm140, %v451, 0
  %v478 = vsel %vm140, %v452, 0
  %480 = vmatpush.xpose.msra.mxu0 0.0
  %481 = vmatpush.xpose.msra.mxu0 0.0
  %482 = vmatpush.xpose.msra.mxu0 0.0
  %483 = vmatpush.xpose.msra.mxu0 0.0
  %484 = vmatpush.xpose.msra.mxu0 0.0
  %485 = vmatpush.xpose.msra.mxu0 0.0
  %486 = vmatpush.xpose.msra.mxu0 0.0
  %487 = vmatpush.xpose.msra.mxu0 0.0
  %488 = vmatpush.xpose.msra.mxu0 %v478
  %489 = vmatpush.xpose.msra.mxu0 %v475
  %490 = vmatpush.xpose.msra.mxu0 %v472
  %491 = vmatpush.xpose.msra.mxu0 %v469
  %492 = vmatpush.xpose.msra.mxu0 %v466
  %493 = vmatpush.xpose.msra.mxu0 %v463
  %494 = vmatpush.xpose.msra.mxu0 %v460
  %495 = vmatpush.xpose.msra.mxu0 %v457
  %496 = vmatmul.f32.gmra.mxu0 %v454
  %v497 = vpop.f32.mrf.mxu0
  %v498 = vadd.f32 0.0, %v497
  %499 = vdwg.mxu0
  %v500 = vmul.f32 %v422, 2.0
  %v501 = vmul.f32 %v425, 2.0
  %v502 = vmul.f32 %v428, 2.0
  %v503 = vmul.f32 %v431, 2.0
  %v504 = vmul.f32 %v434, 2.0
  %v505 = vmul.f32 %v437, 2.0
  %v506 = vmul.f32 %v440, 2.0
  %v507 = vmul.f32 %v443, 2.0
  %v508 = vperm.slane %v498, 0
  %v509 = vsub.f32 %v508, %v500
  %v510 = vsub.f32 %v508, %v501
  %v511 = vsub.f32 %v508, %v502
  %v512 = vsub.f32 %v508, %v503
  %v513 = vsub.f32 %v508, %v504
  %v514 = vsub.f32 %v508, %v505
  %v515 = vsub.f32 %v508, %v506
  %v516 = vsub.f32 %v508, %v507
  %v517 = vsel %vm281, %v509, 1e+30
  %v518 = vsel %vm282, %v510, 1e+30
  %v519 = vsel %vm283, %v511, 1e+30
  %v520 = vsel %vm284, %v512, 1e+30
  %v521 = vsel %vm285, %v513, 1e+30
  %v522 = vsel %vm286, %v514, 1e+30
  %v523 = vsel %vm287, %v515, 1e+30
  %v524 = vsel %vm288, %v516, 1e+30
  %vm525 = vcmask 523264
  %v526 = vsel %vm525, %v517, inf
  %527 = vmin.xlane.f32.xlu0 %v526
  %v528 = vpop.xlane.xlu0 %527
  %v529 = vsel %vm525, %v518, inf
  %530 = vmin.xlane.f32.xlu0 %v529
  %v531 = vpop.xlane.xlu0 %530
  %v532 = vsel %vm525, %v519, inf
  %533 = vmin.xlane.f32.xlu0 %v532
  %v534 = vpop.xlane.xlu0 %533
  %v535 = vsel %vm525, %v520, inf
  %536 = vmin.xlane.f32.xlu0 %v535
  %v537 = vpop.xlane.xlu0 %536
  %v538 = vsel %vm525, %v521, inf
  %539 = vmin.xlane.f32.xlu0 %v538
  %v540 = vpop.xlane.xlu0 %539
  %v541 = vsel %vm525, %v522, inf
  %542 = vmin.xlane.f32.xlu0 %v541
  %v543 = vpop.xlane.xlu0 %542
  %v544 = vsel %vm525, %v523, inf
  %545 = vmin.xlane.f32.xlu0 %v544
  %v546 = vpop.xlane.xlu0 %545
  %v547 = vsel %vm525, %v524, inf
  %548 = vmin.xlane.f32.xlu0 %v547
  %v549 = vpop.xlane.xlu0 %548
  %vm550 = vcmp.eq.f32.partialorder %v517, %v528
  %vm551 = vcmp.eq.f32.partialorder %v518, %v531
  %vm552 = vcmp.eq.f32.partialorder %v519, %v534
  %vm553 = vcmp.eq.f32.partialorder %v520, %v537
  %vm554 = vcmp.eq.f32.partialorder %v521, %v540
  %vm555 = vcmp.eq.f32.partialorder %v522, %v543
  %vm556 = vcmp.eq.f32.partialorder %v523, %v546
  %vm557 = vcmp.eq.f32.partialorder %v524, %v549
  %v558 = vsel %vm550, %v291, 64.0
  %v559 = vsel %vm551, %v291, 64.0
  %v560 = vsel %vm552, %v291, 64.0
  %v561 = vsel %vm553, %v291, 64.0
  %v562 = vsel %vm554, %v291, 64.0
  %v563 = vsel %vm555, %v291, 64.0
  %v564 = vsel %vm556, %v291, 64.0
  %v565 = vsel %vm557, %v291, 64.0
  %v566 = vsel %vm525, %v558, inf
  %567 = vmin.xlane.f32.xlu0 %v566
  %v568 = vpop.xlane.xlu0 %567
  %v569 = vsel %vm525, %v559, inf
  %570 = vmin.xlane.f32.xlu0 %v569
  %v571 = vpop.xlane.xlu0 %570
  %v572 = vsel %vm525, %v560, inf
  %573 = vmin.xlane.f32.xlu0 %v572
  %v574 = vpop.xlane.xlu0 %573
  %v575 = vsel %vm525, %v561, inf
  %576 = vmin.xlane.f32.xlu0 %v575
  %v577 = vpop.xlane.xlu0 %576
  %v578 = vsel %vm525, %v562, inf
  %579 = vmin.xlane.f32.xlu0 %v578
  %v580 = vpop.xlane.xlu0 %579
  %v581 = vsel %vm525, %v563, inf
  %582 = vmin.xlane.f32.xlu0 %v581
  %v583 = vpop.xlane.xlu0 %582
  %v584 = vsel %vm525, %v564, inf
  %585 = vmin.xlane.f32.xlu0 %v584
  %v586 = vpop.xlane.xlu0 %585
  %v587 = vsel %vm525, %v565, inf
  %588 = vmin.xlane.f32.xlu0 %v587
  %v589 = vpop.xlane.xlu0 %588
  %vm590 = vcmp.eq.f32.partialorder %v291, %v568
  %vm591 = vcmp.eq.f32.partialorder %v291, %v571
  %vm592 = vcmp.eq.f32.partialorder %v291, %v574
  %vm593 = vcmp.eq.f32.partialorder %v291, %v577
  %vm594 = vcmp.eq.f32.partialorder %v291, %v580
  %vm595 = vcmp.eq.f32.partialorder %v291, %v583
  %vm596 = vcmp.eq.f32.partialorder %v291, %v586
  %vm597 = vcmp.eq.f32.partialorder %v291, %v589
  %vm598 = vcmp.lt.f32.partialorder %v528, 1e+29
  %vm599 = vcmp.lt.f32.partialorder %v531, 1e+29
  %vm600 = vcmp.lt.f32.partialorder %v534, 1e+29
  %vm601 = vcmp.lt.f32.partialorder %v537, 1e+29
  %vm602 = vcmp.lt.f32.partialorder %v540, 1e+29
  %vm603 = vcmp.lt.f32.partialorder %v543, 1e+29
  %vm604 = vcmp.lt.f32.partialorder %v546, 1e+29
  %vm605 = vcmp.lt.f32.partialorder %v549, 1e+29
  %v606 = vsel %vm590, 1e+30, %v517
  %v607 = vsel %vm591, 1e+30, %v518
  %v608 = vsel %vm592, 1e+30, %v519
  %v609 = vsel %vm593, 1e+30, %v520
  %v610 = vsel %vm594, 1e+30, %v521
  %v611 = vsel %vm595, 1e+30, %v522
  %v612 = vsel %vm596, 1e+30, %v523
  %v613 = vsel %vm597, 1e+30, %v524
  %v614 = vsel %vm525, %v606, inf
  %615 = vmin.xlane.f32.xlu0 %v614
  %v616 = vpop.xlane.xlu0 %615
  %v617 = vsel %vm525, %v607, inf
  %618 = vmin.xlane.f32.xlu0 %v617
  %v619 = vpop.xlane.xlu0 %618
  %v620 = vsel %vm525, %v608, inf
  %621 = vmin.xlane.f32.xlu0 %v620
  %v622 = vpop.xlane.xlu0 %621
  %v623 = vsel %vm525, %v609, inf
  %624 = vmin.xlane.f32.xlu0 %v623
  %v625 = vpop.xlane.xlu0 %624
  %v626 = vsel %vm525, %v610, inf
  %627 = vmin.xlane.f32.xlu0 %v626
  %v628 = vpop.xlane.xlu0 %627
  %v629 = vsel %vm525, %v611, inf
  %630 = vmin.xlane.f32.xlu0 %v629
  %v631 = vpop.xlane.xlu0 %630
  %v632 = vsel %vm525, %v612, inf
  %633 = vmin.xlane.f32.xlu0 %v632
  %v634 = vpop.xlane.xlu0 %633
  %v635 = vsel %vm525, %v613, inf
  %636 = vmin.xlane.f32.xlu0 %v635
  %v637 = vpop.xlane.xlu0 %636
  %vm638 = vcmp.eq.f32.partialorder %v606, %v616
  %vm639 = vcmp.eq.f32.partialorder %v607, %v619
  %vm640 = vcmp.eq.f32.partialorder %v608, %v622
  %vm641 = vcmp.eq.f32.partialorder %v609, %v625
  %vm642 = vcmp.eq.f32.partialorder %v610, %v628
  %vm643 = vcmp.eq.f32.partialorder %v611, %v631
  %vm644 = vcmp.eq.f32.partialorder %v612, %v634
  %vm645 = vcmp.eq.f32.partialorder %v613, %v637
  %v646 = vsel %vm638, %v291, 64.0
  %v647 = vsel %vm639, %v291, 64.0
  %v648 = vsel %vm640, %v291, 64.0
  %v649 = vsel %vm641, %v291, 64.0
  %v650 = vsel %vm642, %v291, 64.0
  %v651 = vsel %vm643, %v291, 64.0
  %v652 = vsel %vm644, %v291, 64.0
  %v653 = vsel %vm645, %v291, 64.0
  %v654 = vsel %vm525, %v646, inf
  %655 = vmin.xlane.f32.xlu0 %v654
  %v656 = vpop.xlane.xlu0 %655
  %v657 = vsel %vm525, %v647, inf
  %658 = vmin.xlane.f32.xlu0 %v657
  %v659 = vpop.xlane.xlu0 %658
  %v660 = vsel %vm525, %v648, inf
  %661 = vmin.xlane.f32.xlu0 %v660
  %v662 = vpop.xlane.xlu0 %661
  %v663 = vsel %vm525, %v649, inf
  %664 = vmin.xlane.f32.xlu0 %v663
  %v665 = vpop.xlane.xlu0 %664
  %v666 = vsel %vm525, %v650, inf
  %667 = vmin.xlane.f32.xlu0 %v666
  %v668 = vpop.xlane.xlu0 %667
  %v669 = vsel %vm525, %v651, inf
  %670 = vmin.xlane.f32.xlu0 %v669
  %v671 = vpop.xlane.xlu0 %670
  %v672 = vsel %vm525, %v652, inf
  %673 = vmin.xlane.f32.xlu0 %v672
  %v674 = vpop.xlane.xlu0 %673
  %v675 = vsel %vm525, %v653, inf
  %676 = vmin.xlane.f32.xlu0 %v675
  %v677 = vpop.xlane.xlu0 %676
  %vm678 = vcmp.eq.f32.partialorder %v291, %v656
  %vm679 = vcmp.eq.f32.partialorder %v291, %v659
  %vm680 = vcmp.eq.f32.partialorder %v291, %v662
  %vm681 = vcmp.eq.f32.partialorder %v291, %v665
  %vm682 = vcmp.eq.f32.partialorder %v291, %v668
  %vm683 = vcmp.eq.f32.partialorder %v291, %v671
  %vm684 = vcmp.eq.f32.partialorder %v291, %v674
  %vm685 = vcmp.eq.f32.partialorder %v291, %v677
  %vm686 = vcmp.lt.f32.partialorder %v616, 1e+29
  %vm687 = vcmp.lt.f32.partialorder %v619, 1e+29
  %vm688 = vcmp.lt.f32.partialorder %v622, 1e+29
  %vm689 = vcmp.lt.f32.partialorder %v625, 1e+29
  %vm690 = vcmp.lt.f32.partialorder %v628, 1e+29
  %vm691 = vcmp.lt.f32.partialorder %v631, 1e+29
  %vm692 = vcmp.lt.f32.partialorder %v634, 1e+29
  %vm693 = vcmp.lt.f32.partialorder %v637, 1e+29
  %v694 = vsel %vm678, 1e+30, %v606
  %v695 = vsel %vm679, 1e+30, %v607
  %v696 = vsel %vm680, 1e+30, %v608
  %v697 = vsel %vm681, 1e+30, %v609
  %v698 = vsel %vm682, 1e+30, %v610
  %v699 = vsel %vm683, 1e+30, %v611
  %v700 = vsel %vm684, 1e+30, %v612
  %v701 = vsel %vm685, 1e+30, %v613
  %v702 = vsel %vm525, %v694, inf
  %703 = vmin.xlane.f32.xlu0 %v702
  %v704 = vpop.xlane.xlu0 %703
  %v705 = vsel %vm525, %v695, inf
  %706 = vmin.xlane.f32.xlu0 %v705
  %v707 = vpop.xlane.xlu0 %706
  %v708 = vsel %vm525, %v696, inf
  %709 = vmin.xlane.f32.xlu0 %v708
  %v710 = vpop.xlane.xlu0 %709
  %v711 = vsel %vm525, %v697, inf
  %712 = vmin.xlane.f32.xlu0 %v711
  %v713 = vpop.xlane.xlu0 %712
  %v714 = vsel %vm525, %v698, inf
  %715 = vmin.xlane.f32.xlu0 %v714
  %v716 = vpop.xlane.xlu0 %715
  %v717 = vsel %vm525, %v699, inf
  %718 = vmin.xlane.f32.xlu0 %v717
  %v719 = vpop.xlane.xlu0 %718
  %v720 = vsel %vm525, %v700, inf
  %721 = vmin.xlane.f32.xlu0 %v720
  %v722 = vpop.xlane.xlu0 %721
  %v723 = vsel %vm525, %v701, inf
  %724 = vmin.xlane.f32.xlu0 %v723
  %v725 = vpop.xlane.xlu0 %724
  %vm726 = vcmp.eq.f32.partialorder %v694, %v704
  %vm727 = vcmp.eq.f32.partialorder %v695, %v707
  %vm728 = vcmp.eq.f32.partialorder %v696, %v710
  %vm729 = vcmp.eq.f32.partialorder %v697, %v713
  %vm730 = vcmp.eq.f32.partialorder %v698, %v716
  %vm731 = vcmp.eq.f32.partialorder %v699, %v719
  %vm732 = vcmp.eq.f32.partialorder %v700, %v722
  %vm733 = vcmp.eq.f32.partialorder %v701, %v725
  %v734 = vsel %vm726, %v291, 64.0
  %v735 = vsel %vm727, %v291, 64.0
  %v736 = vsel %vm728, %v291, 64.0
  %v737 = vsel %vm729, %v291, 64.0
  %v738 = vsel %vm730, %v291, 64.0
  %v739 = vsel %vm731, %v291, 64.0
  %v740 = vsel %vm732, %v291, 64.0
  %v741 = vsel %vm733, %v291, 64.0
  %v742 = vsel %vm525, %v734, inf
  %743 = vmin.xlane.f32.xlu0 %v742
  %v744 = vpop.xlane.xlu0 %743
  %v745 = vsel %vm525, %v735, inf
  %746 = vmin.xlane.f32.xlu0 %v745
  %v747 = vpop.xlane.xlu0 %746
  %v748 = vsel %vm525, %v736, inf
  %749 = vmin.xlane.f32.xlu0 %v748
  %v750 = vpop.xlane.xlu0 %749
  %v751 = vsel %vm525, %v737, inf
  %752 = vmin.xlane.f32.xlu0 %v751
  %v753 = vpop.xlane.xlu0 %752
  %v754 = vsel %vm525, %v738, inf
  %755 = vmin.xlane.f32.xlu0 %v754
  %v756 = vpop.xlane.xlu0 %755
  %v757 = vsel %vm525, %v739, inf
  %758 = vmin.xlane.f32.xlu0 %v757
  %v759 = vpop.xlane.xlu0 %758
  %v760 = vsel %vm525, %v740, inf
  %761 = vmin.xlane.f32.xlu0 %v760
  %v762 = vpop.xlane.xlu0 %761
  %v763 = vsel %vm525, %v741, inf
  %764 = vmin.xlane.f32.xlu0 %v763
  %v765 = vpop.xlane.xlu0 %764
  %vm766 = vcmp.eq.f32.partialorder %v291, %v744
  %vm767 = vcmp.eq.f32.partialorder %v291, %v747
  %vm768 = vcmp.eq.f32.partialorder %v291, %v750
  %vm769 = vcmp.eq.f32.partialorder %v291, %v753
  %vm770 = vcmp.eq.f32.partialorder %v291, %v756
  %vm771 = vcmp.eq.f32.partialorder %v291, %v759
  %vm772 = vcmp.eq.f32.partialorder %v291, %v762
  %vm773 = vcmp.eq.f32.partialorder %v291, %v765
  %vm774 = vcmp.lt.f32.partialorder %v704, 1e+29
  %vm775 = vcmp.lt.f32.partialorder %v707, 1e+29
  %vm776 = vcmp.lt.f32.partialorder %v710, 1e+29
  %vm777 = vcmp.lt.f32.partialorder %v713, 1e+29
  %vm778 = vcmp.lt.f32.partialorder %v716, 1e+29
  %vm779 = vcmp.lt.f32.partialorder %v719, 1e+29
  %vm780 = vcmp.lt.f32.partialorder %v722, 1e+29
  %vm781 = vcmp.lt.f32.partialorder %v725, 1e+29
  %v782 = vsel %vm766, 1e+30, %v694
  %v783 = vsel %vm767, 1e+30, %v695
  %v784 = vsel %vm768, 1e+30, %v696
  %v785 = vsel %vm769, 1e+30, %v697
  %v786 = vsel %vm770, 1e+30, %v698
  %v787 = vsel %vm771, 1e+30, %v699
  %v788 = vsel %vm772, 1e+30, %v700
  %v789 = vsel %vm773, 1e+30, %v701
  %v790 = vsel %vm525, %v782, inf
  %791 = vmin.xlane.f32.xlu0 %v790
  %v792 = vpop.xlane.xlu0 %791
  %v793 = vsel %vm525, %v783, inf
  %794 = vmin.xlane.f32.xlu0 %v793
  %v795 = vpop.xlane.xlu0 %794
  %v796 = vsel %vm525, %v784, inf
  %797 = vmin.xlane.f32.xlu0 %v796
  %v798 = vpop.xlane.xlu0 %797
  %v799 = vsel %vm525, %v785, inf
  %800 = vmin.xlane.f32.xlu0 %v799
  %v801 = vpop.xlane.xlu0 %800
  %v802 = vsel %vm525, %v786, inf
  %803 = vmin.xlane.f32.xlu0 %v802
  %v804 = vpop.xlane.xlu0 %803
  %v805 = vsel %vm525, %v787, inf
  %806 = vmin.xlane.f32.xlu0 %v805
  %v807 = vpop.xlane.xlu0 %806
  %v808 = vsel %vm525, %v788, inf
  %809 = vmin.xlane.f32.xlu0 %v808
  %v810 = vpop.xlane.xlu0 %809
  %v811 = vsel %vm525, %v789, inf
  %812 = vmin.xlane.f32.xlu0 %v811
  %v813 = vpop.xlane.xlu0 %812
  %vm814 = vcmp.eq.f32.partialorder %v782, %v792
  %vm815 = vcmp.eq.f32.partialorder %v783, %v795
  %vm816 = vcmp.eq.f32.partialorder %v784, %v798
  %vm817 = vcmp.eq.f32.partialorder %v785, %v801
  %vm818 = vcmp.eq.f32.partialorder %v786, %v804
  %vm819 = vcmp.eq.f32.partialorder %v787, %v807
  %vm820 = vcmp.eq.f32.partialorder %v788, %v810
  %vm821 = vcmp.eq.f32.partialorder %v789, %v813
  %v822 = vsel %vm814, %v291, 64.0
  %v823 = vsel %vm815, %v291, 64.0
  %v824 = vsel %vm816, %v291, 64.0
  %v825 = vsel %vm817, %v291, 64.0
  %v826 = vsel %vm818, %v291, 64.0
  %v827 = vsel %vm819, %v291, 64.0
  %v828 = vsel %vm820, %v291, 64.0
  %v829 = vsel %vm821, %v291, 64.0
  %v830 = vsel %vm525, %v822, inf
  %831 = vmin.xlane.f32.xlu0 %v830
  %v832 = vpop.xlane.xlu0 %831
  %v833 = vsel %vm525, %v823, inf
  %834 = vmin.xlane.f32.xlu0 %v833
  %v835 = vpop.xlane.xlu0 %834
  %v836 = vsel %vm525, %v824, inf
  %837 = vmin.xlane.f32.xlu0 %v836
  %v838 = vpop.xlane.xlu0 %837
  %v839 = vsel %vm525, %v825, inf
  %840 = vmin.xlane.f32.xlu0 %v839
  %v841 = vpop.xlane.xlu0 %840
  %v842 = vsel %vm525, %v826, inf
  %843 = vmin.xlane.f32.xlu0 %v842
  %v844 = vpop.xlane.xlu0 %843
  %v845 = vsel %vm525, %v827, inf
  %846 = vmin.xlane.f32.xlu0 %v845
  %v847 = vpop.xlane.xlu0 %846
  %v848 = vsel %vm525, %v828, inf
  %849 = vmin.xlane.f32.xlu0 %v848
  %v850 = vpop.xlane.xlu0 %849
  %v851 = vsel %vm525, %v829, inf
  %852 = vmin.xlane.f32.xlu0 %v851
  %v853 = vpop.xlane.xlu0 %852
  %vm854 = vcmp.eq.f32.partialorder %v291, %v832
  %vm855 = vcmp.eq.f32.partialorder %v291, %v835
  %vm856 = vcmp.eq.f32.partialorder %v291, %v838
  %vm857 = vcmp.eq.f32.partialorder %v291, %v841
  %vm858 = vcmp.eq.f32.partialorder %v291, %v844
  %vm859 = vcmp.eq.f32.partialorder %v291, %v847
  %vm860 = vcmp.eq.f32.partialorder %v291, %v850
  %vm861 = vcmp.eq.f32.partialorder %v291, %v853
  %vm862 = vcmp.lt.f32.partialorder %v792, 1e+29
  %vm863 = vcmp.lt.f32.partialorder %v795, 1e+29
  %vm864 = vcmp.lt.f32.partialorder %v798, 1e+29
  %vm865 = vcmp.lt.f32.partialorder %v801, 1e+29
  %vm866 = vcmp.lt.f32.partialorder %v804, 1e+29
  %vm867 = vcmp.lt.f32.partialorder %v807, 1e+29
  %vm868 = vcmp.lt.f32.partialorder %v810, 1e+29
  %vm869 = vcmp.lt.f32.partialorder %v813, 1e+29
  %v870 = vsel %vm854, 1e+30, %v782
  %v871 = vsel %vm855, 1e+30, %v783
  %v872 = vsel %vm856, 1e+30, %v784
  %v873 = vsel %vm857, 1e+30, %v785
  %v874 = vsel %vm858, 1e+30, %v786
  %v875 = vsel %vm859, 1e+30, %v787
  %v876 = vsel %vm860, 1e+30, %v788
  %v877 = vsel %vm861, 1e+30, %v789
  %v878 = vsel %vm525, %v870, inf
  %879 = vmin.xlane.f32.xlu0 %v878
  %v880 = vpop.xlane.xlu0 %879
  %v881 = vsel %vm525, %v871, inf
  %882 = vmin.xlane.f32.xlu0 %v881
  %v883 = vpop.xlane.xlu0 %882
  %v884 = vsel %vm525, %v872, inf
  %885 = vmin.xlane.f32.xlu0 %v884
  %v886 = vpop.xlane.xlu0 %885
  %v887 = vsel %vm525, %v873, inf
  %888 = vmin.xlane.f32.xlu0 %v887
  %v889 = vpop.xlane.xlu0 %888
  %v890 = vsel %vm525, %v874, inf
  %891 = vmin.xlane.f32.xlu0 %v890
  %v892 = vpop.xlane.xlu0 %891
  %v893 = vsel %vm525, %v875, inf
  %894 = vmin.xlane.f32.xlu0 %v893
  %v895 = vpop.xlane.xlu0 %894
  %v896 = vsel %vm525, %v876, inf
  %897 = vmin.xlane.f32.xlu0 %v896
  %v898 = vpop.xlane.xlu0 %897
  %v899 = vsel %vm525, %v877, inf
  %900 = vmin.xlane.f32.xlu0 %v899
  %v901 = vpop.xlane.xlu0 %900
  %vm902 = vcmp.eq.f32.partialorder %v870, %v880
  %vm903 = vcmp.eq.f32.partialorder %v871, %v883
  %vm904 = vcmp.eq.f32.partialorder %v872, %v886
  %vm905 = vcmp.eq.f32.partialorder %v873, %v889
  %vm906 = vcmp.eq.f32.partialorder %v874, %v892
  %vm907 = vcmp.eq.f32.partialorder %v875, %v895
  %vm908 = vcmp.eq.f32.partialorder %v876, %v898
  %vm909 = vcmp.eq.f32.partialorder %v877, %v901
  %v910 = vsel %vm902, %v291, 64.0
  %v911 = vsel %vm903, %v291, 64.0
  %v912 = vsel %vm904, %v291, 64.0
  %v913 = vsel %vm905, %v291, 64.0
  %v914 = vsel %vm906, %v291, 64.0
  %v915 = vsel %vm907, %v291, 64.0
  %v916 = vsel %vm908, %v291, 64.0
  %v917 = vsel %vm909, %v291, 64.0
  %v918 = vsel %vm525, %v910, inf
  %919 = vmin.xlane.f32.xlu0 %v918
  %v920 = vpop.xlane.xlu0 %919
  %v921 = vsel %vm525, %v911, inf
  %922 = vmin.xlane.f32.xlu0 %v921
  %v923 = vpop.xlane.xlu0 %922
  %v924 = vsel %vm525, %v912, inf
  %925 = vmin.xlane.f32.xlu0 %v924
  %v926 = vpop.xlane.xlu0 %925
  %v927 = vsel %vm525, %v913, inf
  %928 = vmin.xlane.f32.xlu0 %v927
  %v929 = vpop.xlane.xlu0 %928
  %v930 = vsel %vm525, %v914, inf
  %931 = vmin.xlane.f32.xlu0 %v930
  %v932 = vpop.xlane.xlu0 %931
  %v933 = vsel %vm525, %v915, inf
  %934 = vmin.xlane.f32.xlu0 %v933
  %v935 = vpop.xlane.xlu0 %934
  %v936 = vsel %vm525, %v916, inf
  %937 = vmin.xlane.f32.xlu0 %v936
  %v938 = vpop.xlane.xlu0 %937
  %v939 = vsel %vm525, %v917, inf
  %940 = vmin.xlane.f32.xlu0 %v939
  %v941 = vpop.xlane.xlu0 %940
  %vm942 = vcmp.eq.f32.partialorder %v291, %v920
  %vm943 = vcmp.eq.f32.partialorder %v291, %v923
  %vm944 = vcmp.eq.f32.partialorder %v291, %v926
  %vm945 = vcmp.eq.f32.partialorder %v291, %v929
  %vm946 = vcmp.eq.f32.partialorder %v291, %v932
  %vm947 = vcmp.eq.f32.partialorder %v291, %v935
  %vm948 = vcmp.eq.f32.partialorder %v291, %v938
  %vm949 = vcmp.eq.f32.partialorder %v291, %v941
  %vm950 = vcmp.lt.f32.partialorder %v880, 1e+29
  %vm951 = vcmp.lt.f32.partialorder %v883, 1e+29
  %vm952 = vcmp.lt.f32.partialorder %v886, 1e+29
  %vm953 = vcmp.lt.f32.partialorder %v889, 1e+29
  %vm954 = vcmp.lt.f32.partialorder %v892, 1e+29
  %vm955 = vcmp.lt.f32.partialorder %v895, 1e+29
  %vm956 = vcmp.lt.f32.partialorder %v898, 1e+29
  %vm957 = vcmp.lt.f32.partialorder %v901, 1e+29
  %v958 = vsel %vm942, 1e+30, %v870
  %v959 = vsel %vm943, 1e+30, %v871
  %v960 = vsel %vm944, 1e+30, %v872
  %v961 = vsel %vm945, 1e+30, %v873
  %v962 = vsel %vm946, 1e+30, %v874
  %v963 = vsel %vm947, 1e+30, %v875
  %v964 = vsel %vm948, 1e+30, %v876
  %v965 = vsel %vm949, 1e+30, %v877
  %v966 = vsel %vm525, %v958, inf
  %967 = vmin.xlane.f32.xlu0 %v966
  %v968 = vpop.xlane.xlu0 %967
  %v969 = vsel %vm525, %v959, inf
  %970 = vmin.xlane.f32.xlu0 %v969
  %v971 = vpop.xlane.xlu0 %970
  %v972 = vsel %vm525, %v960, inf
  %973 = vmin.xlane.f32.xlu0 %v972
  %v974 = vpop.xlane.xlu0 %973
  %v975 = vsel %vm525, %v961, inf
  %976 = vmin.xlane.f32.xlu0 %v975
  %v977 = vpop.xlane.xlu0 %976
  %v978 = vsel %vm525, %v962, inf
  %979 = vmin.xlane.f32.xlu0 %v978
  %v980 = vpop.xlane.xlu0 %979
  %v981 = vsel %vm525, %v963, inf
  %982 = vmin.xlane.f32.xlu0 %v981
  %v983 = vpop.xlane.xlu0 %982
  %v984 = vsel %vm525, %v964, inf
  %985 = vmin.xlane.f32.xlu0 %v984
  %v986 = vpop.xlane.xlu0 %985
  %v987 = vsel %vm525, %v965, inf
  %988 = vmin.xlane.f32.xlu0 %v987
  %v989 = vpop.xlane.xlu0 %988
  %vm990 = vcmp.eq.f32.partialorder %v958, %v968
  %vm991 = vcmp.eq.f32.partialorder %v959, %v971
  %vm992 = vcmp.eq.f32.partialorder %v960, %v974
  %vm993 = vcmp.eq.f32.partialorder %v961, %v977
  %vm994 = vcmp.eq.f32.partialorder %v962, %v980
  %vm995 = vcmp.eq.f32.partialorder %v963, %v983
  %vm996 = vcmp.eq.f32.partialorder %v964, %v986
  %vm997 = vcmp.eq.f32.partialorder %v965, %v989
  %v998 = vsel %vm990, %v291, 64.0
  %v999 = vsel %vm991, %v291, 64.0
  %v1000 = vsel %vm992, %v291, 64.0
  %v1001 = vsel %vm993, %v291, 64.0
  %v1002 = vsel %vm994, %v291, 64.0
  %v1003 = vsel %vm995, %v291, 64.0
  %v1004 = vsel %vm996, %v291, 64.0
  %v1005 = vsel %vm997, %v291, 64.0
  %v1006 = vsel %vm525, %v998, inf
  %1007 = vmin.xlane.f32.xlu0 %v1006
  %v1008 = vpop.xlane.xlu0 %1007
  %v1009 = vsel %vm525, %v999, inf
  %1010 = vmin.xlane.f32.xlu0 %v1009
  %v1011 = vpop.xlane.xlu0 %1010
  %v1012 = vsel %vm525, %v1000, inf
  %1013 = vmin.xlane.f32.xlu0 %v1012
  %v1014 = vpop.xlane.xlu0 %1013
  %v1015 = vsel %vm525, %v1001, inf
  %1016 = vmin.xlane.f32.xlu0 %v1015
  %v1017 = vpop.xlane.xlu0 %1016
  %v1018 = vsel %vm525, %v1002, inf
  %1019 = vmin.xlane.f32.xlu0 %v1018
  %v1020 = vpop.xlane.xlu0 %1019
  %v1021 = vsel %vm525, %v1003, inf
  %1022 = vmin.xlane.f32.xlu0 %v1021
  %v1023 = vpop.xlane.xlu0 %1022
  %v1024 = vsel %vm525, %v1004, inf
  %1025 = vmin.xlane.f32.xlu0 %v1024
  %v1026 = vpop.xlane.xlu0 %1025
  %v1027 = vsel %vm525, %v1005, inf
  %1028 = vmin.xlane.f32.xlu0 %v1027
  %v1029 = vpop.xlane.xlu0 %1028
  %vm1030 = vcmp.eq.f32.partialorder %v291, %v1008
  %vm1031 = vcmp.eq.f32.partialorder %v291, %v1011
  %vm1032 = vcmp.eq.f32.partialorder %v291, %v1014
  %vm1033 = vcmp.eq.f32.partialorder %v291, %v1017
  %vm1034 = vcmp.eq.f32.partialorder %v291, %v1020
  %vm1035 = vcmp.eq.f32.partialorder %v291, %v1023
  %vm1036 = vcmp.eq.f32.partialorder %v291, %v1026
  %vm1037 = vcmp.eq.f32.partialorder %v291, %v1029
  %vm1038 = vcmp.lt.f32.partialorder %v968, 1e+29
  %vm1039 = vcmp.lt.f32.partialorder %v971, 1e+29
  %vm1040 = vcmp.lt.f32.partialorder %v974, 1e+29
  %vm1041 = vcmp.lt.f32.partialorder %v977, 1e+29
  %vm1042 = vcmp.lt.f32.partialorder %v980, 1e+29
  %vm1043 = vcmp.lt.f32.partialorder %v983, 1e+29
  %vm1044 = vcmp.lt.f32.partialorder %v986, 1e+29
  %vm1045 = vcmp.lt.f32.partialorder %v989, 1e+29
  %v1046 = vsel %vm1030, 1e+30, %v958
  %v1047 = vsel %vm1031, 1e+30, %v959
  %v1048 = vsel %vm1032, 1e+30, %v960
  %v1049 = vsel %vm1033, 1e+30, %v961
  %v1050 = vsel %vm1034, 1e+30, %v962
  %v1051 = vsel %vm1035, 1e+30, %v963
  %v1052 = vsel %vm1036, 1e+30, %v964
  %v1053 = vsel %vm1037, 1e+30, %v965
  %v1054 = vsel %vm525, %v1046, inf
  %1055 = vmin.xlane.f32.xlu0 %v1054
  %v1056 = vpop.xlane.xlu0 %1055
  %v1057 = vsel %vm525, %v1047, inf
  %1058 = vmin.xlane.f32.xlu0 %v1057
  %v1059 = vpop.xlane.xlu0 %1058
  %v1060 = vsel %vm525, %v1048, inf
  %1061 = vmin.xlane.f32.xlu0 %v1060
  %v1062 = vpop.xlane.xlu0 %1061
  %v1063 = vsel %vm525, %v1049, inf
  %1064 = vmin.xlane.f32.xlu0 %v1063
  %v1065 = vpop.xlane.xlu0 %1064
  %v1066 = vsel %vm525, %v1050, inf
  %1067 = vmin.xlane.f32.xlu0 %v1066
  %v1068 = vpop.xlane.xlu0 %1067
  %v1069 = vsel %vm525, %v1051, inf
  %1070 = vmin.xlane.f32.xlu0 %v1069
  %v1071 = vpop.xlane.xlu0 %1070
  %v1072 = vsel %vm525, %v1052, inf
  %1073 = vmin.xlane.f32.xlu0 %v1072
  %v1074 = vpop.xlane.xlu0 %1073
  %v1075 = vsel %vm525, %v1053, inf
  %1076 = vmin.xlane.f32.xlu0 %v1075
  %v1077 = vpop.xlane.xlu0 %1076
  %vm1078 = vcmp.eq.f32.partialorder %v1046, %v1056
  %vm1079 = vcmp.eq.f32.partialorder %v1047, %v1059
  %vm1080 = vcmp.eq.f32.partialorder %v1048, %v1062
  %vm1081 = vcmp.eq.f32.partialorder %v1049, %v1065
  %vm1082 = vcmp.eq.f32.partialorder %v1050, %v1068
  %vm1083 = vcmp.eq.f32.partialorder %v1051, %v1071
  %vm1084 = vcmp.eq.f32.partialorder %v1052, %v1074
  %vm1085 = vcmp.eq.f32.partialorder %v1053, %v1077
  %v1086 = vsel %vm1078, %v291, 64.0
  %v1087 = vsel %vm1079, %v291, 64.0
  %v1088 = vsel %vm1080, %v291, 64.0
  %v1089 = vsel %vm1081, %v291, 64.0
  %v1090 = vsel %vm1082, %v291, 64.0
  %v1091 = vsel %vm1083, %v291, 64.0
  %v1092 = vsel %vm1084, %v291, 64.0
  %v1093 = vsel %vm1085, %v291, 64.0
  %v1094 = vsel %vm525, %v1086, inf
  %1095 = vmin.xlane.f32.xlu0 %v1094
  %v1096 = vpop.xlane.xlu0 %1095
  %v1097 = vsel %vm525, %v1087, inf
  %1098 = vmin.xlane.f32.xlu0 %v1097
  %v1099 = vpop.xlane.xlu0 %1098
  %v1100 = vsel %vm525, %v1088, inf
  %1101 = vmin.xlane.f32.xlu0 %v1100
  %v1102 = vpop.xlane.xlu0 %1101
  %v1103 = vsel %vm525, %v1089, inf
  %1104 = vmin.xlane.f32.xlu0 %v1103
  %v1105 = vpop.xlane.xlu0 %1104
  %v1106 = vsel %vm525, %v1090, inf
  %1107 = vmin.xlane.f32.xlu0 %v1106
  %v1108 = vpop.xlane.xlu0 %1107
  %v1109 = vsel %vm525, %v1091, inf
  %1110 = vmin.xlane.f32.xlu0 %v1109
  %v1111 = vpop.xlane.xlu0 %1110
  %v1112 = vsel %vm525, %v1092, inf
  %1113 = vmin.xlane.f32.xlu0 %v1112
  %v1114 = vpop.xlane.xlu0 %1113
  %v1115 = vsel %vm525, %v1093, inf
  %1116 = vmin.xlane.f32.xlu0 %v1115
  %v1117 = vpop.xlane.xlu0 %1116
  %vm1118 = vcmp.eq.f32.partialorder %v291, %v1096
  %vm1119 = vcmp.eq.f32.partialorder %v291, %v1099
  %vm1120 = vcmp.eq.f32.partialorder %v291, %v1102
  %vm1121 = vcmp.eq.f32.partialorder %v291, %v1105
  %vm1122 = vcmp.eq.f32.partialorder %v291, %v1108
  %vm1123 = vcmp.eq.f32.partialorder %v291, %v1111
  %vm1124 = vcmp.eq.f32.partialorder %v291, %v1114
  %vm1125 = vcmp.eq.f32.partialorder %v291, %v1117
  %vm1126 = vcmp.lt.f32.partialorder %v1056, 1e+29
  %vm1127 = vcmp.lt.f32.partialorder %v1059, 1e+29
  %vm1128 = vcmp.lt.f32.partialorder %v1062, 1e+29
  %vm1129 = vcmp.lt.f32.partialorder %v1065, 1e+29
  %vm1130 = vcmp.lt.f32.partialorder %v1068, 1e+29
  %vm1131 = vcmp.lt.f32.partialorder %v1071, 1e+29
  %vm1132 = vcmp.lt.f32.partialorder %v1074, 1e+29
  %vm1133 = vcmp.lt.f32.partialorder %v1077, 1e+29
  %v1134 = vsel %vm1118, 1e+30, %v1046
  %v1135 = vsel %vm1119, 1e+30, %v1047
  %v1136 = vsel %vm1120, 1e+30, %v1048
  %v1137 = vsel %vm1121, 1e+30, %v1049
  %v1138 = vsel %vm1122, 1e+30, %v1050
  %v1139 = vsel %vm1123, 1e+30, %v1051
  %v1140 = vsel %vm1124, 1e+30, %v1052
  %v1141 = vsel %vm1125, 1e+30, %v1053
  %v1142 = vsel %vm525, %v1134, inf
  %1143 = vmin.xlane.f32.xlu0 %v1142
  %v1144 = vpop.xlane.xlu0 %1143
  %v1145 = vsel %vm525, %v1135, inf
  %1146 = vmin.xlane.f32.xlu0 %v1145
  %v1147 = vpop.xlane.xlu0 %1146
  %v1148 = vsel %vm525, %v1136, inf
  %1149 = vmin.xlane.f32.xlu0 %v1148
  %v1150 = vpop.xlane.xlu0 %1149
  %v1151 = vsel %vm525, %v1137, inf
  %1152 = vmin.xlane.f32.xlu0 %v1151
  %v1153 = vpop.xlane.xlu0 %1152
  %v1154 = vsel %vm525, %v1138, inf
  %1155 = vmin.xlane.f32.xlu0 %v1154
  %v1156 = vpop.xlane.xlu0 %1155
  %v1157 = vsel %vm525, %v1139, inf
  %1158 = vmin.xlane.f32.xlu0 %v1157
  %v1159 = vpop.xlane.xlu0 %1158
  %v1160 = vsel %vm525, %v1140, inf
  %1161 = vmin.xlane.f32.xlu0 %v1160
  %v1162 = vpop.xlane.xlu0 %1161
  %v1163 = vsel %vm525, %v1141, inf
  %1164 = vmin.xlane.f32.xlu0 %v1163
  %v1165 = vpop.xlane.xlu0 %1164
  %vm1166 = vcmp.eq.f32.partialorder %v1134, %v1144
  %vm1167 = vcmp.eq.f32.partialorder %v1135, %v1147
  %vm1168 = vcmp.eq.f32.partialorder %v1136, %v1150
  %vm1169 = vcmp.eq.f32.partialorder %v1137, %v1153
  %vm1170 = vcmp.eq.f32.partialorder %v1138, %v1156
  %vm1171 = vcmp.eq.f32.partialorder %v1139, %v1159
  %vm1172 = vcmp.eq.f32.partialorder %v1140, %v1162
  %vm1173 = vcmp.eq.f32.partialorder %v1141, %v1165
  %v1174 = vsel %vm1166, %v291, 64.0
  %v1175 = vsel %vm1167, %v291, 64.0
  %v1176 = vsel %vm1168, %v291, 64.0
  %v1177 = vsel %vm1169, %v291, 64.0
  %v1178 = vsel %vm1170, %v291, 64.0
  %v1179 = vsel %vm1171, %v291, 64.0
  %v1180 = vsel %vm1172, %v291, 64.0
  %v1181 = vsel %vm1173, %v291, 64.0
  %v1182 = vsel %vm525, %v1174, inf
  %1183 = vmin.xlane.f32.xlu0 %v1182
  %v1184 = vpop.xlane.xlu0 %1183
  %v1185 = vsel %vm525, %v1175, inf
  %1186 = vmin.xlane.f32.xlu0 %v1185
  %v1187 = vpop.xlane.xlu0 %1186
  %v1188 = vsel %vm525, %v1176, inf
  %1189 = vmin.xlane.f32.xlu0 %v1188
  %v1190 = vpop.xlane.xlu0 %1189
  %v1191 = vsel %vm525, %v1177, inf
  %1192 = vmin.xlane.f32.xlu0 %v1191
  %v1193 = vpop.xlane.xlu0 %1192
  %v1194 = vsel %vm525, %v1178, inf
  %1195 = vmin.xlane.f32.xlu0 %v1194
  %v1196 = vpop.xlane.xlu0 %1195
  %v1197 = vsel %vm525, %v1179, inf
  %1198 = vmin.xlane.f32.xlu0 %v1197
  %v1199 = vpop.xlane.xlu0 %1198
  %v1200 = vsel %vm525, %v1180, inf
  %1201 = vmin.xlane.f32.xlu0 %v1200
  %v1202 = vpop.xlane.xlu0 %1201
  %v1203 = vsel %vm525, %v1181, inf
  %1204 = vmin.xlane.f32.xlu0 %v1203
  %v1205 = vpop.xlane.xlu0 %1204
  %vm1206 = vcmp.eq.f32.partialorder %v291, %v1184
  %vm1207 = vcmp.eq.f32.partialorder %v291, %v1187
  %vm1208 = vcmp.eq.f32.partialorder %v291, %v1190
  %vm1209 = vcmp.eq.f32.partialorder %v291, %v1193
  %vm1210 = vcmp.eq.f32.partialorder %v291, %v1196
  %vm1211 = vcmp.eq.f32.partialorder %v291, %v1199
  %vm1212 = vcmp.eq.f32.partialorder %v291, %v1202
  %vm1213 = vcmp.eq.f32.partialorder %v291, %v1205
  %vm1214 = vcmp.lt.f32.partialorder %v1144, 1e+29
  %vm1215 = vcmp.lt.f32.partialorder %v1147, 1e+29
  %vm1216 = vcmp.lt.f32.partialorder %v1150, 1e+29
  %vm1217 = vcmp.lt.f32.partialorder %v1153, 1e+29
  %vm1218 = vcmp.lt.f32.partialorder %v1156, 1e+29
  %vm1219 = vcmp.lt.f32.partialorder %v1159, 1e+29
  %vm1220 = vcmp.lt.f32.partialorder %v1162, 1e+29
  %vm1221 = vcmp.lt.f32.partialorder %v1165, 1e+29
  %v1222 = vsel %vm590, 1, 0
  %v1223 = vsel %vm591, 1, 0
  %v1224 = vsel %vm592, 1, 0
  %v1225 = vsel %vm593, 1, 0
  %v1226 = vsel %vm594, 1, 0
  %v1227 = vsel %vm595, 1, 0
  %v1228 = vsel %vm596, 1, 0
  %v1229 = vsel %vm597, 1, 0
  %v1230 = vcvt.s32.f32 %v1222
  %v1231 = vcvt.s32.f32 %v1223
  %v1232 = vcvt.s32.f32 %v1224
  %v1233 = vcvt.s32.f32 %v1225
  %v1234 = vcvt.s32.f32 %v1226
  %v1235 = vcvt.s32.f32 %v1227
  %v1236 = vcvt.s32.f32 %v1228
  %v1237 = vcvt.s32.f32 %v1229
  %v1239 = vsel %vm525, %v1230, 0
  %v1242 = vsel %vm525, %v1231, 0
  %v1245 = vsel %vm525, %v1232, 0
  %v1248 = vsel %vm525, %v1233, 0
  %v1251 = vsel %vm525, %v1234, 0
  %v1254 = vsel %vm525, %v1235, 0
  %v1257 = vsel %vm525, %v1236, 0
  %v1260 = vsel %vm525, %v1237, 0
  %1262 = vmatpush.msra.mxu0 0.0
  %1263 = vmatpush.msra.mxu0 0.0
  %1264 = vmatpush.msra.mxu0 0.0
  %1265 = vmatpush.msra.mxu0 0.0
  %1266 = vmatpush.msra.mxu0 0.0
  %1267 = vmatpush.msra.mxu0 0.0
  %1268 = vmatpush.msra.mxu0 0.0
  %1269 = vmatpush.msra.mxu0 0.0
  %1270 = vmatpush.msra.mxu0 %v402
  %1271 = vmatpush.msra.mxu0 %v399
  %1272 = vmatpush.msra.mxu0 %v396
  %1273 = vmatpush.msra.mxu0 %v393
  %1274 = vmatpush.msra.mxu0 %v390
  %1275 = vmatpush.msra.mxu0 %v387
  %1276 = vmatpush.msra.mxu0 %v384
  %1277 = vmatpush.msra.mxu0 %v381
  %1278 = vmatmul.f32.gmra.mxu0 %v1239
  %v1279 = vpop.f32.mrf.mxu0
  %v1280 = vadd.f32 0.0, %v1279
  %1281 = vmatmul.f32.gmra.mxu0 %v1242
  %v1282 = vpop.f32.mrf.mxu0
  %v1283 = vadd.f32 0.0, %v1282
  %1284 = vmatmul.f32.gmra.mxu0 %v1245
  %v1285 = vpop.f32.mrf.mxu0
  %v1286 = vadd.f32 0.0, %v1285
  %1287 = vmatmul.f32.gmra.mxu0 %v1248
  %v1288 = vpop.f32.mrf.mxu0
  %v1289 = vadd.f32 0.0, %v1288
  %1290 = vmatmul.f32.gmra.mxu0 %v1251
  %v1291 = vpop.f32.mrf.mxu0
  %v1292 = vadd.f32 0.0, %v1291
  %1293 = vmatmul.f32.gmra.mxu0 %v1254
  %v1294 = vpop.f32.mrf.mxu0
  %v1295 = vadd.f32 0.0, %v1294
  %1296 = vmatmul.f32.gmra.mxu0 %v1257
  %v1297 = vpop.f32.mrf.mxu0
  %v1298 = vadd.f32 0.0, %v1297
  %1299 = vmatmul.f32.gmra.mxu0 %v1260
  %v1300 = vpop.f32.mrf.mxu0
  %v1301 = vadd.f32 0.0, %v1300
  %1302 = vdwg.mxu0
  %v1303 = vsel %vm678, 1, 0
  %v1304 = vsel %vm679, 1, 0
  %v1305 = vsel %vm680, 1, 0
  %v1306 = vsel %vm681, 1, 0
  %v1307 = vsel %vm682, 1, 0
  %v1308 = vsel %vm683, 1, 0
  %v1309 = vsel %vm684, 1, 0
  %v1310 = vsel %vm685, 1, 0
  %v1311 = vcvt.s32.f32 %v1303
  %v1312 = vcvt.s32.f32 %v1304
  %v1313 = vcvt.s32.f32 %v1305
  %v1314 = vcvt.s32.f32 %v1306
  %v1315 = vcvt.s32.f32 %v1307
  %v1316 = vcvt.s32.f32 %v1308
  %v1317 = vcvt.s32.f32 %v1309
  %v1318 = vcvt.s32.f32 %v1310
  %v1320 = vsel %vm525, %v1311, 0
  %v1323 = vsel %vm525, %v1312, 0
  %v1326 = vsel %vm525, %v1313, 0
  %v1329 = vsel %vm525, %v1314, 0
  %v1332 = vsel %vm525, %v1315, 0
  %v1335 = vsel %vm525, %v1316, 0
  %v1338 = vsel %vm525, %v1317, 0
  %v1341 = vsel %vm525, %v1318, 0
  %1343 = vmatpush.msra.mxu0 0.0
  %1344 = vmatpush.msra.mxu0 0.0
  %1345 = vmatpush.msra.mxu0 0.0
  %1346 = vmatpush.msra.mxu0 0.0
  %1347 = vmatpush.msra.mxu0 0.0
  %1348 = vmatpush.msra.mxu0 0.0
  %1349 = vmatpush.msra.mxu0 0.0
  %1350 = vmatpush.msra.mxu0 0.0
  %1351 = vmatpush.msra.mxu0 %v402
  %1352 = vmatpush.msra.mxu0 %v399
  %1353 = vmatpush.msra.mxu0 %v396
  %1354 = vmatpush.msra.mxu0 %v393
  %1355 = vmatpush.msra.mxu0 %v390
  %1356 = vmatpush.msra.mxu0 %v387
  %1357 = vmatpush.msra.mxu0 %v384
  %1358 = vmatpush.msra.mxu0 %v381
  %1359 = vmatmul.f32.gmra.mxu0 %v1320
  %v1360 = vpop.f32.mrf.mxu0
  %v1361 = vadd.f32 0.0, %v1360
  %1362 = vmatmul.f32.gmra.mxu0 %v1323
  %v1363 = vpop.f32.mrf.mxu0
  %v1364 = vadd.f32 0.0, %v1363
  %1365 = vmatmul.f32.gmra.mxu0 %v1326
  %v1366 = vpop.f32.mrf.mxu0
  %v1367 = vadd.f32 0.0, %v1366
  %1368 = vmatmul.f32.gmra.mxu0 %v1329
  %v1369 = vpop.f32.mrf.mxu0
  %v1370 = vadd.f32 0.0, %v1369
  %1371 = vmatmul.f32.gmra.mxu0 %v1332
  %v1372 = vpop.f32.mrf.mxu0
  %v1373 = vadd.f32 0.0, %v1372
  %1374 = vmatmul.f32.gmra.mxu0 %v1335
  %v1375 = vpop.f32.mrf.mxu0
  %v1376 = vadd.f32 0.0, %v1375
  %1377 = vmatmul.f32.gmra.mxu0 %v1338
  %v1378 = vpop.f32.mrf.mxu0
  %v1379 = vadd.f32 0.0, %v1378
  %1380 = vmatmul.f32.gmra.mxu0 %v1341
  %v1381 = vpop.f32.mrf.mxu0
  %v1382 = vadd.f32 0.0, %v1381
  %1383 = vdwg.mxu0
  %v1384 = vsel %vm766, 1, 0
  %v1385 = vsel %vm767, 1, 0
  %v1386 = vsel %vm768, 1, 0
  %v1387 = vsel %vm769, 1, 0
  %v1388 = vsel %vm770, 1, 0
  %v1389 = vsel %vm771, 1, 0
  %v1390 = vsel %vm772, 1, 0
  %v1391 = vsel %vm773, 1, 0
  %v1392 = vcvt.s32.f32 %v1384
  %v1393 = vcvt.s32.f32 %v1385
  %v1394 = vcvt.s32.f32 %v1386
  %v1395 = vcvt.s32.f32 %v1387
  %v1396 = vcvt.s32.f32 %v1388
  %v1397 = vcvt.s32.f32 %v1389
  %v1398 = vcvt.s32.f32 %v1390
  %v1399 = vcvt.s32.f32 %v1391
  %v1401 = vsel %vm525, %v1392, 0
  %v1404 = vsel %vm525, %v1393, 0
  %v1407 = vsel %vm525, %v1394, 0
  %v1410 = vsel %vm525, %v1395, 0
  %v1413 = vsel %vm525, %v1396, 0
  %v1416 = vsel %vm525, %v1397, 0
  %v1419 = vsel %vm525, %v1398, 0
  %v1422 = vsel %vm525, %v1399, 0
  %1424 = vmatpush.msra.mxu0 0.0
  %1425 = vmatpush.msra.mxu0 0.0
  %1426 = vmatpush.msra.mxu0 0.0
  %1427 = vmatpush.msra.mxu0 0.0
  %1428 = vmatpush.msra.mxu0 0.0
  %1429 = vmatpush.msra.mxu0 0.0
  %1430 = vmatpush.msra.mxu0 0.0
  %1431 = vmatpush.msra.mxu0 0.0
  %1432 = vmatpush.msra.mxu0 %v402
  %1433 = vmatpush.msra.mxu0 %v399
  %1434 = vmatpush.msra.mxu0 %v396
  %1435 = vmatpush.msra.mxu0 %v393
  %1436 = vmatpush.msra.mxu0 %v390
  %1437 = vmatpush.msra.mxu0 %v387
  %1438 = vmatpush.msra.mxu0 %v384
  %1439 = vmatpush.msra.mxu0 %v381
  %1440 = vmatmul.f32.gmra.mxu0 %v1401
  %v1441 = vpop.f32.mrf.mxu0
  %v1442 = vadd.f32 0.0, %v1441
  %1443 = vmatmul.f32.gmra.mxu0 %v1404
  %v1444 = vpop.f32.mrf.mxu0
  %v1445 = vadd.f32 0.0, %v1444
  %1446 = vmatmul.f32.gmra.mxu0 %v1407
  %v1447 = vpop.f32.mrf.mxu0
  %v1448 = vadd.f32 0.0, %v1447
  %1449 = vmatmul.f32.gmra.mxu0 %v1410
  %v1450 = vpop.f32.mrf.mxu0
  %v1451 = vadd.f32 0.0, %v1450
  %1452 = vmatmul.f32.gmra.mxu0 %v1413
  %v1453 = vpop.f32.mrf.mxu0
  %v1454 = vadd.f32 0.0, %v1453
  %1455 = vmatmul.f32.gmra.mxu0 %v1416
  %v1456 = vpop.f32.mrf.mxu0
  %v1457 = vadd.f32 0.0, %v1456
  %1458 = vmatmul.f32.gmra.mxu0 %v1419
  %v1459 = vpop.f32.mrf.mxu0
  %v1460 = vadd.f32 0.0, %v1459
  %1461 = vmatmul.f32.gmra.mxu0 %v1422
  %v1462 = vpop.f32.mrf.mxu0
  %v1463 = vadd.f32 0.0, %v1462
  %1464 = vdwg.mxu0
  %v1465 = vsel %vm854, 1, 0
  %v1466 = vsel %vm855, 1, 0
  %v1467 = vsel %vm856, 1, 0
  %v1468 = vsel %vm857, 1, 0
  %v1469 = vsel %vm858, 1, 0
  %v1470 = vsel %vm859, 1, 0
  %v1471 = vsel %vm860, 1, 0
  %v1472 = vsel %vm861, 1, 0
  %v1473 = vcvt.s32.f32 %v1465
  %v1474 = vcvt.s32.f32 %v1466
  %v1475 = vcvt.s32.f32 %v1467
  %v1476 = vcvt.s32.f32 %v1468
  %v1477 = vcvt.s32.f32 %v1469
  %v1478 = vcvt.s32.f32 %v1470
  %v1479 = vcvt.s32.f32 %v1471
  %v1480 = vcvt.s32.f32 %v1472
  %v1482 = vsel %vm525, %v1473, 0
  %v1485 = vsel %vm525, %v1474, 0
  %v1488 = vsel %vm525, %v1475, 0
  %v1491 = vsel %vm525, %v1476, 0
  %v1494 = vsel %vm525, %v1477, 0
  %v1497 = vsel %vm525, %v1478, 0
  %v1500 = vsel %vm525, %v1479, 0
  %v1503 = vsel %vm525, %v1480, 0
  %1505 = vmatpush.msra.mxu0 0.0
  %1506 = vmatpush.msra.mxu0 0.0
  %1507 = vmatpush.msra.mxu0 0.0
  %1508 = vmatpush.msra.mxu0 0.0
  %1509 = vmatpush.msra.mxu0 0.0
  %1510 = vmatpush.msra.mxu0 0.0
  %1511 = vmatpush.msra.mxu0 0.0
  %1512 = vmatpush.msra.mxu0 0.0
  %1513 = vmatpush.msra.mxu0 %v402
  %1514 = vmatpush.msra.mxu0 %v399
  %1515 = vmatpush.msra.mxu0 %v396
  %1516 = vmatpush.msra.mxu0 %v393
  %1517 = vmatpush.msra.mxu0 %v390
  %1518 = vmatpush.msra.mxu0 %v387
  %1519 = vmatpush.msra.mxu0 %v384
  %1520 = vmatpush.msra.mxu0 %v381
  %1521 = vmatmul.f32.gmra.mxu0 %v1482
  %v1522 = vpop.f32.mrf.mxu0
  %v1523 = vadd.f32 0.0, %v1522
  %1524 = vmatmul.f32.gmra.mxu0 %v1485
  %v1525 = vpop.f32.mrf.mxu0
  %v1526 = vadd.f32 0.0, %v1525
  %1527 = vmatmul.f32.gmra.mxu0 %v1488
  %v1528 = vpop.f32.mrf.mxu0
  %v1529 = vadd.f32 0.0, %v1528
  %1530 = vmatmul.f32.gmra.mxu0 %v1491
  %v1531 = vpop.f32.mrf.mxu0
  %v1532 = vadd.f32 0.0, %v1531
  %1533 = vmatmul.f32.gmra.mxu0 %v1494
  %v1534 = vpop.f32.mrf.mxu0
  %v1535 = vadd.f32 0.0, %v1534
  %1536 = vmatmul.f32.gmra.mxu0 %v1497
  %v1537 = vpop.f32.mrf.mxu0
  %v1538 = vadd.f32 0.0, %v1537
  %1539 = vmatmul.f32.gmra.mxu0 %v1500
  %v1540 = vpop.f32.mrf.mxu0
  %v1541 = vadd.f32 0.0, %v1540
  %1542 = vmatmul.f32.gmra.mxu0 %v1503
  %v1543 = vpop.f32.mrf.mxu0
  %v1544 = vadd.f32 0.0, %v1543
  %1545 = vdwg.mxu0
  %v1546 = vsel %vm942, 1, 0
  %v1547 = vsel %vm943, 1, 0
  %v1548 = vsel %vm944, 1, 0
  %v1549 = vsel %vm945, 1, 0
  %v1550 = vsel %vm946, 1, 0
  %v1551 = vsel %vm947, 1, 0
  %v1552 = vsel %vm948, 1, 0
  %v1553 = vsel %vm949, 1, 0
  %v1554 = vcvt.s32.f32 %v1546
  %v1555 = vcvt.s32.f32 %v1547
  %v1556 = vcvt.s32.f32 %v1548
  %v1557 = vcvt.s32.f32 %v1549
  %v1558 = vcvt.s32.f32 %v1550
  %v1559 = vcvt.s32.f32 %v1551
  %v1560 = vcvt.s32.f32 %v1552
  %v1561 = vcvt.s32.f32 %v1553
  %v1563 = vsel %vm525, %v1554, 0
  %v1566 = vsel %vm525, %v1555, 0
  %v1569 = vsel %vm525, %v1556, 0
  %v1572 = vsel %vm525, %v1557, 0
  %v1575 = vsel %vm525, %v1558, 0
  %v1578 = vsel %vm525, %v1559, 0
  %v1581 = vsel %vm525, %v1560, 0
  %v1584 = vsel %vm525, %v1561, 0
  %1586 = vmatpush.msra.mxu0 0.0
  %1587 = vmatpush.msra.mxu0 0.0
  %1588 = vmatpush.msra.mxu0 0.0
  %1589 = vmatpush.msra.mxu0 0.0
  %1590 = vmatpush.msra.mxu0 0.0
  %1591 = vmatpush.msra.mxu0 0.0
  %1592 = vmatpush.msra.mxu0 0.0
  %1593 = vmatpush.msra.mxu0 0.0
  %1594 = vmatpush.msra.mxu0 %v402
  %1595 = vmatpush.msra.mxu0 %v399
  %1596 = vmatpush.msra.mxu0 %v396
  %1597 = vmatpush.msra.mxu0 %v393
  %1598 = vmatpush.msra.mxu0 %v390
  %1599 = vmatpush.msra.mxu0 %v387
  %1600 = vmatpush.msra.mxu0 %v384
  %1601 = vmatpush.msra.mxu0 %v381
  %1602 = vmatmul.f32.gmra.mxu0 %v1563
  %v1603 = vpop.f32.mrf.mxu0
  %v1604 = vadd.f32 0.0, %v1603
  %1605 = vmatmul.f32.gmra.mxu0 %v1566
  %v1606 = vpop.f32.mrf.mxu0
  %v1607 = vadd.f32 0.0, %v1606
  %1608 = vmatmul.f32.gmra.mxu0 %v1569
  %v1609 = vpop.f32.mrf.mxu0
  %v1610 = vadd.f32 0.0, %v1609
  %1611 = vmatmul.f32.gmra.mxu0 %v1572
  %v1612 = vpop.f32.mrf.mxu0
  %v1613 = vadd.f32 0.0, %v1612
  %1614 = vmatmul.f32.gmra.mxu0 %v1575
  %v1615 = vpop.f32.mrf.mxu0
  %v1616 = vadd.f32 0.0, %v1615
  %1617 = vmatmul.f32.gmra.mxu0 %v1578
  %v1618 = vpop.f32.mrf.mxu0
  %v1619 = vadd.f32 0.0, %v1618
  %1620 = vmatmul.f32.gmra.mxu0 %v1581
  %v1621 = vpop.f32.mrf.mxu0
  %v1622 = vadd.f32 0.0, %v1621
  %1623 = vmatmul.f32.gmra.mxu0 %v1584
  %v1624 = vpop.f32.mrf.mxu0
  %v1625 = vadd.f32 0.0, %v1624
  %1626 = vdwg.mxu0
  %v1627 = vsel %vm1030, 1, 0
  %v1628 = vsel %vm1031, 1, 0
  %v1629 = vsel %vm1032, 1, 0
  %v1630 = vsel %vm1033, 1, 0
  %v1631 = vsel %vm1034, 1, 0
  %v1632 = vsel %vm1035, 1, 0
  %v1633 = vsel %vm1036, 1, 0
  %v1634 = vsel %vm1037, 1, 0
  %v1635 = vcvt.s32.f32 %v1627
  %v1636 = vcvt.s32.f32 %v1628
  %v1637 = vcvt.s32.f32 %v1629
  %v1638 = vcvt.s32.f32 %v1630
  %v1639 = vcvt.s32.f32 %v1631
  %v1640 = vcvt.s32.f32 %v1632
  %v1641 = vcvt.s32.f32 %v1633
  %v1642 = vcvt.s32.f32 %v1634
  %v1644 = vsel %vm525, %v1635, 0
  %v1647 = vsel %vm525, %v1636, 0
  %v1650 = vsel %vm525, %v1637, 0
  %v1653 = vsel %vm525, %v1638, 0
  %v1656 = vsel %vm525, %v1639, 0
  %v1659 = vsel %vm525, %v1640, 0
  %v1662 = vsel %vm525, %v1641, 0
  %v1665 = vsel %vm525, %v1642, 0
  %1667 = vmatpush.msra.mxu0 0.0
  %1668 = vmatpush.msra.mxu0 0.0
  %1669 = vmatpush.msra.mxu0 0.0
  %1670 = vmatpush.msra.mxu0 0.0
  %1671 = vmatpush.msra.mxu0 0.0
  %1672 = vmatpush.msra.mxu0 0.0
  %1673 = vmatpush.msra.mxu0 0.0
  %1674 = vmatpush.msra.mxu0 0.0
  %1675 = vmatpush.msra.mxu0 %v402
  %1676 = vmatpush.msra.mxu0 %v399
  %1677 = vmatpush.msra.mxu0 %v396
  %1678 = vmatpush.msra.mxu0 %v393
  %1679 = vmatpush.msra.mxu0 %v390
  %1680 = vmatpush.msra.mxu0 %v387
  %1681 = vmatpush.msra.mxu0 %v384
  %1682 = vmatpush.msra.mxu0 %v381
  %1683 = vmatmul.f32.gmra.mxu0 %v1644
  %v1684 = vpop.f32.mrf.mxu0
  %v1685 = vadd.f32 0.0, %v1684
  %1686 = vmatmul.f32.gmra.mxu0 %v1647
  %v1687 = vpop.f32.mrf.mxu0
  %v1688 = vadd.f32 0.0, %v1687
  %1689 = vmatmul.f32.gmra.mxu0 %v1650
  %v1690 = vpop.f32.mrf.mxu0
  %v1691 = vadd.f32 0.0, %v1690
  %1692 = vmatmul.f32.gmra.mxu0 %v1653
  %v1693 = vpop.f32.mrf.mxu0
  %v1694 = vadd.f32 0.0, %v1693
  %1695 = vmatmul.f32.gmra.mxu0 %v1656
  %v1696 = vpop.f32.mrf.mxu0
  %v1697 = vadd.f32 0.0, %v1696
  %1698 = vmatmul.f32.gmra.mxu0 %v1659
  %v1699 = vpop.f32.mrf.mxu0
  %v1700 = vadd.f32 0.0, %v1699
  %1701 = vmatmul.f32.gmra.mxu0 %v1662
  %v1702 = vpop.f32.mrf.mxu0
  %v1703 = vadd.f32 0.0, %v1702
  %1704 = vmatmul.f32.gmra.mxu0 %v1665
  %v1705 = vpop.f32.mrf.mxu0
  %v1706 = vadd.f32 0.0, %v1705
  %1707 = vdwg.mxu0
  %v1708 = vsel %vm1118, 1, 0
  %v1709 = vsel %vm1119, 1, 0
  %v1710 = vsel %vm1120, 1, 0
  %v1711 = vsel %vm1121, 1, 0
  %v1712 = vsel %vm1122, 1, 0
  %v1713 = vsel %vm1123, 1, 0
  %v1714 = vsel %vm1124, 1, 0
  %v1715 = vsel %vm1125, 1, 0
  %v1716 = vcvt.s32.f32 %v1708
  %v1717 = vcvt.s32.f32 %v1709
  %v1718 = vcvt.s32.f32 %v1710
  %v1719 = vcvt.s32.f32 %v1711
  %v1720 = vcvt.s32.f32 %v1712
  %v1721 = vcvt.s32.f32 %v1713
  %v1722 = vcvt.s32.f32 %v1714
  %v1723 = vcvt.s32.f32 %v1715
  %v1725 = vsel %vm525, %v1716, 0
  %v1728 = vsel %vm525, %v1717, 0
  %v1731 = vsel %vm525, %v1718, 0
  %v1734 = vsel %vm525, %v1719, 0
  %v1737 = vsel %vm525, %v1720, 0
  %v1740 = vsel %vm525, %v1721, 0
  %v1743 = vsel %vm525, %v1722, 0
  %v1746 = vsel %vm525, %v1723, 0
  %1748 = vmatpush.msra.mxu0 0.0
  %1749 = vmatpush.msra.mxu0 0.0
  %1750 = vmatpush.msra.mxu0 0.0
  %1751 = vmatpush.msra.mxu0 0.0
  %1752 = vmatpush.msra.mxu0 0.0
  %1753 = vmatpush.msra.mxu0 0.0
  %1754 = vmatpush.msra.mxu0 0.0
  %1755 = vmatpush.msra.mxu0 0.0
  %1756 = vmatpush.msra.mxu0 %v402
  %1757 = vmatpush.msra.mxu0 %v399
  %1758 = vmatpush.msra.mxu0 %v396
  %1759 = vmatpush.msra.mxu0 %v393
  %1760 = vmatpush.msra.mxu0 %v390
  %1761 = vmatpush.msra.mxu0 %v387
  %1762 = vmatpush.msra.mxu0 %v384
  %1763 = vmatpush.msra.mxu0 %v381
  %1764 = vmatmul.f32.gmra.mxu0 %v1725
  %v1765 = vpop.f32.mrf.mxu0
  %v1766 = vadd.f32 0.0, %v1765
  %1767 = vmatmul.f32.gmra.mxu0 %v1728
  %v1768 = vpop.f32.mrf.mxu0
  %v1769 = vadd.f32 0.0, %v1768
  %1770 = vmatmul.f32.gmra.mxu0 %v1731
  %v1771 = vpop.f32.mrf.mxu0
  %v1772 = vadd.f32 0.0, %v1771
  %1773 = vmatmul.f32.gmra.mxu0 %v1734
  %v1774 = vpop.f32.mrf.mxu0
  %v1775 = vadd.f32 0.0, %v1774
  %1776 = vmatmul.f32.gmra.mxu0 %v1737
  %v1777 = vpop.f32.mrf.mxu0
  %v1778 = vadd.f32 0.0, %v1777
  %1779 = vmatmul.f32.gmra.mxu0 %v1740
  %v1780 = vpop.f32.mrf.mxu0
  %v1781 = vadd.f32 0.0, %v1780
  %1782 = vmatmul.f32.gmra.mxu0 %v1743
  %v1783 = vpop.f32.mrf.mxu0
  %v1784 = vadd.f32 0.0, %v1783
  %1785 = vmatmul.f32.gmra.mxu0 %v1746
  %v1786 = vpop.f32.mrf.mxu0
  %v1787 = vadd.f32 0.0, %v1786
  %1788 = vdwg.mxu0
  %v1789 = vsel %vm1206, 1, 0
  %v1790 = vsel %vm1207, 1, 0
  %v1791 = vsel %vm1208, 1, 0
  %v1792 = vsel %vm1209, 1, 0
  %v1793 = vsel %vm1210, 1, 0
  %v1794 = vsel %vm1211, 1, 0
  %v1795 = vsel %vm1212, 1, 0
  %v1796 = vsel %vm1213, 1, 0
  %v1797 = vcvt.s32.f32 %v1789
  %v1798 = vcvt.s32.f32 %v1790
  %v1799 = vcvt.s32.f32 %v1791
  %v1800 = vcvt.s32.f32 %v1792
  %v1801 = vcvt.s32.f32 %v1793
  %v1802 = vcvt.s32.f32 %v1794
  %v1803 = vcvt.s32.f32 %v1795
  %v1804 = vcvt.s32.f32 %v1796
  %v1806 = vsel %vm525, %v1797, 0
  %v1809 = vsel %vm525, %v1798, 0
  %v1812 = vsel %vm525, %v1799, 0
  %v1815 = vsel %vm525, %v1800, 0
  %v1818 = vsel %vm525, %v1801, 0
  %v1821 = vsel %vm525, %v1802, 0
  %v1824 = vsel %vm525, %v1803, 0
  %v1827 = vsel %vm525, %v1804, 0
  %1829 = vmatpush.msra.mxu0 0.0
  %1830 = vmatpush.msra.mxu0 0.0
  %1831 = vmatpush.msra.mxu0 0.0
  %1832 = vmatpush.msra.mxu0 0.0
  %1833 = vmatpush.msra.mxu0 0.0
  %1834 = vmatpush.msra.mxu0 0.0
  %1835 = vmatpush.msra.mxu0 0.0
  %1836 = vmatpush.msra.mxu0 0.0
  %1837 = vmatpush.msra.mxu0 %v402
  %1838 = vmatpush.msra.mxu0 %v399
  %1839 = vmatpush.msra.mxu0 %v396
  %1840 = vmatpush.msra.mxu0 %v393
  %1841 = vmatpush.msra.mxu0 %v390
  %1842 = vmatpush.msra.mxu0 %v387
  %1843 = vmatpush.msra.mxu0 %v384
  %1844 = vmatpush.msra.mxu0 %v381
  %1845 = vmatmul.f32.gmra.mxu0 %v1806
  %v1846 = vpop.f32.mrf.mxu0
  %v1847 = vadd.f32 0.0, %v1846
  %1848 = vmatmul.f32.gmra.mxu0 %v1809
  %v1849 = vpop.f32.mrf.mxu0
  %v1850 = vadd.f32 0.0, %v1849
  %1851 = vmatmul.f32.gmra.mxu0 %v1812
  %v1852 = vpop.f32.mrf.mxu0
  %v1853 = vadd.f32 0.0, %v1852
  %1854 = vmatmul.f32.gmra.mxu0 %v1815
  %v1855 = vpop.f32.mrf.mxu0
  %v1856 = vadd.f32 0.0, %v1855
  %1857 = vmatmul.f32.gmra.mxu0 %v1818
  %v1858 = vpop.f32.mrf.mxu0
  %v1859 = vadd.f32 0.0, %v1858
  %1860 = vmatmul.f32.gmra.mxu0 %v1821
  %v1861 = vpop.f32.mrf.mxu0
  %v1862 = vadd.f32 0.0, %v1861
  %1863 = vmatmul.f32.gmra.mxu0 %v1824
  %v1864 = vpop.f32.mrf.mxu0
  %v1865 = vadd.f32 0.0, %v1864
  %1866 = vmatmul.f32.gmra.mxu0 %v1827
  %v1867 = vpop.f32.mrf.mxu0
  %v1868 = vadd.f32 0.0, %v1867
  %1869 = vdwg.mxu0
  %v1870 = vmax.f32 %v1280, -1e+30
  %v1871 = vmax.f32 %v1283, -1e+30
  %v1872 = vmax.f32 %v1286, -1e+30
  %v1873 = vmax.f32 %v1289, -1e+30
  %v1874 = vmax.f32 %v1292, -1e+30
  %v1875 = vmax.f32 %v1295, -1e+30
  %v1876 = vmax.f32 %v1298, -1e+30
  %v1877 = vmax.f32 %v1301, -1e+30
  %v1878 = vsel %vm598, 1, 0
  %v1879 = vsel %vm599, 1, 0
  %v1880 = vsel %vm600, 1, 0
  %v1881 = vsel %vm601, 1, 0
  %v1882 = vsel %vm602, 1, 0
  %v1883 = vsel %vm603, 1, 0
  %v1884 = vsel %vm604, 1, 0
  %v1885 = vsel %vm605, 1, 0
  %vm1886 = vcmp.eq.s32.totalorder %v1878, 1
  %vm1887 = vcmp.eq.s32.totalorder %v1879, 1
  %vm1888 = vcmp.eq.s32.totalorder %v1880, 1
  %vm1889 = vcmp.eq.s32.totalorder %v1881, 1
  %vm1890 = vcmp.eq.s32.totalorder %v1882, 1
  %vm1891 = vcmp.eq.s32.totalorder %v1883, 1
  %vm1892 = vcmp.eq.s32.totalorder %v1884, 1
  %vm1893 = vcmp.eq.s32.totalorder %v1885, 1
  %v1894 = vsel %vm1886, %v1870, -1e+30
  %v1895 = vsel %vm1887, %v1871, -1e+30
  %v1896 = vsel %vm1888, %v1872, -1e+30
  %v1897 = vsel %vm1889, %v1873, -1e+30
  %v1898 = vsel %vm1890, %v1874, -1e+30
  %v1899 = vsel %vm1891, %v1875, -1e+30
  %v1900 = vsel %vm1892, %v1876, -1e+30
  %v1901 = vsel %vm1893, %v1877, -1e+30
  %v1902 = vmax.f32 %v1894, %v1361
  %v1903 = vmax.f32 %v1895, %v1364
  %v1904 = vmax.f32 %v1896, %v1367
  %v1905 = vmax.f32 %v1897, %v1370
  %v1906 = vmax.f32 %v1898, %v1373
  %v1907 = vmax.f32 %v1899, %v1376
  %v1908 = vmax.f32 %v1900, %v1379
  %v1909 = vmax.f32 %v1901, %v1382
  %v1910 = vsel %vm686, 1, 0
  %v1911 = vsel %vm687, 1, 0
  %v1912 = vsel %vm688, 1, 0
  %v1913 = vsel %vm689, 1, 0
  %v1914 = vsel %vm690, 1, 0
  %v1915 = vsel %vm691, 1, 0
  %v1916 = vsel %vm692, 1, 0
  %v1917 = vsel %vm693, 1, 0
  %vm1918 = vcmp.eq.s32.totalorder %v1910, 1
  %vm1919 = vcmp.eq.s32.totalorder %v1911, 1
  %vm1920 = vcmp.eq.s32.totalorder %v1912, 1
  %vm1921 = vcmp.eq.s32.totalorder %v1913, 1
  %vm1922 = vcmp.eq.s32.totalorder %v1914, 1
  %vm1923 = vcmp.eq.s32.totalorder %v1915, 1
  %vm1924 = vcmp.eq.s32.totalorder %v1916, 1
  %vm1925 = vcmp.eq.s32.totalorder %v1917, 1
  %v1926 = vsel %vm1918, %v1902, %v1894
  %v1927 = vsel %vm1919, %v1903, %v1895
  %v1928 = vsel %vm1920, %v1904, %v1896
  %v1929 = vsel %vm1921, %v1905, %v1897
  %v1930 = vsel %vm1922, %v1906, %v1898
  %v1931 = vsel %vm1923, %v1907, %v1899
  %v1932 = vsel %vm1924, %v1908, %v1900
  %v1933 = vsel %vm1925, %v1909, %v1901
  %v1934 = vmax.f32 %v1926, %v1442
  %v1935 = vmax.f32 %v1927, %v1445
  %v1936 = vmax.f32 %v1928, %v1448
  %v1937 = vmax.f32 %v1929, %v1451
  %v1938 = vmax.f32 %v1930, %v1454
  %v1939 = vmax.f32 %v1931, %v1457
  %v1940 = vmax.f32 %v1932, %v1460
  %v1941 = vmax.f32 %v1933, %v1463
  %v1942 = vsel %vm774, 1, 0
  %v1943 = vsel %vm775, 1, 0
  %v1944 = vsel %vm776, 1, 0
  %v1945 = vsel %vm777, 1, 0
  %v1946 = vsel %vm778, 1, 0
  %v1947 = vsel %vm779, 1, 0
  %v1948 = vsel %vm780, 1, 0
  %v1949 = vsel %vm781, 1, 0
  %vm1950 = vcmp.eq.s32.totalorder %v1942, 1
  %vm1951 = vcmp.eq.s32.totalorder %v1943, 1
  %vm1952 = vcmp.eq.s32.totalorder %v1944, 1
  %vm1953 = vcmp.eq.s32.totalorder %v1945, 1
  %vm1954 = vcmp.eq.s32.totalorder %v1946, 1
  %vm1955 = vcmp.eq.s32.totalorder %v1947, 1
  %vm1956 = vcmp.eq.s32.totalorder %v1948, 1
  %vm1957 = vcmp.eq.s32.totalorder %v1949, 1
  %v1958 = vsel %vm1950, %v1934, %v1926
  %v1959 = vsel %vm1951, %v1935, %v1927
  %v1960 = vsel %vm1952, %v1936, %v1928
  %v1961 = vsel %vm1953, %v1937, %v1929
  %v1962 = vsel %vm1954, %v1938, %v1930
  %v1963 = vsel %vm1955, %v1939, %v1931
  %v1964 = vsel %vm1956, %v1940, %v1932
  %v1965 = vsel %vm1957, %v1941, %v1933
  %v1966 = vmax.f32 %v1958, %v1523
  %v1967 = vmax.f32 %v1959, %v1526
  %v1968 = vmax.f32 %v1960, %v1529
  %v1969 = vmax.f32 %v1961, %v1532
  %v1970 = vmax.f32 %v1962, %v1535
  %v1971 = vmax.f32 %v1963, %v1538
  %v1972 = vmax.f32 %v1964, %v1541
  %v1973 = vmax.f32 %v1965, %v1544
  %v1974 = vsel %vm862, 1, 0
  %v1975 = vsel %vm863, 1, 0
  %v1976 = vsel %vm864, 1, 0
  %v1977 = vsel %vm865, 1, 0
  %v1978 = vsel %vm866, 1, 0
  %v1979 = vsel %vm867, 1, 0
  %v1980 = vsel %vm868, 1, 0
  %v1981 = vsel %vm869, 1, 0
  %vm1982 = vcmp.eq.s32.totalorder %v1974, 1
  %vm1983 = vcmp.eq.s32.totalorder %v1975, 1
  %vm1984 = vcmp.eq.s32.totalorder %v1976, 1
  %vm1985 = vcmp.eq.s32.totalorder %v1977, 1
  %vm1986 = vcmp.eq.s32.totalorder %v1978, 1
  %vm1987 = vcmp.eq.s32.totalorder %v1979, 1
  %vm1988 = vcmp.eq.s32.totalorder %v1980, 1
  %vm1989 = vcmp.eq.s32.totalorder %v1981, 1
  %v1990 = vsel %vm1982, %v1966, %v1958
  %v1991 = vsel %vm1983, %v1967, %v1959
  %v1992 = vsel %vm1984, %v1968, %v1960
  %v1993 = vsel %vm1985, %v1969, %v1961
  %v1994 = vsel %vm1986, %v1970, %v1962
  %v1995 = vsel %vm1987, %v1971, %v1963
  %v1996 = vsel %vm1988, %v1972, %v1964
  %v1997 = vsel %vm1989, %v1973, %v1965
  %v1998 = vmax.f32 %v1990, %v1604
  %v1999 = vmax.f32 %v1991, %v1607
  %v2000 = vmax.f32 %v1992, %v1610
  %v2001 = vmax.f32 %v1993, %v1613
  %v2002 = vmax.f32 %v1994, %v1616
  %v2003 = vmax.f32 %v1995, %v1619
  %v2004 = vmax.f32 %v1996, %v1622
  %v2005 = vmax.f32 %v1997, %v1625
  %v2006 = vsel %vm950, 1, 0
  %v2007 = vsel %vm951, 1, 0
  %v2008 = vsel %vm952, 1, 0
  %v2009 = vsel %vm953, 1, 0
  %v2010 = vsel %vm954, 1, 0
  %v2011 = vsel %vm955, 1, 0
  %v2012 = vsel %vm956, 1, 0
  %v2013 = vsel %vm957, 1, 0
  %vm2014 = vcmp.eq.s32.totalorder %v2006, 1
  %vm2015 = vcmp.eq.s32.totalorder %v2007, 1
  %vm2016 = vcmp.eq.s32.totalorder %v2008, 1
  %vm2017 = vcmp.eq.s32.totalorder %v2009, 1
  %vm2018 = vcmp.eq.s32.totalorder %v2010, 1
  %vm2019 = vcmp.eq.s32.totalorder %v2011, 1
  %vm2020 = vcmp.eq.s32.totalorder %v2012, 1
  %vm2021 = vcmp.eq.s32.totalorder %v2013, 1
  %v2022 = vsel %vm2014, %v1998, %v1990
  %v2023 = vsel %vm2015, %v1999, %v1991
  %v2024 = vsel %vm2016, %v2000, %v1992
  %v2025 = vsel %vm2017, %v2001, %v1993
  %v2026 = vsel %vm2018, %v2002, %v1994
  %v2027 = vsel %vm2019, %v2003, %v1995
  %v2028 = vsel %vm2020, %v2004, %v1996
  %v2029 = vsel %vm2021, %v2005, %v1997
  %v2030 = vmax.f32 %v2022, %v1685
  %v2031 = vmax.f32 %v2023, %v1688
  %v2032 = vmax.f32 %v2024, %v1691
  %v2033 = vmax.f32 %v2025, %v1694
  %v2034 = vmax.f32 %v2026, %v1697
  %v2035 = vmax.f32 %v2027, %v1700
  %v2036 = vmax.f32 %v2028, %v1703
  %v2037 = vmax.f32 %v2029, %v1706
  %v2038 = vsel %vm1038, 1, 0
  %v2039 = vsel %vm1039, 1, 0
  %v2040 = vsel %vm1040, 1, 0
  %v2041 = vsel %vm1041, 1, 0
  %v2042 = vsel %vm1042, 1, 0
  %v2043 = vsel %vm1043, 1, 0
  %v2044 = vsel %vm1044, 1, 0
  %v2045 = vsel %vm1045, 1, 0
  %vm2046 = vcmp.eq.s32.totalorder %v2038, 1
  %vm2047 = vcmp.eq.s32.totalorder %v2039, 1
  %vm2048 = vcmp.eq.s32.totalorder %v2040, 1
  %vm2049 = vcmp.eq.s32.totalorder %v2041, 1
  %vm2050 = vcmp.eq.s32.totalorder %v2042, 1
  %vm2051 = vcmp.eq.s32.totalorder %v2043, 1
  %vm2052 = vcmp.eq.s32.totalorder %v2044, 1
  %vm2053 = vcmp.eq.s32.totalorder %v2045, 1
  %v2054 = vsel %vm2046, %v2030, %v2022
  %v2055 = vsel %vm2047, %v2031, %v2023
  %v2056 = vsel %vm2048, %v2032, %v2024
  %v2057 = vsel %vm2049, %v2033, %v2025
  %v2058 = vsel %vm2050, %v2034, %v2026
  %v2059 = vsel %vm2051, %v2035, %v2027
  %v2060 = vsel %vm2052, %v2036, %v2028
  %v2061 = vsel %vm2053, %v2037, %v2029
  %v2062 = vmax.f32 %v2054, %v1766
  %v2063 = vmax.f32 %v2055, %v1769
  %v2064 = vmax.f32 %v2056, %v1772
  %v2065 = vmax.f32 %v2057, %v1775
  %v2066 = vmax.f32 %v2058, %v1778
  %v2067 = vmax.f32 %v2059, %v1781
  %v2068 = vmax.f32 %v2060, %v1784
  %v2069 = vmax.f32 %v2061, %v1787
  %v2070 = vsel %vm1126, 1, 0
  %v2071 = vsel %vm1127, 1, 0
  %v2072 = vsel %vm1128, 1, 0
  %v2073 = vsel %vm1129, 1, 0
  %v2074 = vsel %vm1130, 1, 0
  %v2075 = vsel %vm1131, 1, 0
  %v2076 = vsel %vm1132, 1, 0
  %v2077 = vsel %vm1133, 1, 0
  %vm2078 = vcmp.eq.s32.totalorder %v2070, 1
  %vm2079 = vcmp.eq.s32.totalorder %v2071, 1
  %vm2080 = vcmp.eq.s32.totalorder %v2072, 1
  %vm2081 = vcmp.eq.s32.totalorder %v2073, 1
  %vm2082 = vcmp.eq.s32.totalorder %v2074, 1
  %vm2083 = vcmp.eq.s32.totalorder %v2075, 1
  %vm2084 = vcmp.eq.s32.totalorder %v2076, 1
  %vm2085 = vcmp.eq.s32.totalorder %v2077, 1
  %v2086 = vsel %vm2078, %v2062, %v2054
  %v2087 = vsel %vm2079, %v2063, %v2055
  %v2088 = vsel %vm2080, %v2064, %v2056
  %v2089 = vsel %vm2081, %v2065, %v2057
  %v2090 = vsel %vm2082, %v2066, %v2058
  %v2091 = vsel %vm2083, %v2067, %v2059
  %v2092 = vsel %vm2084, %v2068, %v2060
  %v2093 = vsel %vm2085, %v2069, %v2061
  %v2094 = vmax.f32 %v2086, %v1847
  %v2095 = vmax.f32 %v2087, %v1850
  %v2096 = vmax.f32 %v2088, %v1853
  %v2097 = vmax.f32 %v2089, %v1856
  %v2098 = vmax.f32 %v2090, %v1859
  %v2099 = vmax.f32 %v2091, %v1862
  %v2100 = vmax.f32 %v2092, %v1865
  %v2101 = vmax.f32 %v2093, %v1868
  %v2102 = vsel %vm1214, 1, 0
  %v2103 = vsel %vm1215, 1, 0
  %v2104 = vsel %vm1216, 1, 0
  %v2105 = vsel %vm1217, 1, 0
  %v2106 = vsel %vm1218, 1, 0
  %v2107 = vsel %vm1219, 1, 0
  %v2108 = vsel %vm1220, 1, 0
  %v2109 = vsel %vm1221, 1, 0
  %vm2110 = vcmp.eq.s32.totalorder %v2102, 1
  %vm2111 = vcmp.eq.s32.totalorder %v2103, 1
  %vm2112 = vcmp.eq.s32.totalorder %v2104, 1
  %vm2113 = vcmp.eq.s32.totalorder %v2105, 1
  %vm2114 = vcmp.eq.s32.totalorder %v2106, 1
  %vm2115 = vcmp.eq.s32.totalorder %v2107, 1
  %vm2116 = vcmp.eq.s32.totalorder %v2108, 1
  %vm2117 = vcmp.eq.s32.totalorder %v2109, 1
  %v2118 = vsel %vm2110, %v2094, %v2086
  %v2119 = vsel %vm2111, %v2095, %v2087
  %v2120 = vsel %vm2112, %v2096, %v2088
  %v2121 = vsel %vm2113, %v2097, %v2089
  %v2122 = vsel %vm2114, %v2098, %v2090
  %v2123 = vsel %vm2115, %v2099, %v2091
  %v2124 = vsel %vm2116, %v2100, %v2092
  %v2125 = vsel %vm2117, %v2101, %v2093
  %v2126 = vadd.f32 %v340, %v2118
  %v2127 = vadd.f32 %v343, %v2119
  %v2128 = vadd.f32 %v346, %v2120
  %v2129 = vadd.f32 %v349, %v2121
  %v2130 = vadd.f32 %v352, %v2122
  %v2131 = vadd.f32 %v355, %v2123
  %v2132 = vadd.f32 %v358, %v2124
  %v2133 = vadd.f32 %v361, %v2125
  %vm2134 = vcmp.gt.f32.partialorder %v2126, 0.0
  %vm2135 = vcmp.gt.f32.partialorder %v2127, 0.0
  %vm2136 = vcmp.gt.f32.partialorder %v2128, 0.0
  %vm2137 = vcmp.gt.f32.partialorder %v2129, 0.0
  %vm2138 = vcmp.gt.f32.partialorder %v2130, 0.0
  %vm2139 = vcmp.gt.f32.partialorder %v2131, 0.0
  %vm2140 = vcmp.gt.f32.partialorder %v2132, 0.0
  %vm2141 = vcmp.gt.f32.partialorder %v2133, 0.0
  %v2142 = vmul.f32 %v2126, 1.442695
  %v2143 = vpow.pop %v2142
  %v2144 = vmul.f32 %v2127, 1.442695
  %v2145 = vpow.pop %v2144
  %v2146 = vmul.f32 %v2128, 1.442695
  %v2147 = vpow.pop %v2146
  %v2148 = vmul.f32 %v2129, 1.442695
  %v2149 = vpow.pop %v2148
  %v2150 = vmul.f32 %v2130, 1.442695
  %v2151 = vpow.pop %v2150
  %v2152 = vmul.f32 %v2131, 1.442695
  %v2153 = vpow.pop %v2152
  %v2154 = vmul.f32 %v2132, 1.442695
  %v2155 = vpow.pop %v2154
  %v2156 = vmul.f32 %v2133, 1.442695
  %v2157 = vpow.pop %v2156
  %v2158 = vsub.f32 %v2143, 1.0
  %v2159 = vsub.f32 %v2145, 1.0
  %v2160 = vsub.f32 %v2147, 1.0
  %v2161 = vsub.f32 %v2149, 1.0
  %v2162 = vsub.f32 %v2151, 1.0
  %v2163 = vsub.f32 %v2153, 1.0
  %v2164 = vsub.f32 %v2155, 1.0
  %v2165 = vsub.f32 %v2157, 1.0
  %v2166 = vsel %vm2134, %v2126, %v2158
  %v2167 = vsel %vm2135, %v2127, %v2159
  %v2168 = vsel %vm2136, %v2128, %v2160
  %v2169 = vsel %vm2137, %v2129, %v2161
  %v2170 = vsel %vm2138, %v2130, %v2162
  %v2171 = vsel %vm2139, %v2131, %v2163
  %v2172 = vsel %vm2140, %v2132, %v2164
  %v2173 = vsel %vm2141, %v2133, %v2165
  %v2175 = vsel %vm140, %v2166, 0
  %v2178 = vsel %vm140, %v2167, 0
  %v2181 = vsel %vm140, %v2168, 0
  %v2184 = vsel %vm140, %v2169, 0
  %v2187 = vsel %vm140, %v2170, 0
  %v2190 = vsel %vm140, %v2171, 0
  %v2193 = vsel %vm140, %v2172, 0
  %v2196 = vsel %vm140, %v2173, 0
  %2198 = vmatpush.msra.mxu0 0.0
  %2199 = vmatpush.msra.mxu0 0.0
  %2200 = vmatpush.msra.mxu0 0.0
  %2201 = vmatpush.msra.mxu0 0.0
  %2202 = vmatpush.msra.mxu0 0.0
  %2203 = vmatpush.msra.mxu0 0.0
  %2204 = vmatpush.msra.mxu0 0.0
  %2205 = vmatpush.msra.mxu0 0.0
  %2206 = vmatpush.msra.mxu0 0.0
  %2207 = vmatpush.msra.mxu0 0.0
  %2208 = vmatpush.msra.mxu0 0.0
  %2209 = vmatpush.msra.mxu0 0.0
  %2210 = vmatpush.msra.mxu0 0.0
  %2211 = vmatpush.msra.mxu0 0.0
  %2212 = vmatpush.msra.mxu0 %v293
  %2213 = vmatpush.msra.mxu0 %v292
  %2214 = vmatmul.f32.gmra.mxu0 %v2175
  %v2215 = vpop.f32.mrf.mxu0
  %v2216 = vadd.f32 %v297, %v2215
  %2217 = vmatmul.f32.gmra.mxu0 %v2178
  %v2218 = vpop.f32.mrf.mxu0
  %v2219 = vadd.f32 %v297, %v2218
  %2220 = vmatmul.f32.gmra.mxu0 %v2181
  %v2221 = vpop.f32.mrf.mxu0
  %v2222 = vadd.f32 %v297, %v2221
  %2223 = vmatmul.f32.gmra.mxu0 %v2184
  %v2224 = vpop.f32.mrf.mxu0
  %v2225 = vadd.f32 %v297, %v2224
  %2226 = vmatmul.f32.gmra.mxu0 %v2187
  %v2227 = vpop.f32.mrf.mxu0
  %v2228 = vadd.f32 %v297, %v2227
  %2229 = vmatmul.f32.gmra.mxu0 %v2190
  %v2230 = vpop.f32.mrf.mxu0
  %v2231 = vadd.f32 %v297, %v2230
  %2232 = vmatmul.f32.gmra.mxu0 %v2193
  %v2233 = vpop.f32.mrf.mxu0
  %v2234 = vadd.f32 %v297, %v2233
  %2235 = vmatmul.f32.gmra.mxu0 %v2196
  %v2236 = vpop.f32.mrf.mxu0
  %v2237 = vadd.f32 %v297, %v2236
  %2238 = vdwg.mxu0
  %2239 = vmatpush.msra.mxu0 0.0
  %2240 = vmatpush.msra.mxu0 0.0
  %2241 = vmatpush.msra.mxu0 0.0
  %2242 = vmatpush.msra.mxu0 0.0
  %2243 = vmatpush.msra.mxu0 0.0
  %2244 = vmatpush.msra.mxu0 0.0
  %2245 = vmatpush.msra.mxu0 0.0
  %2246 = vmatpush.msra.mxu0 0.0
  %2247 = vmatpush.msra.mxu0 0.0
  %2248 = vmatpush.msra.mxu0 0.0
  %2249 = vmatpush.msra.mxu0 0.0
  %2250 = vmatpush.msra.mxu0 0.0
  %2251 = vmatpush.msra.mxu0 0.0
  %2252 = vmatpush.msra.mxu0 0.0
  %2253 = vmatpush.msra.mxu0 %v295
  %2254 = vmatpush.msra.mxu0 %v294
  %2255 = vmatmul.f32.gmra.mxu0 %v2175
  %v2256 = vpop.f32.mrf.mxu0
  %v2257 = vadd.f32 0.0, %v2256
  %2258 = vmatmul.f32.gmra.mxu0 %v2178
  %v2259 = vpop.f32.mrf.mxu0
  %v2260 = vadd.f32 0.0, %v2259
  %2261 = vmatmul.f32.gmra.mxu0 %v2181
  %v2262 = vpop.f32.mrf.mxu0
  %v2263 = vadd.f32 0.0, %v2262
  %2264 = vmatmul.f32.gmra.mxu0 %v2184
  %v2265 = vpop.f32.mrf.mxu0
  %v2266 = vadd.f32 0.0, %v2265
  %2267 = vmatmul.f32.gmra.mxu0 %v2187
  %v2268 = vpop.f32.mrf.mxu0
  %v2269 = vadd.f32 0.0, %v2268
  %2270 = vmatmul.f32.gmra.mxu0 %v2190
  %v2271 = vpop.f32.mrf.mxu0
  %v2272 = vadd.f32 0.0, %v2271
  %2273 = vmatmul.f32.gmra.mxu0 %v2193
  %v2274 = vpop.f32.mrf.mxu0
  %v2275 = vadd.f32 0.0, %v2274
  %2276 = vmatmul.f32.gmra.mxu0 %v2196
  %v2277 = vpop.f32.mrf.mxu0
  %v2278 = vadd.f32 0.0, %v2277
  %2279 = vdwg.mxu0
  %2280 = vmatpush.xpose.msra.mxu0 0.0
  %2281 = vmatpush.xpose.msra.mxu0 0.0
  %2282 = vmatpush.xpose.msra.mxu0 0.0
  %2283 = vmatpush.xpose.msra.mxu0 0.0
  %2284 = vmatpush.xpose.msra.mxu0 0.0
  %2285 = vmatpush.xpose.msra.mxu0 0.0
  %2286 = vmatpush.xpose.msra.mxu0 0.0
  %2287 = vmatpush.xpose.msra.mxu0 0.0
  %2288 = vmatpush.xpose.msra.mxu0 %v2196
  %2289 = vmatpush.xpose.msra.mxu0 %v2193
  %2290 = vmatpush.xpose.msra.mxu0 %v2190
  %2291 = vmatpush.xpose.msra.mxu0 %v2187
  %2292 = vmatpush.xpose.msra.mxu0 %v2184
  %2293 = vmatpush.xpose.msra.mxu0 %v2181
  %2294 = vmatpush.xpose.msra.mxu0 %v2178
  %2295 = vmatpush.xpose.msra.mxu0 %v2175
  %2296 = vmatmul.f32.gmra.mxu0 %v2175
  %v2297 = vpop.f32.mrf.mxu0
  %v2298 = vadd.f32 0.0, %v2297
  %2299 = vmatmul.f32.gmra.mxu0 %v2178
  %v2300 = vpop.f32.mrf.mxu0
  %v2301 = vadd.f32 0.0, %v2300
  %2302 = vmatmul.f32.gmra.mxu0 %v2181
  %v2303 = vpop.f32.mrf.mxu0
  %v2304 = vadd.f32 0.0, %v2303
  %2305 = vmatmul.f32.gmra.mxu0 %v2184
  %v2306 = vpop.f32.mrf.mxu0
  %v2307 = vadd.f32 0.0, %v2306
  %2308 = vmatmul.f32.gmra.mxu0 %v2187
  %v2309 = vpop.f32.mrf.mxu0
  %v2310 = vadd.f32 0.0, %v2309
  %2311 = vmatmul.f32.gmra.mxu0 %v2190
  %v2312 = vpop.f32.mrf.mxu0
  %v2313 = vadd.f32 0.0, %v2312
  %2314 = vmatmul.f32.gmra.mxu0 %v2193
  %v2315 = vpop.f32.mrf.mxu0
  %v2316 = vadd.f32 0.0, %v2315
  %2317 = vmatmul.f32.gmra.mxu0 %v2196
  %v2318 = vpop.f32.mrf.mxu0
  %v2319 = vadd.f32 0.0, %v2318
  %2320 = vdwg.mxu0
  %v2321 = vmul.f32 %v2166, %v2166
  %v2322 = vmul.f32 %v2167, %v2167
  %v2323 = vmul.f32 %v2168, %v2168
  %v2324 = vmul.f32 %v2169, %v2169
  %v2325 = vmul.f32 %v2170, %v2170
  %v2326 = vmul.f32 %v2171, %v2171
  %v2327 = vmul.f32 %v2172, %v2172
  %v2328 = vmul.f32 %v2173, %v2173
  %v2330 = vsel %vm140, %v2321, 0
  %v2333 = vsel %vm140, %v2322, 0
  %v2336 = vsel %vm140, %v2323, 0
  %v2339 = vsel %vm140, %v2324, 0
  %v2342 = vsel %vm140, %v2325, 0
  %v2345 = vsel %vm140, %v2326, 0
  %v2348 = vsel %vm140, %v2327, 0
  %v2351 = vsel %vm140, %v2328, 0
  %2353 = vmatpush.xpose.msra.mxu0 0.0
  %2354 = vmatpush.xpose.msra.mxu0 0.0
  %2355 = vmatpush.xpose.msra.mxu0 0.0
  %2356 = vmatpush.xpose.msra.mxu0 0.0
  %2357 = vmatpush.xpose.msra.mxu0 0.0
  %2358 = vmatpush.xpose.msra.mxu0 0.0
  %2359 = vmatpush.xpose.msra.mxu0 0.0
  %2360 = vmatpush.xpose.msra.mxu0 0.0
  %2361 = vmatpush.xpose.msra.mxu0 %v2351
  %2362 = vmatpush.xpose.msra.mxu0 %v2348
  %2363 = vmatpush.xpose.msra.mxu0 %v2345
  %2364 = vmatpush.xpose.msra.mxu0 %v2342
  %2365 = vmatpush.xpose.msra.mxu0 %v2339
  %2366 = vmatpush.xpose.msra.mxu0 %v2336
  %2367 = vmatpush.xpose.msra.mxu0 %v2333
  %2368 = vmatpush.xpose.msra.mxu0 %v2330
  %2369 = vmatmul.f32.gmra.mxu0 %v454
  %v2370 = vpop.f32.mrf.mxu0
  %v2371 = vadd.f32 0.0, %v2370
  %2372 = vdwg.mxu0
  %v2373 = vmul.f32 %v2298, 2.0
  %v2374 = vmul.f32 %v2301, 2.0
  %v2375 = vmul.f32 %v2304, 2.0
  %v2376 = vmul.f32 %v2307, 2.0
  %v2377 = vmul.f32 %v2310, 2.0
  %v2378 = vmul.f32 %v2313, 2.0
  %v2379 = vmul.f32 %v2316, 2.0
  %v2380 = vmul.f32 %v2319, 2.0
  %v2381 = vperm.slane %v2371, 0
  %v2382 = vsub.f32 %v2381, %v2373
  %v2383 = vsub.f32 %v2381, %v2374
  %v2384 = vsub.f32 %v2381, %v2375
  %v2385 = vsub.f32 %v2381, %v2376
  %v2386 = vsub.f32 %v2381, %v2377
  %v2387 = vsub.f32 %v2381, %v2378
  %v2388 = vsub.f32 %v2381, %v2379
  %v2389 = vsub.f32 %v2381, %v2380
  %v2390 = vsel %vm281, %v2382, 1e+30
  %v2391 = vsel %vm282, %v2383, 1e+30
  %v2392 = vsel %vm283, %v2384, 1e+30
  %v2393 = vsel %vm284, %v2385, 1e+30
  %v2394 = vsel %vm285, %v2386, 1e+30
  %v2395 = vsel %vm286, %v2387, 1e+30
  %v2396 = vsel %vm287, %v2388, 1e+30
  %v2397 = vsel %vm288, %v2389, 1e+30
  %v2398 = vsel %vm525, %v2390, inf
  %2399 = vmin.xlane.f32.xlu0 %v2398
  %v2400 = vpop.xlane.xlu0 %2399
  %v2401 = vsel %vm525, %v2391, inf
  %2402 = vmin.xlane.f32.xlu0 %v2401
  %v2403 = vpop.xlane.xlu0 %2402
  %v2404 = vsel %vm525, %v2392, inf
  %2405 = vmin.xlane.f32.xlu0 %v2404
  %v2406 = vpop.xlane.xlu0 %2405
  %v2407 = vsel %vm525, %v2393, inf
  %2408 = vmin.xlane.f32.xlu0 %v2407
  %v2409 = vpop.xlane.xlu0 %2408
  %v2410 = vsel %vm525, %v2394, inf
  %2411 = vmin.xlane.f32.xlu0 %v2410
  %v2412 = vpop.xlane.xlu0 %2411
  %v2413 = vsel %vm525, %v2395, inf
  %2414 = vmin.xlane.f32.xlu0 %v2413
  %v2415 = vpop.xlane.xlu0 %2414
  %v2416 = vsel %vm525, %v2396, inf
  %2417 = vmin.xlane.f32.xlu0 %v2416
  %v2418 = vpop.xlane.xlu0 %2417
  %v2419 = vsel %vm525, %v2397, inf
  %2420 = vmin.xlane.f32.xlu0 %v2419
  %v2421 = vpop.xlane.xlu0 %2420
  %vm2422 = vcmp.eq.f32.partialorder %v2390, %v2400
  %vm2423 = vcmp.eq.f32.partialorder %v2391, %v2403
  %vm2424 = vcmp.eq.f32.partialorder %v2392, %v2406
  %vm2425 = vcmp.eq.f32.partialorder %v2393, %v2409
  %vm2426 = vcmp.eq.f32.partialorder %v2394, %v2412
  %vm2427 = vcmp.eq.f32.partialorder %v2395, %v2415
  %vm2428 = vcmp.eq.f32.partialorder %v2396, %v2418
  %vm2429 = vcmp.eq.f32.partialorder %v2397, %v2421
  %v2430 = vsel %vm2422, %v291, 64.0
  %v2431 = vsel %vm2423, %v291, 64.0
  %v2432 = vsel %vm2424, %v291, 64.0
  %v2433 = vsel %vm2425, %v291, 64.0
  %v2434 = vsel %vm2426, %v291, 64.0
  %v2435 = vsel %vm2427, %v291, 64.0
  %v2436 = vsel %vm2428, %v291, 64.0
  %v2437 = vsel %vm2429, %v291, 64.0
  %v2438 = vsel %vm525, %v2430, inf
  %2439 = vmin.xlane.f32.xlu0 %v2438
  %v2440 = vpop.xlane.xlu0 %2439
  %v2441 = vsel %vm525, %v2431, inf
  %2442 = vmin.xlane.f32.xlu0 %v2441
  %v2443 = vpop.xlane.xlu0 %2442
  %v2444 = vsel %vm525, %v2432, inf
  %2445 = vmin.xlane.f32.xlu0 %v2444
  %v2446 = vpop.xlane.xlu0 %2445
  %v2447 = vsel %vm525, %v2433, inf
  %2448 = vmin.xlane.f32.xlu0 %v2447
  %v2449 = vpop.xlane.xlu0 %2448
  %v2450 = vsel %vm525, %v2434, inf
  %2451 = vmin.xlane.f32.xlu0 %v2450
  %v2452 = vpop.xlane.xlu0 %2451
  %v2453 = vsel %vm525, %v2435, inf
  %2454 = vmin.xlane.f32.xlu0 %v2453
  %v2455 = vpop.xlane.xlu0 %2454
  %v2456 = vsel %vm525, %v2436, inf
  %2457 = vmin.xlane.f32.xlu0 %v2456
  %v2458 = vpop.xlane.xlu0 %2457
  %v2459 = vsel %vm525, %v2437, inf
  %2460 = vmin.xlane.f32.xlu0 %v2459
  %v2461 = vpop.xlane.xlu0 %2460
  %vm2462 = vcmp.eq.f32.partialorder %v291, %v2440
  %vm2463 = vcmp.eq.f32.partialorder %v291, %v2443
  %vm2464 = vcmp.eq.f32.partialorder %v291, %v2446
  %vm2465 = vcmp.eq.f32.partialorder %v291, %v2449
  %vm2466 = vcmp.eq.f32.partialorder %v291, %v2452
  %vm2467 = vcmp.eq.f32.partialorder %v291, %v2455
  %vm2468 = vcmp.eq.f32.partialorder %v291, %v2458
  %vm2469 = vcmp.eq.f32.partialorder %v291, %v2461
  %vm2470 = vcmp.lt.f32.partialorder %v2400, 1e+29
  %vm2471 = vcmp.lt.f32.partialorder %v2403, 1e+29
  %vm2472 = vcmp.lt.f32.partialorder %v2406, 1e+29
  %vm2473 = vcmp.lt.f32.partialorder %v2409, 1e+29
  %vm2474 = vcmp.lt.f32.partialorder %v2412, 1e+29
  %vm2475 = vcmp.lt.f32.partialorder %v2415, 1e+29
  %vm2476 = vcmp.lt.f32.partialorder %v2418, 1e+29
  %vm2477 = vcmp.lt.f32.partialorder %v2421, 1e+29
  %v2478 = vsel %vm2462, 1e+30, %v2390
  %v2479 = vsel %vm2463, 1e+30, %v2391
  %v2480 = vsel %vm2464, 1e+30, %v2392
  %v2481 = vsel %vm2465, 1e+30, %v2393
  %v2482 = vsel %vm2466, 1e+30, %v2394
  %v2483 = vsel %vm2467, 1e+30, %v2395
  %v2484 = vsel %vm2468, 1e+30, %v2396
  %v2485 = vsel %vm2469, 1e+30, %v2397
  %v2486 = vsel %vm525, %v2478, inf
  %2487 = vmin.xlane.f32.xlu0 %v2486
  %v2488 = vpop.xlane.xlu0 %2487
  %v2489 = vsel %vm525, %v2479, inf
  %2490 = vmin.xlane.f32.xlu0 %v2489
  %v2491 = vpop.xlane.xlu0 %2490
  %v2492 = vsel %vm525, %v2480, inf
  %2493 = vmin.xlane.f32.xlu0 %v2492
  %v2494 = vpop.xlane.xlu0 %2493
  %v2495 = vsel %vm525, %v2481, inf
  %2496 = vmin.xlane.f32.xlu0 %v2495
  %v2497 = vpop.xlane.xlu0 %2496
  %v2498 = vsel %vm525, %v2482, inf
  %2499 = vmin.xlane.f32.xlu0 %v2498
  %v2500 = vpop.xlane.xlu0 %2499
  %v2501 = vsel %vm525, %v2483, inf
  %2502 = vmin.xlane.f32.xlu0 %v2501
  %v2503 = vpop.xlane.xlu0 %2502
  %v2504 = vsel %vm525, %v2484, inf
  %2505 = vmin.xlane.f32.xlu0 %v2504
  %v2506 = vpop.xlane.xlu0 %2505
  %v2507 = vsel %vm525, %v2485, inf
  %2508 = vmin.xlane.f32.xlu0 %v2507
  %v2509 = vpop.xlane.xlu0 %2508
  %vm2510 = vcmp.eq.f32.partialorder %v2478, %v2488
  %vm2511 = vcmp.eq.f32.partialorder %v2479, %v2491
  %vm2512 = vcmp.eq.f32.partialorder %v2480, %v2494
  %vm2513 = vcmp.eq.f32.partialorder %v2481, %v2497
  %vm2514 = vcmp.eq.f32.partialorder %v2482, %v2500
  %vm2515 = vcmp.eq.f32.partialorder %v2483, %v2503
  %vm2516 = vcmp.eq.f32.partialorder %v2484, %v2506
  %vm2517 = vcmp.eq.f32.partialorder %v2485, %v2509
  %v2518 = vsel %vm2510, %v291, 64.0
  %v2519 = vsel %vm2511, %v291, 64.0
  %v2520 = vsel %vm2512, %v291, 64.0
  %v2521 = vsel %vm2513, %v291, 64.0
  %v2522 = vsel %vm2514, %v291, 64.0
  %v2523 = vsel %vm2515, %v291, 64.0
  %v2524 = vsel %vm2516, %v291, 64.0
  %v2525 = vsel %vm2517, %v291, 64.0
  %v2526 = vsel %vm525, %v2518, inf
  %2527 = vmin.xlane.f32.xlu0 %v2526
  %v2528 = vpop.xlane.xlu0 %2527
  %v2529 = vsel %vm525, %v2519, inf
  %2530 = vmin.xlane.f32.xlu0 %v2529
  %v2531 = vpop.xlane.xlu0 %2530
  %v2532 = vsel %vm525, %v2520, inf
  %2533 = vmin.xlane.f32.xlu0 %v2532
  %v2534 = vpop.xlane.xlu0 %2533
  %v2535 = vsel %vm525, %v2521, inf
  %2536 = vmin.xlane.f32.xlu0 %v2535
  %v2537 = vpop.xlane.xlu0 %2536
  %v2538 = vsel %vm525, %v2522, inf
  %2539 = vmin.xlane.f32.xlu0 %v2538
  %v2540 = vpop.xlane.xlu0 %2539
  %v2541 = vsel %vm525, %v2523, inf
  %2542 = vmin.xlane.f32.xlu0 %v2541
  %v2543 = vpop.xlane.xlu0 %2542
  %v2544 = vsel %vm525, %v2524, inf
  %2545 = vmin.xlane.f32.xlu0 %v2544
  %v2546 = vpop.xlane.xlu0 %2545
  %v2547 = vsel %vm525, %v2525, inf
  %2548 = vmin.xlane.f32.xlu0 %v2547
  %v2549 = vpop.xlane.xlu0 %2548
  %vm2550 = vcmp.eq.f32.partialorder %v291, %v2528
  %vm2551 = vcmp.eq.f32.partialorder %v291, %v2531
  %vm2552 = vcmp.eq.f32.partialorder %v291, %v2534
  %vm2553 = vcmp.eq.f32.partialorder %v291, %v2537
  %vm2554 = vcmp.eq.f32.partialorder %v291, %v2540
  %vm2555 = vcmp.eq.f32.partialorder %v291, %v2543
  %vm2556 = vcmp.eq.f32.partialorder %v291, %v2546
  %vm2557 = vcmp.eq.f32.partialorder %v291, %v2549
  %vm2558 = vcmp.lt.f32.partialorder %v2488, 1e+29
  %vm2559 = vcmp.lt.f32.partialorder %v2491, 1e+29
  %vm2560 = vcmp.lt.f32.partialorder %v2494, 1e+29
  %vm2561 = vcmp.lt.f32.partialorder %v2497, 1e+29
  %vm2562 = vcmp.lt.f32.partialorder %v2500, 1e+29
  %vm2563 = vcmp.lt.f32.partialorder %v2503, 1e+29
  %vm2564 = vcmp.lt.f32.partialorder %v2506, 1e+29
  %vm2565 = vcmp.lt.f32.partialorder %v2509, 1e+29
  %v2566 = vsel %vm2550, 1e+30, %v2478
  %v2567 = vsel %vm2551, 1e+30, %v2479
  %v2568 = vsel %vm2552, 1e+30, %v2480
  %v2569 = vsel %vm2553, 1e+30, %v2481
  %v2570 = vsel %vm2554, 1e+30, %v2482
  %v2571 = vsel %vm2555, 1e+30, %v2483
  %v2572 = vsel %vm2556, 1e+30, %v2484
  %v2573 = vsel %vm2557, 1e+30, %v2485
  %v2574 = vsel %vm525, %v2566, inf
  %2575 = vmin.xlane.f32.xlu0 %v2574
  %v2576 = vpop.xlane.xlu0 %2575
  %v2577 = vsel %vm525, %v2567, inf
  %2578 = vmin.xlane.f32.xlu0 %v2577
  %v2579 = vpop.xlane.xlu0 %2578
  %v2580 = vsel %vm525, %v2568, inf
  %2581 = vmin.xlane.f32.xlu0 %v2580
  %v2582 = vpop.xlane.xlu0 %2581
  %v2583 = vsel %vm525, %v2569, inf
  %2584 = vmin.xlane.f32.xlu0 %v2583
  %v2585 = vpop.xlane.xlu0 %2584
  %v2586 = vsel %vm525, %v2570, inf
  %2587 = vmin.xlane.f32.xlu0 %v2586
  %v2588 = vpop.xlane.xlu0 %2587
  %v2589 = vsel %vm525, %v2571, inf
  %2590 = vmin.xlane.f32.xlu0 %v2589
  %v2591 = vpop.xlane.xlu0 %2590
  %v2592 = vsel %vm525, %v2572, inf
  %2593 = vmin.xlane.f32.xlu0 %v2592
  %v2594 = vpop.xlane.xlu0 %2593
  %v2595 = vsel %vm525, %v2573, inf
  %2596 = vmin.xlane.f32.xlu0 %v2595
  %v2597 = vpop.xlane.xlu0 %2596
  %vm2598 = vcmp.eq.f32.partialorder %v2566, %v2576
  %vm2599 = vcmp.eq.f32.partialorder %v2567, %v2579
  %vm2600 = vcmp.eq.f32.partialorder %v2568, %v2582
  %vm2601 = vcmp.eq.f32.partialorder %v2569, %v2585
  %vm2602 = vcmp.eq.f32.partialorder %v2570, %v2588
  %vm2603 = vcmp.eq.f32.partialorder %v2571, %v2591
  %vm2604 = vcmp.eq.f32.partialorder %v2572, %v2594
  %vm2605 = vcmp.eq.f32.partialorder %v2573, %v2597
  %v2606 = vsel %vm2598, %v291, 64.0
  %v2607 = vsel %vm2599, %v291, 64.0
  %v2608 = vsel %vm2600, %v291, 64.0
  %v2609 = vsel %vm2601, %v291, 64.0
  %v2610 = vsel %vm2602, %v291, 64.0
  %v2611 = vsel %vm2603, %v291, 64.0
  %v2612 = vsel %vm2604, %v291, 64.0
  %v2613 = vsel %vm2605, %v291, 64.0
  %v2614 = vsel %vm525, %v2606, inf
  %2615 = vmin.xlane.f32.xlu0 %v2614
  %v2616 = vpop.xlane.xlu0 %2615
  %v2617 = vsel %vm525, %v2607, inf
  %2618 = vmin.xlane.f32.xlu0 %v2617
  %v2619 = vpop.xlane.xlu0 %2618
  %v2620 = vsel %vm525, %v2608, inf
  %2621 = vmin.xlane.f32.xlu0 %v2620
  %v2622 = vpop.xlane.xlu0 %2621
  %v2623 = vsel %vm525, %v2609, inf
  %2624 = vmin.xlane.f32.xlu0 %v2623
  %v2625 = vpop.xlane.xlu0 %2624
  %v2626 = vsel %vm525, %v2610, inf
  %2627 = vmin.xlane.f32.xlu0 %v2626
  %v2628 = vpop.xlane.xlu0 %2627
  %v2629 = vsel %vm525, %v2611, inf
  %2630 = vmin.xlane.f32.xlu0 %v2629
  %v2631 = vpop.xlane.xlu0 %2630
  %v2632 = vsel %vm525, %v2612, inf
  %2633 = vmin.xlane.f32.xlu0 %v2632
  %v2634 = vpop.xlane.xlu0 %2633
  %v2635 = vsel %vm525, %v2613, inf
  %2636 = vmin.xlane.f32.xlu0 %v2635
  %v2637 = vpop.xlane.xlu0 %2636
  %vm2638 = vcmp.eq.f32.partialorder %v291, %v2616
  %vm2639 = vcmp.eq.f32.partialorder %v291, %v2619
  %vm2640 = vcmp.eq.f32.partialorder %v291, %v2622
  %vm2641 = vcmp.eq.f32.partialorder %v291, %v2625
  %vm2642 = vcmp.eq.f32.partialorder %v291, %v2628
  %vm2643 = vcmp.eq.f32.partialorder %v291, %v2631
  %vm2644 = vcmp.eq.f32.partialorder %v291, %v2634
  %vm2645 = vcmp.eq.f32.partialorder %v291, %v2637
  %vm2646 = vcmp.lt.f32.partialorder %v2576, 1e+29
  %vm2647 = vcmp.lt.f32.partialorder %v2579, 1e+29
  %vm2648 = vcmp.lt.f32.partialorder %v2582, 1e+29
  %vm2649 = vcmp.lt.f32.partialorder %v2585, 1e+29
  %vm2650 = vcmp.lt.f32.partialorder %v2588, 1e+29
  %vm2651 = vcmp.lt.f32.partialorder %v2591, 1e+29
  %vm2652 = vcmp.lt.f32.partialorder %v2594, 1e+29
  %vm2653 = vcmp.lt.f32.partialorder %v2597, 1e+29
  %v2654 = vsel %vm2638, 1e+30, %v2566
  %v2655 = vsel %vm2639, 1e+30, %v2567
  %v2656 = vsel %vm2640, 1e+30, %v2568
  %v2657 = vsel %vm2641, 1e+30, %v2569
  %v2658 = vsel %vm2642, 1e+30, %v2570
  %v2659 = vsel %vm2643, 1e+30, %v2571
  %v2660 = vsel %vm2644, 1e+30, %v2572
  %v2661 = vsel %vm2645, 1e+30, %v2573
  %v2662 = vsel %vm525, %v2654, inf
  %2663 = vmin.xlane.f32.xlu0 %v2662
  %v2664 = vpop.xlane.xlu0 %2663
  %v2665 = vsel %vm525, %v2655, inf
  %2666 = vmin.xlane.f32.xlu0 %v2665
  %v2667 = vpop.xlane.xlu0 %2666
  %v2668 = vsel %vm525, %v2656, inf
  %2669 = vmin.xlane.f32.xlu0 %v2668
  %v2670 = vpop.xlane.xlu0 %2669
  %v2671 = vsel %vm525, %v2657, inf
  %2672 = vmin.xlane.f32.xlu0 %v2671
  %v2673 = vpop.xlane.xlu0 %2672
  %v2674 = vsel %vm525, %v2658, inf
  %2675 = vmin.xlane.f32.xlu0 %v2674
  %v2676 = vpop.xlane.xlu0 %2675
  %v2677 = vsel %vm525, %v2659, inf
  %2678 = vmin.xlane.f32.xlu0 %v2677
  %v2679 = vpop.xlane.xlu0 %2678
  %v2680 = vsel %vm525, %v2660, inf
  %2681 = vmin.xlane.f32.xlu0 %v2680
  %v2682 = vpop.xlane.xlu0 %2681
  %v2683 = vsel %vm525, %v2661, inf
  %2684 = vmin.xlane.f32.xlu0 %v2683
  %v2685 = vpop.xlane.xlu0 %2684
  %vm2686 = vcmp.eq.f32.partialorder %v2654, %v2664
  %vm2687 = vcmp.eq.f32.partialorder %v2655, %v2667
  %vm2688 = vcmp.eq.f32.partialorder %v2656, %v2670
  %vm2689 = vcmp.eq.f32.partialorder %v2657, %v2673
  %vm2690 = vcmp.eq.f32.partialorder %v2658, %v2676
  %vm2691 = vcmp.eq.f32.partialorder %v2659, %v2679
  %vm2692 = vcmp.eq.f32.partialorder %v2660, %v2682
  %vm2693 = vcmp.eq.f32.partialorder %v2661, %v2685
  %v2694 = vsel %vm2686, %v291, 64.0
  %v2695 = vsel %vm2687, %v291, 64.0
  %v2696 = vsel %vm2688, %v291, 64.0
  %v2697 = vsel %vm2689, %v291, 64.0
  %v2698 = vsel %vm2690, %v291, 64.0
  %v2699 = vsel %vm2691, %v291, 64.0
  %v2700 = vsel %vm2692, %v291, 64.0
  %v2701 = vsel %vm2693, %v291, 64.0
  %v2702 = vsel %vm525, %v2694, inf
  %2703 = vmin.xlane.f32.xlu0 %v2702
  %v2704 = vpop.xlane.xlu0 %2703
  %v2705 = vsel %vm525, %v2695, inf
  %2706 = vmin.xlane.f32.xlu0 %v2705
  %v2707 = vpop.xlane.xlu0 %2706
  %v2708 = vsel %vm525, %v2696, inf
  %2709 = vmin.xlane.f32.xlu0 %v2708
  %v2710 = vpop.xlane.xlu0 %2709
  %v2711 = vsel %vm525, %v2697, inf
  %2712 = vmin.xlane.f32.xlu0 %v2711
  %v2713 = vpop.xlane.xlu0 %2712
  %v2714 = vsel %vm525, %v2698, inf
  %2715 = vmin.xlane.f32.xlu0 %v2714
  %v2716 = vpop.xlane.xlu0 %2715
  %v2717 = vsel %vm525, %v2699, inf
  %2718 = vmin.xlane.f32.xlu0 %v2717
  %v2719 = vpop.xlane.xlu0 %2718
  %v2720 = vsel %vm525, %v2700, inf
  %2721 = vmin.xlane.f32.xlu0 %v2720
  %v2722 = vpop.xlane.xlu0 %2721
  %v2723 = vsel %vm525, %v2701, inf
  %2724 = vmin.xlane.f32.xlu0 %v2723
  %v2725 = vpop.xlane.xlu0 %2724
  %vm2726 = vcmp.eq.f32.partialorder %v291, %v2704
  %vm2727 = vcmp.eq.f32.partialorder %v291, %v2707
  %vm2728 = vcmp.eq.f32.partialorder %v291, %v2710
  %vm2729 = vcmp.eq.f32.partialorder %v291, %v2713
  %vm2730 = vcmp.eq.f32.partialorder %v291, %v2716
  %vm2731 = vcmp.eq.f32.partialorder %v291, %v2719
  %vm2732 = vcmp.eq.f32.partialorder %v291, %v2722
  %vm2733 = vcmp.eq.f32.partialorder %v291, %v2725
  %vm2734 = vcmp.lt.f32.partialorder %v2664, 1e+29
  %vm2735 = vcmp.lt.f32.partialorder %v2667, 1e+29
  %vm2736 = vcmp.lt.f32.partialorder %v2670, 1e+29
  %vm2737 = vcmp.lt.f32.partialorder %v2673, 1e+29
  %vm2738 = vcmp.lt.f32.partialorder %v2676, 1e+29
  %vm2739 = vcmp.lt.f32.partialorder %v2679, 1e+29
  %vm2740 = vcmp.lt.f32.partialorder %v2682, 1e+29
  %vm2741 = vcmp.lt.f32.partialorder %v2685, 1e+29
  %v2742 = vsel %vm2726, 1e+30, %v2654
  %v2743 = vsel %vm2727, 1e+30, %v2655
  %v2744 = vsel %vm2728, 1e+30, %v2656
  %v2745 = vsel %vm2729, 1e+30, %v2657
  %v2746 = vsel %vm2730, 1e+30, %v2658
  %v2747 = vsel %vm2731, 1e+30, %v2659
  %v2748 = vsel %vm2732, 1e+30, %v2660
  %v2749 = vsel %vm2733, 1e+30, %v2661
  %v2750 = vsel %vm525, %v2742, inf
  %2751 = vmin.xlane.f32.xlu0 %v2750
  %v2752 = vpop.xlane.xlu0 %2751
  %v2753 = vsel %vm525, %v2743, inf
  %2754 = vmin.xlane.f32.xlu0 %v2753
  %v2755 = vpop.xlane.xlu0 %2754
  %v2756 = vsel %vm525, %v2744, inf
  %2757 = vmin.xlane.f32.xlu0 %v2756
  %v2758 = vpop.xlane.xlu0 %2757
  %v2759 = vsel %vm525, %v2745, inf
  %2760 = vmin.xlane.f32.xlu0 %v2759
  %v2761 = vpop.xlane.xlu0 %2760
  %v2762 = vsel %vm525, %v2746, inf
  %2763 = vmin.xlane.f32.xlu0 %v2762
  %v2764 = vpop.xlane.xlu0 %2763
  %v2765 = vsel %vm525, %v2747, inf
  %2766 = vmin.xlane.f32.xlu0 %v2765
  %v2767 = vpop.xlane.xlu0 %2766
  %v2768 = vsel %vm525, %v2748, inf
  %2769 = vmin.xlane.f32.xlu0 %v2768
  %v2770 = vpop.xlane.xlu0 %2769
  %v2771 = vsel %vm525, %v2749, inf
  %2772 = vmin.xlane.f32.xlu0 %v2771
  %v2773 = vpop.xlane.xlu0 %2772
  %vm2774 = vcmp.eq.f32.partialorder %v2742, %v2752
  %vm2775 = vcmp.eq.f32.partialorder %v2743, %v2755
  %vm2776 = vcmp.eq.f32.partialorder %v2744, %v2758
  %vm2777 = vcmp.eq.f32.partialorder %v2745, %v2761
  %vm2778 = vcmp.eq.f32.partialorder %v2746, %v2764
  %vm2779 = vcmp.eq.f32.partialorder %v2747, %v2767
  %vm2780 = vcmp.eq.f32.partialorder %v2748, %v2770
  %vm2781 = vcmp.eq.f32.partialorder %v2749, %v2773
  %v2782 = vsel %vm2774, %v291, 64.0
  %v2783 = vsel %vm2775, %v291, 64.0
  %v2784 = vsel %vm2776, %v291, 64.0
  %v2785 = vsel %vm2777, %v291, 64.0
  %v2786 = vsel %vm2778, %v291, 64.0
  %v2787 = vsel %vm2779, %v291, 64.0
  %v2788 = vsel %vm2780, %v291, 64.0
  %v2789 = vsel %vm2781, %v291, 64.0
  %v2790 = vsel %vm525, %v2782, inf
  %2791 = vmin.xlane.f32.xlu0 %v2790
  %v2792 = vpop.xlane.xlu0 %2791
  %v2793 = vsel %vm525, %v2783, inf
  %2794 = vmin.xlane.f32.xlu0 %v2793
  %v2795 = vpop.xlane.xlu0 %2794
  %v2796 = vsel %vm525, %v2784, inf
  %2797 = vmin.xlane.f32.xlu0 %v2796
  %v2798 = vpop.xlane.xlu0 %2797
  %v2799 = vsel %vm525, %v2785, inf
  %2800 = vmin.xlane.f32.xlu0 %v2799
  %v2801 = vpop.xlane.xlu0 %2800
  %v2802 = vsel %vm525, %v2786, inf
  %2803 = vmin.xlane.f32.xlu0 %v2802
  %v2804 = vpop.xlane.xlu0 %2803
  %v2805 = vsel %vm525, %v2787, inf
  %2806 = vmin.xlane.f32.xlu0 %v2805
  %v2807 = vpop.xlane.xlu0 %2806
  %v2808 = vsel %vm525, %v2788, inf
  %2809 = vmin.xlane.f32.xlu0 %v2808
  %v2810 = vpop.xlane.xlu0 %2809
  %v2811 = vsel %vm525, %v2789, inf
  %2812 = vmin.xlane.f32.xlu0 %v2811
  %v2813 = vpop.xlane.xlu0 %2812
  %vm2814 = vcmp.eq.f32.partialorder %v291, %v2792
  %vm2815 = vcmp.eq.f32.partialorder %v291, %v2795
  %vm2816 = vcmp.eq.f32.partialorder %v291, %v2798
  %vm2817 = vcmp.eq.f32.partialorder %v291, %v2801
  %vm2818 = vcmp.eq.f32.partialorder %v291, %v2804
  %vm2819 = vcmp.eq.f32.partialorder %v291, %v2807
  %vm2820 = vcmp.eq.f32.partialorder %v291, %v2810
  %vm2821 = vcmp.eq.f32.partialorder %v291, %v2813
  %vm2822 = vcmp.lt.f32.partialorder %v2752, 1e+29
  %vm2823 = vcmp.lt.f32.partialorder %v2755, 1e+29
  %vm2824 = vcmp.lt.f32.partialorder %v2758, 1e+29
  %vm2825 = vcmp.lt.f32.partialorder %v2761, 1e+29
  %vm2826 = vcmp.lt.f32.partialorder %v2764, 1e+29
  %vm2827 = vcmp.lt.f32.partialorder %v2767, 1e+29
  %vm2828 = vcmp.lt.f32.partialorder %v2770, 1e+29
  %vm2829 = vcmp.lt.f32.partialorder %v2773, 1e+29
  %v2830 = vsel %vm2814, 1e+30, %v2742
  %v2831 = vsel %vm2815, 1e+30, %v2743
  %v2832 = vsel %vm2816, 1e+30, %v2744
  %v2833 = vsel %vm2817, 1e+30, %v2745
  %v2834 = vsel %vm2818, 1e+30, %v2746
  %v2835 = vsel %vm2819, 1e+30, %v2747
  %v2836 = vsel %vm2820, 1e+30, %v2748
  %v2837 = vsel %vm2821, 1e+30, %v2749
  %v2838 = vsel %vm525, %v2830, inf
  %2839 = vmin.xlane.f32.xlu0 %v2838
  %v2840 = vpop.xlane.xlu0 %2839
  %v2841 = vsel %vm525, %v2831, inf
  %2842 = vmin.xlane.f32.xlu0 %v2841
  %v2843 = vpop.xlane.xlu0 %2842
  %v2844 = vsel %vm525, %v2832, inf
  %2845 = vmin.xlane.f32.xlu0 %v2844
  %v2846 = vpop.xlane.xlu0 %2845
  %v2847 = vsel %vm525, %v2833, inf
  %2848 = vmin.xlane.f32.xlu0 %v2847
  %v2849 = vpop.xlane.xlu0 %2848
  %v2850 = vsel %vm525, %v2834, inf
  %2851 = vmin.xlane.f32.xlu0 %v2850
  %v2852 = vpop.xlane.xlu0 %2851
  %v2853 = vsel %vm525, %v2835, inf
  %2854 = vmin.xlane.f32.xlu0 %v2853
  %v2855 = vpop.xlane.xlu0 %2854
  %v2856 = vsel %vm525, %v2836, inf
  %2857 = vmin.xlane.f32.xlu0 %v2856
  %v2858 = vpop.xlane.xlu0 %2857
  %v2859 = vsel %vm525, %v2837, inf
  %2860 = vmin.xlane.f32.xlu0 %v2859
  %v2861 = vpop.xlane.xlu0 %2860
  %vm2862 = vcmp.eq.f32.partialorder %v2830, %v2840
  %vm2863 = vcmp.eq.f32.partialorder %v2831, %v2843
  %vm2864 = vcmp.eq.f32.partialorder %v2832, %v2846
  %vm2865 = vcmp.eq.f32.partialorder %v2833, %v2849
  %vm2866 = vcmp.eq.f32.partialorder %v2834, %v2852
  %vm2867 = vcmp.eq.f32.partialorder %v2835, %v2855
  %vm2868 = vcmp.eq.f32.partialorder %v2836, %v2858
  %vm2869 = vcmp.eq.f32.partialorder %v2837, %v2861
  %v2870 = vsel %vm2862, %v291, 64.0
  %v2871 = vsel %vm2863, %v291, 64.0
  %v2872 = vsel %vm2864, %v291, 64.0
  %v2873 = vsel %vm2865, %v291, 64.0
  %v2874 = vsel %vm2866, %v291, 64.0
  %v2875 = vsel %vm2867, %v291, 64.0
  %v2876 = vsel %vm2868, %v291, 64.0
  %v2877 = vsel %vm2869, %v291, 64.0
  %v2878 = vsel %vm525, %v2870, inf
  %2879 = vmin.xlane.f32.xlu0 %v2878
  %v2880 = vpop.xlane.xlu0 %2879
  %v2881 = vsel %vm525, %v2871, inf
  %2882 = vmin.xlane.f32.xlu0 %v2881
  %v2883 = vpop.xlane.xlu0 %2882
  %v2884 = vsel %vm525, %v2872, inf
  %2885 = vmin.xlane.f32.xlu0 %v2884
  %v2886 = vpop.xlane.xlu0 %2885
  %v2887 = vsel %vm525, %v2873, inf
  %2888 = vmin.xlane.f32.xlu0 %v2887
  %v2889 = vpop.xlane.xlu0 %2888
  %v2890 = vsel %vm525, %v2874, inf
  %2891 = vmin.xlane.f32.xlu0 %v2890
  %v2892 = vpop.xlane.xlu0 %2891
  %v2893 = vsel %vm525, %v2875, inf
  %2894 = vmin.xlane.f32.xlu0 %v2893
  %v2895 = vpop.xlane.xlu0 %2894
  %v2896 = vsel %vm525, %v2876, inf
  %2897 = vmin.xlane.f32.xlu0 %v2896
  %v2898 = vpop.xlane.xlu0 %2897
  %v2899 = vsel %vm525, %v2877, inf
  %2900 = vmin.xlane.f32.xlu0 %v2899
  %v2901 = vpop.xlane.xlu0 %2900
  %vm2902 = vcmp.eq.f32.partialorder %v291, %v2880
  %vm2903 = vcmp.eq.f32.partialorder %v291, %v2883
  %vm2904 = vcmp.eq.f32.partialorder %v291, %v2886
  %vm2905 = vcmp.eq.f32.partialorder %v291, %v2889
  %vm2906 = vcmp.eq.f32.partialorder %v291, %v2892
  %vm2907 = vcmp.eq.f32.partialorder %v291, %v2895
  %vm2908 = vcmp.eq.f32.partialorder %v291, %v2898
  %vm2909 = vcmp.eq.f32.partialorder %v291, %v2901
  %vm2910 = vcmp.lt.f32.partialorder %v2840, 1e+29
  %vm2911 = vcmp.lt.f32.partialorder %v2843, 1e+29
  %vm2912 = vcmp.lt.f32.partialorder %v2846, 1e+29
  %vm2913 = vcmp.lt.f32.partialorder %v2849, 1e+29
  %vm2914 = vcmp.lt.f32.partialorder %v2852, 1e+29
  %vm2915 = vcmp.lt.f32.partialorder %v2855, 1e+29
  %vm2916 = vcmp.lt.f32.partialorder %v2858, 1e+29
  %vm2917 = vcmp.lt.f32.partialorder %v2861, 1e+29
  %v2918 = vsel %vm2902, 1e+30, %v2830
  %v2919 = vsel %vm2903, 1e+30, %v2831
  %v2920 = vsel %vm2904, 1e+30, %v2832
  %v2921 = vsel %vm2905, 1e+30, %v2833
  %v2922 = vsel %vm2906, 1e+30, %v2834
  %v2923 = vsel %vm2907, 1e+30, %v2835
  %v2924 = vsel %vm2908, 1e+30, %v2836
  %v2925 = vsel %vm2909, 1e+30, %v2837
  %v2926 = vsel %vm525, %v2918, inf
  %2927 = vmin.xlane.f32.xlu0 %v2926
  %v2928 = vpop.xlane.xlu0 %2927
  %v2929 = vsel %vm525, %v2919, inf
  %2930 = vmin.xlane.f32.xlu0 %v2929
  %v2931 = vpop.xlane.xlu0 %2930
  %v2932 = vsel %vm525, %v2920, inf
  %2933 = vmin.xlane.f32.xlu0 %v2932
  %v2934 = vpop.xlane.xlu0 %2933
  %v2935 = vsel %vm525, %v2921, inf
  %2936 = vmin.xlane.f32.xlu0 %v2935
  %v2937 = vpop.xlane.xlu0 %2936
  %v2938 = vsel %vm525, %v2922, inf
  %2939 = vmin.xlane.f32.xlu0 %v2938
  %v2940 = vpop.xlane.xlu0 %2939
  %v2941 = vsel %vm525, %v2923, inf
  %2942 = vmin.xlane.f32.xlu0 %v2941
  %v2943 = vpop.xlane.xlu0 %2942
  %v2944 = vsel %vm525, %v2924, inf
  %2945 = vmin.xlane.f32.xlu0 %v2944
  %v2946 = vpop.xlane.xlu0 %2945
  %v2947 = vsel %vm525, %v2925, inf
  %2948 = vmin.xlane.f32.xlu0 %v2947
  %v2949 = vpop.xlane.xlu0 %2948
  %vm2950 = vcmp.eq.f32.partialorder %v2918, %v2928
  %vm2951 = vcmp.eq.f32.partialorder %v2919, %v2931
  %vm2952 = vcmp.eq.f32.partialorder %v2920, %v2934
  %vm2953 = vcmp.eq.f32.partialorder %v2921, %v2937
  %vm2954 = vcmp.eq.f32.partialorder %v2922, %v2940
  %vm2955 = vcmp.eq.f32.partialorder %v2923, %v2943
  %vm2956 = vcmp.eq.f32.partialorder %v2924, %v2946
  %vm2957 = vcmp.eq.f32.partialorder %v2925, %v2949
  %v2958 = vsel %vm2950, %v291, 64.0
  %v2959 = vsel %vm2951, %v291, 64.0
  %v2960 = vsel %vm2952, %v291, 64.0
  %v2961 = vsel %vm2953, %v291, 64.0
  %v2962 = vsel %vm2954, %v291, 64.0
  %v2963 = vsel %vm2955, %v291, 64.0
  %v2964 = vsel %vm2956, %v291, 64.0
  %v2965 = vsel %vm2957, %v291, 64.0
  %v2966 = vsel %vm525, %v2958, inf
  %2967 = vmin.xlane.f32.xlu0 %v2966
  %v2968 = vpop.xlane.xlu0 %2967
  %v2969 = vsel %vm525, %v2959, inf
  %2970 = vmin.xlane.f32.xlu0 %v2969
  %v2971 = vpop.xlane.xlu0 %2970
  %v2972 = vsel %vm525, %v2960, inf
  %2973 = vmin.xlane.f32.xlu0 %v2972
  %v2974 = vpop.xlane.xlu0 %2973
  %v2975 = vsel %vm525, %v2961, inf
  %2976 = vmin.xlane.f32.xlu0 %v2975
  %v2977 = vpop.xlane.xlu0 %2976
  %v2978 = vsel %vm525, %v2962, inf
  %2979 = vmin.xlane.f32.xlu0 %v2978
  %v2980 = vpop.xlane.xlu0 %2979
  %v2981 = vsel %vm525, %v2963, inf
  %2982 = vmin.xlane.f32.xlu0 %v2981
  %v2983 = vpop.xlane.xlu0 %2982
  %v2984 = vsel %vm525, %v2964, inf
  %2985 = vmin.xlane.f32.xlu0 %v2984
  %v2986 = vpop.xlane.xlu0 %2985
  %v2987 = vsel %vm525, %v2965, inf
  %2988 = vmin.xlane.f32.xlu0 %v2987
  %v2989 = vpop.xlane.xlu0 %2988
  %vm2990 = vcmp.eq.f32.partialorder %v291, %v2968
  %vm2991 = vcmp.eq.f32.partialorder %v291, %v2971
  %vm2992 = vcmp.eq.f32.partialorder %v291, %v2974
  %vm2993 = vcmp.eq.f32.partialorder %v291, %v2977
  %vm2994 = vcmp.eq.f32.partialorder %v291, %v2980
  %vm2995 = vcmp.eq.f32.partialorder %v291, %v2983
  %vm2996 = vcmp.eq.f32.partialorder %v291, %v2986
  %vm2997 = vcmp.eq.f32.partialorder %v291, %v2989
  %vm2998 = vcmp.lt.f32.partialorder %v2928, 1e+29
  %vm2999 = vcmp.lt.f32.partialorder %v2931, 1e+29
  %vm3000 = vcmp.lt.f32.partialorder %v2934, 1e+29
  %vm3001 = vcmp.lt.f32.partialorder %v2937, 1e+29
  %vm3002 = vcmp.lt.f32.partialorder %v2940, 1e+29
  %vm3003 = vcmp.lt.f32.partialorder %v2943, 1e+29
  %vm3004 = vcmp.lt.f32.partialorder %v2946, 1e+29
  %vm3005 = vcmp.lt.f32.partialorder %v2949, 1e+29
  %v3006 = vsel %vm2990, 1e+30, %v2918
  %v3007 = vsel %vm2991, 1e+30, %v2919
  %v3008 = vsel %vm2992, 1e+30, %v2920
  %v3009 = vsel %vm2993, 1e+30, %v2921
  %v3010 = vsel %vm2994, 1e+30, %v2922
  %v3011 = vsel %vm2995, 1e+30, %v2923
  %v3012 = vsel %vm2996, 1e+30, %v2924
  %v3013 = vsel %vm2997, 1e+30, %v2925
  %v3014 = vsel %vm525, %v3006, inf
  %3015 = vmin.xlane.f32.xlu0 %v3014
  %v3016 = vpop.xlane.xlu0 %3015
  %v3017 = vsel %vm525, %v3007, inf
  %3018 = vmin.xlane.f32.xlu0 %v3017
  %v3019 = vpop.xlane.xlu0 %3018
  %v3020 = vsel %vm525, %v3008, inf
  %3021 = vmin.xlane.f32.xlu0 %v3020
  %v3022 = vpop.xlane.xlu0 %3021
  %v3023 = vsel %vm525, %v3009, inf
  %3024 = vmin.xlane.f32.xlu0 %v3023
  %v3025 = vpop.xlane.xlu0 %3024
  %v3026 = vsel %vm525, %v3010, inf
  %3027 = vmin.xlane.f32.xlu0 %v3026
  %v3028 = vpop.xlane.xlu0 %3027
  %v3029 = vsel %vm525, %v3011, inf
  %3030 = vmin.xlane.f32.xlu0 %v3029
  %v3031 = vpop.xlane.xlu0 %3030
  %v3032 = vsel %vm525, %v3012, inf
  %3033 = vmin.xlane.f32.xlu0 %v3032
  %v3034 = vpop.xlane.xlu0 %3033
  %v3035 = vsel %vm525, %v3013, inf
  %3036 = vmin.xlane.f32.xlu0 %v3035
  %v3037 = vpop.xlane.xlu0 %3036
  %vm3038 = vcmp.eq.f32.partialorder %v3006, %v3016
  %vm3039 = vcmp.eq.f32.partialorder %v3007, %v3019
  %vm3040 = vcmp.eq.f32.partialorder %v3008, %v3022
  %vm3041 = vcmp.eq.f32.partialorder %v3009, %v3025
  %vm3042 = vcmp.eq.f32.partialorder %v3010, %v3028
  %vm3043 = vcmp.eq.f32.partialorder %v3011, %v3031
  %vm3044 = vcmp.eq.f32.partialorder %v3012, %v3034
  %vm3045 = vcmp.eq.f32.partialorder %v3013, %v3037
  %v3046 = vsel %vm3038, %v291, 64.0
  %v3047 = vsel %vm3039, %v291, 64.0
  %v3048 = vsel %vm3040, %v291, 64.0
  %v3049 = vsel %vm3041, %v291, 64.0
  %v3050 = vsel %vm3042, %v291, 64.0
  %v3051 = vsel %vm3043, %v291, 64.0
  %v3052 = vsel %vm3044, %v291, 64.0
  %v3053 = vsel %vm3045, %v291, 64.0
  %v3054 = vsel %vm525, %v3046, inf
  %3055 = vmin.xlane.f32.xlu0 %v3054
  %v3056 = vpop.xlane.xlu0 %3055
  %v3057 = vsel %vm525, %v3047, inf
  %3058 = vmin.xlane.f32.xlu0 %v3057
  %v3059 = vpop.xlane.xlu0 %3058
  %v3060 = vsel %vm525, %v3048, inf
  %3061 = vmin.xlane.f32.xlu0 %v3060
  %v3062 = vpop.xlane.xlu0 %3061
  %v3063 = vsel %vm525, %v3049, inf
  %3064 = vmin.xlane.f32.xlu0 %v3063
  %v3065 = vpop.xlane.xlu0 %3064
  %v3066 = vsel %vm525, %v3050, inf
  %3067 = vmin.xlane.f32.xlu0 %v3066
  %v3068 = vpop.xlane.xlu0 %3067
  %v3069 = vsel %vm525, %v3051, inf
  %3070 = vmin.xlane.f32.xlu0 %v3069
  %v3071 = vpop.xlane.xlu0 %3070
  %v3072 = vsel %vm525, %v3052, inf
  %3073 = vmin.xlane.f32.xlu0 %v3072
  %v3074 = vpop.xlane.xlu0 %3073
  %v3075 = vsel %vm525, %v3053, inf
  %3076 = vmin.xlane.f32.xlu0 %v3075
  %v3077 = vpop.xlane.xlu0 %3076
  %vm3078 = vcmp.eq.f32.partialorder %v291, %v3056
  %vm3079 = vcmp.eq.f32.partialorder %v291, %v3059
  %vm3080 = vcmp.eq.f32.partialorder %v291, %v3062
  %vm3081 = vcmp.eq.f32.partialorder %v291, %v3065
  %vm3082 = vcmp.eq.f32.partialorder %v291, %v3068
  %vm3083 = vcmp.eq.f32.partialorder %v291, %v3071
  %vm3084 = vcmp.eq.f32.partialorder %v291, %v3074
  %vm3085 = vcmp.eq.f32.partialorder %v291, %v3077
  %vm3086 = vcmp.lt.f32.partialorder %v3016, 1e+29
  %vm3087 = vcmp.lt.f32.partialorder %v3019, 1e+29
  %vm3088 = vcmp.lt.f32.partialorder %v3022, 1e+29
  %vm3089 = vcmp.lt.f32.partialorder %v3025, 1e+29
  %vm3090 = vcmp.lt.f32.partialorder %v3028, 1e+29
  %vm3091 = vcmp.lt.f32.partialorder %v3031, 1e+29
  %vm3092 = vcmp.lt.f32.partialorder %v3034, 1e+29
  %vm3093 = vcmp.lt.f32.partialorder %v3037, 1e+29
  %v3094 = vsel %vm2462, 1, 0
  %v3095 = vsel %vm2463, 1, 0
  %v3096 = vsel %vm2464, 1, 0
  %v3097 = vsel %vm2465, 1, 0
  %v3098 = vsel %vm2466, 1, 0
  %v3099 = vsel %vm2467, 1, 0
  %v3100 = vsel %vm2468, 1, 0
  %v3101 = vsel %vm2469, 1, 0
  %v3102 = vcvt.s32.f32 %v3094
  %v3103 = vcvt.s32.f32 %v3095
  %v3104 = vcvt.s32.f32 %v3096
  %v3105 = vcvt.s32.f32 %v3097
  %v3106 = vcvt.s32.f32 %v3098
  %v3107 = vcvt.s32.f32 %v3099
  %v3108 = vcvt.s32.f32 %v3100
  %v3109 = vcvt.s32.f32 %v3101
  %v3111 = vsel %vm525, %v3102, 0
  %v3114 = vsel %vm525, %v3103, 0
  %v3117 = vsel %vm525, %v3104, 0
  %v3120 = vsel %vm525, %v3105, 0
  %v3123 = vsel %vm525, %v3106, 0
  %v3126 = vsel %vm525, %v3107, 0
  %v3129 = vsel %vm525, %v3108, 0
  %v3132 = vsel %vm525, %v3109, 0
  %3134 = vmatpush.msra.mxu0 0.0
  %3135 = vmatpush.msra.mxu0 0.0
  %3136 = vmatpush.msra.mxu0 0.0
  %3137 = vmatpush.msra.mxu0 0.0
  %3138 = vmatpush.msra.mxu0 0.0
  %3139 = vmatpush.msra.mxu0 0.0
  %3140 = vmatpush.msra.mxu0 0.0
  %3141 = vmatpush.msra.mxu0 0.0
  %3142 = vmatpush.msra.mxu0 %v2278
  %3143 = vmatpush.msra.mxu0 %v2275
  %3144 = vmatpush.msra.mxu0 %v2272
  %3145 = vmatpush.msra.mxu0 %v2269
  %3146 = vmatpush.msra.mxu0 %v2266
  %3147 = vmatpush.msra.mxu0 %v2263
  %3148 = vmatpush.msra.mxu0 %v2260
  %3149 = vmatpush.msra.mxu0 %v2257
  %3150 = vmatmul.f32.gmra.mxu0 %v3111
  %v3151 = vpop.f32.mrf.mxu0
  %v3152 = vadd.f32 0.0, %v3151
  %3153 = vmatmul.f32.gmra.mxu0 %v3114
  %v3154 = vpop.f32.mrf.mxu0
  %v3155 = vadd.f32 0.0, %v3154
  %3156 = vmatmul.f32.gmra.mxu0 %v3117
  %v3157 = vpop.f32.mrf.mxu0
  %v3158 = vadd.f32 0.0, %v3157
  %3159 = vmatmul.f32.gmra.mxu0 %v3120
  %v3160 = vpop.f32.mrf.mxu0
  %v3161 = vadd.f32 0.0, %v3160
  %3162 = vmatmul.f32.gmra.mxu0 %v3123
  %v3163 = vpop.f32.mrf.mxu0
  %v3164 = vadd.f32 0.0, %v3163
  %3165 = vmatmul.f32.gmra.mxu0 %v3126
  %v3166 = vpop.f32.mrf.mxu0
  %v3167 = vadd.f32 0.0, %v3166
  %3168 = vmatmul.f32.gmra.mxu0 %v3129
  %v3169 = vpop.f32.mrf.mxu0
  %v3170 = vadd.f32 0.0, %v3169
  %3171 = vmatmul.f32.gmra.mxu0 %v3132
  %v3172 = vpop.f32.mrf.mxu0
  %v3173 = vadd.f32 0.0, %v3172
  %3174 = vdwg.mxu0
  %v3175 = vsel %vm2550, 1, 0
  %v3176 = vsel %vm2551, 1, 0
  %v3177 = vsel %vm2552, 1, 0
  %v3178 = vsel %vm2553, 1, 0
  %v3179 = vsel %vm2554, 1, 0
  %v3180 = vsel %vm2555, 1, 0
  %v3181 = vsel %vm2556, 1, 0
  %v3182 = vsel %vm2557, 1, 0
  %v3183 = vcvt.s32.f32 %v3175
  %v3184 = vcvt.s32.f32 %v3176
  %v3185 = vcvt.s32.f32 %v3177
  %v3186 = vcvt.s32.f32 %v3178
  %v3187 = vcvt.s32.f32 %v3179
  %v3188 = vcvt.s32.f32 %v3180
  %v3189 = vcvt.s32.f32 %v3181
  %v3190 = vcvt.s32.f32 %v3182
  %v3192 = vsel %vm525, %v3183, 0
  %v3195 = vsel %vm525, %v3184, 0
  %v3198 = vsel %vm525, %v3185, 0
  %v3201 = vsel %vm525, %v3186, 0
  %v3204 = vsel %vm525, %v3187, 0
  %v3207 = vsel %vm525, %v3188, 0
  %v3210 = vsel %vm525, %v3189, 0
  %v3213 = vsel %vm525, %v3190, 0
  %3215 = vmatpush.msra.mxu0 0.0
  %3216 = vmatpush.msra.mxu0 0.0
  %3217 = vmatpush.msra.mxu0 0.0
  %3218 = vmatpush.msra.mxu0 0.0
  %3219 = vmatpush.msra.mxu0 0.0
  %3220 = vmatpush.msra.mxu0 0.0
  %3221 = vmatpush.msra.mxu0 0.0
  %3222 = vmatpush.msra.mxu0 0.0
  %3223 = vmatpush.msra.mxu0 %v2278
  %3224 = vmatpush.msra.mxu0 %v2275
  %3225 = vmatpush.msra.mxu0 %v2272
  %3226 = vmatpush.msra.mxu0 %v2269
  %3227 = vmatpush.msra.mxu0 %v2266
  %3228 = vmatpush.msra.mxu0 %v2263
  %3229 = vmatpush.msra.mxu0 %v2260
  %3230 = vmatpush.msra.mxu0 %v2257
  %3231 = vmatmul.f32.gmra.mxu0 %v3192
  %v3232 = vpop.f32.mrf.mxu0
  %v3233 = vadd.f32 0.0, %v3232
  %3234 = vmatmul.f32.gmra.mxu0 %v3195
  %v3235 = vpop.f32.mrf.mxu0
  %v3236 = vadd.f32 0.0, %v3235
  %3237 = vmatmul.f32.gmra.mxu0 %v3198
  %v3238 = vpop.f32.mrf.mxu0
  %v3239 = vadd.f32 0.0, %v3238
  %3240 = vmatmul.f32.gmra.mxu0 %v3201
  %v3241 = vpop.f32.mrf.mxu0
  %v3242 = vadd.f32 0.0, %v3241
  %3243 = vmatmul.f32.gmra.mxu0 %v3204
  %v3244 = vpop.f32.mrf.mxu0
  %v3245 = vadd.f32 0.0, %v3244
  %3246 = vmatmul.f32.gmra.mxu0 %v3207
  %v3247 = vpop.f32.mrf.mxu0
  %v3248 = vadd.f32 0.0, %v3247
  %3249 = vmatmul.f32.gmra.mxu0 %v3210
  %v3250 = vpop.f32.mrf.mxu0
  %v3251 = vadd.f32 0.0, %v3250
  %3252 = vmatmul.f32.gmra.mxu0 %v3213
  %v3253 = vpop.f32.mrf.mxu0
  %v3254 = vadd.f32 0.0, %v3253
  %3255 = vdwg.mxu0
  %v3256 = vsel %vm2638, 1, 0
  %v3257 = vsel %vm2639, 1, 0
  %v3258 = vsel %vm2640, 1, 0
  %v3259 = vsel %vm2641, 1, 0
  %v3260 = vsel %vm2642, 1, 0
  %v3261 = vsel %vm2643, 1, 0
  %v3262 = vsel %vm2644, 1, 0
  %v3263 = vsel %vm2645, 1, 0
  %v3264 = vcvt.s32.f32 %v3256
  %v3265 = vcvt.s32.f32 %v3257
  %v3266 = vcvt.s32.f32 %v3258
  %v3267 = vcvt.s32.f32 %v3259
  %v3268 = vcvt.s32.f32 %v3260
  %v3269 = vcvt.s32.f32 %v3261
  %v3270 = vcvt.s32.f32 %v3262
  %v3271 = vcvt.s32.f32 %v3263
  %v3273 = vsel %vm525, %v3264, 0
  %v3276 = vsel %vm525, %v3265, 0
  %v3279 = vsel %vm525, %v3266, 0
  %v3282 = vsel %vm525, %v3267, 0
  %v3285 = vsel %vm525, %v3268, 0
  %v3288 = vsel %vm525, %v3269, 0
  %v3291 = vsel %vm525, %v3270, 0
  %v3294 = vsel %vm525, %v3271, 0
  %3296 = vmatpush.msra.mxu0 0.0
  %3297 = vmatpush.msra.mxu0 0.0
  %3298 = vmatpush.msra.mxu0 0.0
  %3299 = vmatpush.msra.mxu0 0.0
  %3300 = vmatpush.msra.mxu0 0.0
  %3301 = vmatpush.msra.mxu0 0.0
  %3302 = vmatpush.msra.mxu0 0.0
  %3303 = vmatpush.msra.mxu0 0.0
  %3304 = vmatpush.msra.mxu0 %v2278
  %3305 = vmatpush.msra.mxu0 %v2275
  %3306 = vmatpush.msra.mxu0 %v2272
  %3307 = vmatpush.msra.mxu0 %v2269
  %3308 = vmatpush.msra.mxu0 %v2266
  %3309 = vmatpush.msra.mxu0 %v2263
  %3310 = vmatpush.msra.mxu0 %v2260
  %3311 = vmatpush.msra.mxu0 %v2257
  %3312 = vmatmul.f32.gmra.mxu0 %v3273
  %v3313 = vpop.f32.mrf.mxu0
  %v3314 = vadd.f32 0.0, %v3313
  %3315 = vmatmul.f32.gmra.mxu0 %v3276
  %v3316 = vpop.f32.mrf.mxu0
  %v3317 = vadd.f32 0.0, %v3316
  %3318 = vmatmul.f32.gmra.mxu0 %v3279
  %v3319 = vpop.f32.mrf.mxu0
  %v3320 = vadd.f32 0.0, %v3319
  %3321 = vmatmul.f32.gmra.mxu0 %v3282
  %v3322 = vpop.f32.mrf.mxu0
  %v3323 = vadd.f32 0.0, %v3322
  %3324 = vmatmul.f32.gmra.mxu0 %v3285
  %v3325 = vpop.f32.mrf.mxu0
  %v3326 = vadd.f32 0.0, %v3325
  %3327 = vmatmul.f32.gmra.mxu0 %v3288
  %v3328 = vpop.f32.mrf.mxu0
  %v3329 = vadd.f32 0.0, %v3328
  %3330 = vmatmul.f32.gmra.mxu0 %v3291
  %v3331 = vpop.f32.mrf.mxu0
  %v3332 = vadd.f32 0.0, %v3331
  %3333 = vmatmul.f32.gmra.mxu0 %v3294
  %v3334 = vpop.f32.mrf.mxu0
  %v3335 = vadd.f32 0.0, %v3334
  %3336 = vdwg.mxu0
  %v3337 = vsel %vm2726, 1, 0
  %v3338 = vsel %vm2727, 1, 0
  %v3339 = vsel %vm2728, 1, 0
  %v3340 = vsel %vm2729, 1, 0
  %v3341 = vsel %vm2730, 1, 0
  %v3342 = vsel %vm2731, 1, 0
  %v3343 = vsel %vm2732, 1, 0
  %v3344 = vsel %vm2733, 1, 0
  %v3345 = vcvt.s32.f32 %v3337
  %v3346 = vcvt.s32.f32 %v3338
  %v3347 = vcvt.s32.f32 %v3339
  %v3348 = vcvt.s32.f32 %v3340
  %v3349 = vcvt.s32.f32 %v3341
  %v3350 = vcvt.s32.f32 %v3342
  %v3351 = vcvt.s32.f32 %v3343
  %v3352 = vcvt.s32.f32 %v3344
  %v3354 = vsel %vm525, %v3345, 0
  %v3357 = vsel %vm525, %v3346, 0
  %v3360 = vsel %vm525, %v3347, 0
  %v3363 = vsel %vm525, %v3348, 0
  %v3366 = vsel %vm525, %v3349, 0
  %v3369 = vsel %vm525, %v3350, 0
  %v3372 = vsel %vm525, %v3351, 0
  %v3375 = vsel %vm525, %v3352, 0
  %3377 = vmatpush.msra.mxu0 0.0
  %3378 = vmatpush.msra.mxu0 0.0
  %3379 = vmatpush.msra.mxu0 0.0
  %3380 = vmatpush.msra.mxu0 0.0
  %3381 = vmatpush.msra.mxu0 0.0
  %3382 = vmatpush.msra.mxu0 0.0
  %3383 = vmatpush.msra.mxu0 0.0
  %3384 = vmatpush.msra.mxu0 0.0
  %3385 = vmatpush.msra.mxu0 %v2278
  %3386 = vmatpush.msra.mxu0 %v2275
  %3387 = vmatpush.msra.mxu0 %v2272
  %3388 = vmatpush.msra.mxu0 %v2269
  %3389 = vmatpush.msra.mxu0 %v2266
  %3390 = vmatpush.msra.mxu0 %v2263
  %3391 = vmatpush.msra.mxu0 %v2260
  %3392 = vmatpush.msra.mxu0 %v2257
  %3393 = vmatmul.f32.gmra.mxu0 %v3354
  %v3394 = vpop.f32.mrf.mxu0
  %v3395 = vadd.f32 0.0, %v3394
  %3396 = vmatmul.f32.gmra.mxu0 %v3357
  %v3397 = vpop.f32.mrf.mxu0
  %v3398 = vadd.f32 0.0, %v3397
  %3399 = vmatmul.f32.gmra.mxu0 %v3360
  %v3400 = vpop.f32.mrf.mxu0
  %v3401 = vadd.f32 0.0, %v3400
  %3402 = vmatmul.f32.gmra.mxu0 %v3363
  %v3403 = vpop.f32.mrf.mxu0
  %v3404 = vadd.f32 0.0, %v3403
  %3405 = vmatmul.f32.gmra.mxu0 %v3366
  %v3406 = vpop.f32.mrf.mxu0
  %v3407 = vadd.f32 0.0, %v3406
  %3408 = vmatmul.f32.gmra.mxu0 %v3369
  %v3409 = vpop.f32.mrf.mxu0
  %v3410 = vadd.f32 0.0, %v3409
  %3411 = vmatmul.f32.gmra.mxu0 %v3372
  %v3412 = vpop.f32.mrf.mxu0
  %v3413 = vadd.f32 0.0, %v3412
  %3414 = vmatmul.f32.gmra.mxu0 %v3375
  %v3415 = vpop.f32.mrf.mxu0
  %v3416 = vadd.f32 0.0, %v3415
  %3417 = vdwg.mxu0
  %v3418 = vsel %vm2814, 1, 0
  %v3419 = vsel %vm2815, 1, 0
  %v3420 = vsel %vm2816, 1, 0
  %v3421 = vsel %vm2817, 1, 0
  %v3422 = vsel %vm2818, 1, 0
  %v3423 = vsel %vm2819, 1, 0
  %v3424 = vsel %vm2820, 1, 0
  %v3425 = vsel %vm2821, 1, 0
  %v3426 = vcvt.s32.f32 %v3418
  %v3427 = vcvt.s32.f32 %v3419
  %v3428 = vcvt.s32.f32 %v3420
  %v3429 = vcvt.s32.f32 %v3421
  %v3430 = vcvt.s32.f32 %v3422
  %v3431 = vcvt.s32.f32 %v3423
  %v3432 = vcvt.s32.f32 %v3424
  %v3433 = vcvt.s32.f32 %v3425
  %v3435 = vsel %vm525, %v3426, 0
  %v3438 = vsel %vm525, %v3427, 0
  %v3441 = vsel %vm525, %v3428, 0
  %v3444 = vsel %vm525, %v3429, 0
  %v3447 = vsel %vm525, %v3430, 0
  %v3450 = vsel %vm525, %v3431, 0
  %v3453 = vsel %vm525, %v3432, 0
  %v3456 = vsel %vm525, %v3433, 0
  %3458 = vmatpush.msra.mxu0 0.0
  %3459 = vmatpush.msra.mxu0 0.0
  %3460 = vmatpush.msra.mxu0 0.0
  %3461 = vmatpush.msra.mxu0 0.0
  %3462 = vmatpush.msra.mxu0 0.0
  %3463 = vmatpush.msra.mxu0 0.0
  %3464 = vmatpush.msra.mxu0 0.0
  %3465 = vmatpush.msra.mxu0 0.0
  %3466 = vmatpush.msra.mxu0 %v2278
  %3467 = vmatpush.msra.mxu0 %v2275
  %3468 = vmatpush.msra.mxu0 %v2272
  %3469 = vmatpush.msra.mxu0 %v2269
  %3470 = vmatpush.msra.mxu0 %v2266
  %3471 = vmatpush.msra.mxu0 %v2263
  %3472 = vmatpush.msra.mxu0 %v2260
  %3473 = vmatpush.msra.mxu0 %v2257
  %3474 = vmatmul.f32.gmra.mxu0 %v3435
  %v3475 = vpop.f32.mrf.mxu0
  %v3476 = vadd.f32 0.0, %v3475
  %3477 = vmatmul.f32.gmra.mxu0 %v3438
  %v3478 = vpop.f32.mrf.mxu0
  %v3479 = vadd.f32 0.0, %v3478
  %3480 = vmatmul.f32.gmra.mxu0 %v3441
  %v3481 = vpop.f32.mrf.mxu0
  %v3482 = vadd.f32 0.0, %v3481
  %3483 = vmatmul.f32.gmra.mxu0 %v3444
  %v3484 = vpop.f32.mrf.mxu0
  %v3485 = vadd.f32 0.0, %v3484
  %3486 = vmatmul.f32.gmra.mxu0 %v3447
  %v3487 = vpop.f32.mrf.mxu0
  %v3488 = vadd.f32 0.0, %v3487
  %3489 = vmatmul.f32.gmra.mxu0 %v3450
  %v3490 = vpop.f32.mrf.mxu0
  %v3491 = vadd.f32 0.0, %v3490
  %3492 = vmatmul.f32.gmra.mxu0 %v3453
  %v3493 = vpop.f32.mrf.mxu0
  %v3494 = vadd.f32 0.0, %v3493
  %3495 = vmatmul.f32.gmra.mxu0 %v3456
  %v3496 = vpop.f32.mrf.mxu0
  %v3497 = vadd.f32 0.0, %v3496
  %3498 = vdwg.mxu0
  %v3499 = vsel %vm2902, 1, 0
  %v3500 = vsel %vm2903, 1, 0
  %v3501 = vsel %vm2904, 1, 0
  %v3502 = vsel %vm2905, 1, 0
  %v3503 = vsel %vm2906, 1, 0
  %v3504 = vsel %vm2907, 1, 0
  %v3505 = vsel %vm2908, 1, 0
  %v3506 = vsel %vm2909, 1, 0
  %v3507 = vcvt.s32.f32 %v3499
  %v3508 = vcvt.s32.f32 %v3500
  %v3509 = vcvt.s32.f32 %v3501
  %v3510 = vcvt.s32.f32 %v3502
  %v3511 = vcvt.s32.f32 %v3503
  %v3512 = vcvt.s32.f32 %v3504
  %v3513 = vcvt.s32.f32 %v3505
  %v3514 = vcvt.s32.f32 %v3506
  %v3516 = vsel %vm525, %v3507, 0
  %v3519 = vsel %vm525, %v3508, 0
  %v3522 = vsel %vm525, %v3509, 0
  %v3525 = vsel %vm525, %v3510, 0
  %v3528 = vsel %vm525, %v3511, 0
  %v3531 = vsel %vm525, %v3512, 0
  %v3534 = vsel %vm525, %v3513, 0
  %v3537 = vsel %vm525, %v3514, 0
  %3539 = vmatpush.msra.mxu0 0.0
  %3540 = vmatpush.msra.mxu0 0.0
  %3541 = vmatpush.msra.mxu0 0.0
  %3542 = vmatpush.msra.mxu0 0.0
  %3543 = vmatpush.msra.mxu0 0.0
  %3544 = vmatpush.msra.mxu0 0.0
  %3545 = vmatpush.msra.mxu0 0.0
  %3546 = vmatpush.msra.mxu0 0.0
  %3547 = vmatpush.msra.mxu0 %v2278
  %3548 = vmatpush.msra.mxu0 %v2275
  %3549 = vmatpush.msra.mxu0 %v2272
  %3550 = vmatpush.msra.mxu0 %v2269
  %3551 = vmatpush.msra.mxu0 %v2266
  %3552 = vmatpush.msra.mxu0 %v2263
  %3553 = vmatpush.msra.mxu0 %v2260
  %3554 = vmatpush.msra.mxu0 %v2257
  %3555 = vmatmul.f32.gmra.mxu0 %v3516
  %v3556 = vpop.f32.mrf.mxu0
  %v3557 = vadd.f32 0.0, %v3556
  %3558 = vmatmul.f32.gmra.mxu0 %v3519
  %v3559 = vpop.f32.mrf.mxu0
  %v3560 = vadd.f32 0.0, %v3559
  %3561 = vmatmul.f32.gmra.mxu0 %v3522
  %v3562 = vpop.f32.mrf.mxu0
  %v3563 = vadd.f32 0.0, %v3562
  %3564 = vmatmul.f32.gmra.mxu0 %v3525
  %v3565 = vpop.f32.mrf.mxu0
  %v3566 = vadd.f32 0.0, %v3565
  %3567 = vmatmul.f32.gmra.mxu0 %v3528
  %v3568 = vpop.f32.mrf.mxu0
  %v3569 = vadd.f32 0.0, %v3568
  %3570 = vmatmul.f32.gmra.mxu0 %v3531
  %v3571 = vpop.f32.mrf.mxu0
  %v3572 = vadd.f32 0.0, %v3571
  %3573 = vmatmul.f32.gmra.mxu0 %v3534
  %v3574 = vpop.f32.mrf.mxu0
  %v3575 = vadd.f32 0.0, %v3574
  %3576 = vmatmul.f32.gmra.mxu0 %v3537
  %v3577 = vpop.f32.mrf.mxu0
  %v3578 = vadd.f32 0.0, %v3577
  %3579 = vdwg.mxu0
  %v3580 = vsel %vm2990, 1, 0
  %v3581 = vsel %vm2991, 1, 0
  %v3582 = vsel %vm2992, 1, 0
  %v3583 = vsel %vm2993, 1, 0
  %v3584 = vsel %vm2994, 1, 0
  %v3585 = vsel %vm2995, 1, 0
  %v3586 = vsel %vm2996, 1, 0
  %v3587 = vsel %vm2997, 1, 0
  %v3588 = vcvt.s32.f32 %v3580
  %v3589 = vcvt.s32.f32 %v3581
  %v3590 = vcvt.s32.f32 %v3582
  %v3591 = vcvt.s32.f32 %v3583
  %v3592 = vcvt.s32.f32 %v3584
  %v3593 = vcvt.s32.f32 %v3585
  %v3594 = vcvt.s32.f32 %v3586
  %v3595 = vcvt.s32.f32 %v3587
  %v3597 = vsel %vm525, %v3588, 0
  %v3600 = vsel %vm525, %v3589, 0
  %v3603 = vsel %vm525, %v3590, 0
  %v3606 = vsel %vm525, %v3591, 0
  %v3609 = vsel %vm525, %v3592, 0
  %v3612 = vsel %vm525, %v3593, 0
  %v3615 = vsel %vm525, %v3594, 0
  %v3618 = vsel %vm525, %v3595, 0
  %3620 = vmatpush.msra.mxu0 0.0
  %3621 = vmatpush.msra.mxu0 0.0
  %3622 = vmatpush.msra.mxu0 0.0
  %3623 = vmatpush.msra.mxu0 0.0
  %3624 = vmatpush.msra.mxu0 0.0
  %3625 = vmatpush.msra.mxu0 0.0
  %3626 = vmatpush.msra.mxu0 0.0
  %3627 = vmatpush.msra.mxu0 0.0
  %3628 = vmatpush.msra.mxu0 %v2278
  %3629 = vmatpush.msra.mxu0 %v2275
  %3630 = vmatpush.msra.mxu0 %v2272
  %3631 = vmatpush.msra.mxu0 %v2269
  %3632 = vmatpush.msra.mxu0 %v2266
  %3633 = vmatpush.msra.mxu0 %v2263
  %3634 = vmatpush.msra.mxu0 %v2260
  %3635 = vmatpush.msra.mxu0 %v2257
  %3636 = vmatmul.f32.gmra.mxu0 %v3597
  %v3637 = vpop.f32.mrf.mxu0
  %v3638 = vadd.f32 0.0, %v3637
  %3639 = vmatmul.f32.gmra.mxu0 %v3600
  %v3640 = vpop.f32.mrf.mxu0
  %v3641 = vadd.f32 0.0, %v3640
  %3642 = vmatmul.f32.gmra.mxu0 %v3603
  %v3643 = vpop.f32.mrf.mxu0
  %v3644 = vadd.f32 0.0, %v3643
  %3645 = vmatmul.f32.gmra.mxu0 %v3606
  %v3646 = vpop.f32.mrf.mxu0
  %v3647 = vadd.f32 0.0, %v3646
  %3648 = vmatmul.f32.gmra.mxu0 %v3609
  %v3649 = vpop.f32.mrf.mxu0
  %v3650 = vadd.f32 0.0, %v3649
  %3651 = vmatmul.f32.gmra.mxu0 %v3612
  %v3652 = vpop.f32.mrf.mxu0
  %v3653 = vadd.f32 0.0, %v3652
  %3654 = vmatmul.f32.gmra.mxu0 %v3615
  %v3655 = vpop.f32.mrf.mxu0
  %v3656 = vadd.f32 0.0, %v3655
  %3657 = vmatmul.f32.gmra.mxu0 %v3618
  %v3658 = vpop.f32.mrf.mxu0
  %v3659 = vadd.f32 0.0, %v3658
  %3660 = vdwg.mxu0
  %v3661 = vsel %vm3078, 1, 0
  %v3662 = vsel %vm3079, 1, 0
  %v3663 = vsel %vm3080, 1, 0
  %v3664 = vsel %vm3081, 1, 0
  %v3665 = vsel %vm3082, 1, 0
  %v3666 = vsel %vm3083, 1, 0
  %v3667 = vsel %vm3084, 1, 0
  %v3668 = vsel %vm3085, 1, 0
  %v3669 = vcvt.s32.f32 %v3661
  %v3670 = vcvt.s32.f32 %v3662
  %v3671 = vcvt.s32.f32 %v3663
  %v3672 = vcvt.s32.f32 %v3664
  %v3673 = vcvt.s32.f32 %v3665
  %v3674 = vcvt.s32.f32 %v3666
  %v3675 = vcvt.s32.f32 %v3667
  %v3676 = vcvt.s32.f32 %v3668
  %v3678 = vsel %vm525, %v3669, 0
  %v3681 = vsel %vm525, %v3670, 0
  %v3684 = vsel %vm525, %v3671, 0
  %v3687 = vsel %vm525, %v3672, 0
  %v3690 = vsel %vm525, %v3673, 0
  %v3693 = vsel %vm525, %v3674, 0
  %v3696 = vsel %vm525, %v3675, 0
  %v3699 = vsel %vm525, %v3676, 0
  %3701 = vmatpush.msra.mxu0 0.0
  %3702 = vmatpush.msra.mxu0 0.0
  %3703 = vmatpush.msra.mxu0 0.0
  %3704 = vmatpush.msra.mxu0 0.0
  %3705 = vmatpush.msra.mxu0 0.0
  %3706 = vmatpush.msra.mxu0 0.0
  %3707 = vmatpush.msra.mxu0 0.0
  %3708 = vmatpush.msra.mxu0 0.0
  %3709 = vmatpush.msra.mxu0 %v2278
  %3710 = vmatpush.msra.mxu0 %v2275
  %3711 = vmatpush.msra.mxu0 %v2272
  %3712 = vmatpush.msra.mxu0 %v2269
  %3713 = vmatpush.msra.mxu0 %v2266
  %3714 = vmatpush.msra.mxu0 %v2263
  %3715 = vmatpush.msra.mxu0 %v2260
  %3716 = vmatpush.msra.mxu0 %v2257
  %3717 = vmatmul.f32.gmra.mxu0 %v3678
  %v3718 = vpop.f32.mrf.mxu0
  %v3719 = vadd.f32 0.0, %v3718
  %3720 = vmatmul.f32.gmra.mxu0 %v3681
  %v3721 = vpop.f32.mrf.mxu0
  %v3722 = vadd.f32 0.0, %v3721
  %3723 = vmatmul.f32.gmra.mxu0 %v3684
  %v3724 = vpop.f32.mrf.mxu0
  %v3725 = vadd.f32 0.0, %v3724
  %3726 = vmatmul.f32.gmra.mxu0 %v3687
  %v3727 = vpop.f32.mrf.mxu0
  %v3728 = vadd.f32 0.0, %v3727
  %3729 = vmatmul.f32.gmra.mxu0 %v3690
  %v3730 = vpop.f32.mrf.mxu0
  %v3731 = vadd.f32 0.0, %v3730
  %3732 = vmatmul.f32.gmra.mxu0 %v3693
  %v3733 = vpop.f32.mrf.mxu0
  %v3734 = vadd.f32 0.0, %v3733
  %3735 = vmatmul.f32.gmra.mxu0 %v3696
  %v3736 = vpop.f32.mrf.mxu0
  %v3737 = vadd.f32 0.0, %v3736
  %3738 = vmatmul.f32.gmra.mxu0 %v3699
  %v3739 = vpop.f32.mrf.mxu0
  %v3740 = vadd.f32 0.0, %v3739
  %3741 = vdwg.mxu0
  %v3742 = vmax.f32 %v3152, -1e+30
  %v3743 = vmax.f32 %v3155, -1e+30
  %v3744 = vmax.f32 %v3158, -1e+30
  %v3745 = vmax.f32 %v3161, -1e+30
  %v3746 = vmax.f32 %v3164, -1e+30
  %v3747 = vmax.f32 %v3167, -1e+30
  %v3748 = vmax.f32 %v3170, -1e+30
  %v3749 = vmax.f32 %v3173, -1e+30
  %v3750 = vsel %vm2470, 1, 0
  %v3751 = vsel %vm2471, 1, 0
  %v3752 = vsel %vm2472, 1, 0
  %v3753 = vsel %vm2473, 1, 0
  %v3754 = vsel %vm2474, 1, 0
  %v3755 = vsel %vm2475, 1, 0
  %v3756 = vsel %vm2476, 1, 0
  %v3757 = vsel %vm2477, 1, 0
  %vm3758 = vcmp.eq.s32.totalorder %v3750, 1
  %vm3759 = vcmp.eq.s32.totalorder %v3751, 1
  %vm3760 = vcmp.eq.s32.totalorder %v3752, 1
  %vm3761 = vcmp.eq.s32.totalorder %v3753, 1
  %vm3762 = vcmp.eq.s32.totalorder %v3754, 1
  %vm3763 = vcmp.eq.s32.totalorder %v3755, 1
  %vm3764 = vcmp.eq.s32.totalorder %v3756, 1
  %vm3765 = vcmp.eq.s32.totalorder %v3757, 1
  %v3766 = vsel %vm3758, %v3742, -1e+30
  %v3767 = vsel %vm3759, %v3743, -1e+30
  %v3768 = vsel %vm3760, %v3744, -1e+30
  %v3769 = vsel %vm3761, %v3745, -1e+30
  %v3770 = vsel %vm3762, %v3746, -1e+30
  %v3771 = vsel %vm3763, %v3747, -1e+30
  %v3772 = vsel %vm3764, %v3748, -1e+30
  %v3773 = vsel %vm3765, %v3749, -1e+30
  %v3774 = vmax.f32 %v3766, %v3233
  %v3775 = vmax.f32 %v3767, %v3236
  %v3776 = vmax.f32 %v3768, %v3239
  %v3777 = vmax.f32 %v3769, %v3242
  %v3778 = vmax.f32 %v3770, %v3245
  %v3779 = vmax.f32 %v3771, %v3248
  %v3780 = vmax.f32 %v3772, %v3251
  %v3781 = vmax.f32 %v3773, %v3254
  %v3782 = vsel %vm2558, 1, 0
  %v3783 = vsel %vm2559, 1, 0
  %v3784 = vsel %vm2560, 1, 0
  %v3785 = vsel %vm2561, 1, 0
  %v3786 = vsel %vm2562, 1, 0
  %v3787 = vsel %vm2563, 1, 0
  %v3788 = vsel %vm2564, 1, 0
  %v3789 = vsel %vm2565, 1, 0
  %vm3790 = vcmp.eq.s32.totalorder %v3782, 1
  %vm3791 = vcmp.eq.s32.totalorder %v3783, 1
  %vm3792 = vcmp.eq.s32.totalorder %v3784, 1
  %vm3793 = vcmp.eq.s32.totalorder %v3785, 1
  %vm3794 = vcmp.eq.s32.totalorder %v3786, 1
  %vm3795 = vcmp.eq.s32.totalorder %v3787, 1
  %vm3796 = vcmp.eq.s32.totalorder %v3788, 1
  %vm3797 = vcmp.eq.s32.totalorder %v3789, 1
  %v3798 = vsel %vm3790, %v3774, %v3766
  %v3799 = vsel %vm3791, %v3775, %v3767
  %v3800 = vsel %vm3792, %v3776, %v3768
  %v3801 = vsel %vm3793, %v3777, %v3769
  %v3802 = vsel %vm3794, %v3778, %v3770
  %v3803 = vsel %vm3795, %v3779, %v3771
  %v3804 = vsel %vm3796, %v3780, %v3772
  %v3805 = vsel %vm3797, %v3781, %v3773
  %v3806 = vmax.f32 %v3798, %v3314
  %v3807 = vmax.f32 %v3799, %v3317
  %v3808 = vmax.f32 %v3800, %v3320
  %v3809 = vmax.f32 %v3801, %v3323
  %v3810 = vmax.f32 %v3802, %v3326
  %v3811 = vmax.f32 %v3803, %v3329
  %v3812 = vmax.f32 %v3804, %v3332
  %v3813 = vmax.f32 %v3805, %v3335
  %v3814 = vsel %vm2646, 1, 0
  %v3815 = vsel %vm2647, 1, 0
  %v3816 = vsel %vm2648, 1, 0
  %v3817 = vsel %vm2649, 1, 0
  %v3818 = vsel %vm2650, 1, 0
  %v3819 = vsel %vm2651, 1, 0
  %v3820 = vsel %vm2652, 1, 0
  %v3821 = vsel %vm2653, 1, 0
  %vm3822 = vcmp.eq.s32.totalorder %v3814, 1
  %vm3823 = vcmp.eq.s32.totalorder %v3815, 1
  %vm3824 = vcmp.eq.s32.totalorder %v3816, 1
  %vm3825 = vcmp.eq.s32.totalorder %v3817, 1
  %vm3826 = vcmp.eq.s32.totalorder %v3818, 1
  %vm3827 = vcmp.eq.s32.totalorder %v3819, 1
  %vm3828 = vcmp.eq.s32.totalorder %v3820, 1
  %vm3829 = vcmp.eq.s32.totalorder %v3821, 1
  %v3830 = vsel %vm3822, %v3806, %v3798
  %v3831 = vsel %vm3823, %v3807, %v3799
  %v3832 = vsel %vm3824, %v3808, %v3800
  %v3833 = vsel %vm3825, %v3809, %v3801
  %v3834 = vsel %vm3826, %v3810, %v3802
  %v3835 = vsel %vm3827, %v3811, %v3803
  %v3836 = vsel %vm3828, %v3812, %v3804
  %v3837 = vsel %vm3829, %v3813, %v3805
  %v3838 = vmax.f32 %v3830, %v3395
  %v3839 = vmax.f32 %v3831, %v3398
  %v3840 = vmax.f32 %v3832, %v3401
  %v3841 = vmax.f32 %v3833, %v3404
  %v3842 = vmax.f32 %v3834, %v3407
  %v3843 = vmax.f32 %v3835, %v3410
  %v3844 = vmax.f32 %v3836, %v3413
  %v3845 = vmax.f32 %v3837, %v3416
  %v3846 = vsel %vm2734, 1, 0
  %v3847 = vsel %vm2735, 1, 0
  %v3848 = vsel %vm2736, 1, 0
  %v3849 = vsel %vm2737, 1, 0
  %v3850 = vsel %vm2738, 1, 0
  %v3851 = vsel %vm2739, 1, 0
  %v3852 = vsel %vm2740, 1, 0
  %v3853 = vsel %vm2741, 1, 0
  %vm3854 = vcmp.eq.s32.totalorder %v3846, 1
  %vm3855 = vcmp.eq.s32.totalorder %v3847, 1
  %vm3856 = vcmp.eq.s32.totalorder %v3848, 1
  %vm3857 = vcmp.eq.s32.totalorder %v3849, 1
  %vm3858 = vcmp.eq.s32.totalorder %v3850, 1
  %vm3859 = vcmp.eq.s32.totalorder %v3851, 1
  %vm3860 = vcmp.eq.s32.totalorder %v3852, 1
  %vm3861 = vcmp.eq.s32.totalorder %v3853, 1
  %v3862 = vsel %vm3854, %v3838, %v3830
  %v3863 = vsel %vm3855, %v3839, %v3831
  %v3864 = vsel %vm3856, %v3840, %v3832
  %v3865 = vsel %vm3857, %v3841, %v3833
  %v3866 = vsel %vm3858, %v3842, %v3834
  %v3867 = vsel %vm3859, %v3843, %v3835
  %v3868 = vsel %vm3860, %v3844, %v3836
  %v3869 = vsel %vm3861, %v3845, %v3837
  %v3870 = vmax.f32 %v3862, %v3476
  %v3871 = vmax.f32 %v3863, %v3479
  %v3872 = vmax.f32 %v3864, %v3482
  %v3873 = vmax.f32 %v3865, %v3485
  %v3874 = vmax.f32 %v3866, %v3488
  %v3875 = vmax.f32 %v3867, %v3491
  %v3876 = vmax.f32 %v3868, %v3494
  %v3877 = vmax.f32 %v3869, %v3497
  %v3878 = vsel %vm2822, 1, 0
  %v3879 = vsel %vm2823, 1, 0
  %v3880 = vsel %vm2824, 1, 0
  %v3881 = vsel %vm2825, 1, 0
  %v3882 = vsel %vm2826, 1, 0
  %v3883 = vsel %vm2827, 1, 0
  %v3884 = vsel %vm2828, 1, 0
  %v3885 = vsel %vm2829, 1, 0
  %vm3886 = vcmp.eq.s32.totalorder %v3878, 1
  %vm3887 = vcmp.eq.s32.totalorder %v3879, 1
  %vm3888 = vcmp.eq.s32.totalorder %v3880, 1
  %vm3889 = vcmp.eq.s32.totalorder %v3881, 1
  %vm3890 = vcmp.eq.s32.totalorder %v3882, 1
  %vm3891 = vcmp.eq.s32.totalorder %v3883, 1
  %vm3892 = vcmp.eq.s32.totalorder %v3884, 1
  %vm3893 = vcmp.eq.s32.totalorder %v3885, 1
  %v3894 = vsel %vm3886, %v3870, %v3862
  %v3895 = vsel %vm3887, %v3871, %v3863
  %v3896 = vsel %vm3888, %v3872, %v3864
  %v3897 = vsel %vm3889, %v3873, %v3865
  %v3898 = vsel %vm3890, %v3874, %v3866
  %v3899 = vsel %vm3891, %v3875, %v3867
  %v3900 = vsel %vm3892, %v3876, %v3868
  %v3901 = vsel %vm3893, %v3877, %v3869
  %v3902 = vmax.f32 %v3894, %v3557
  %v3903 = vmax.f32 %v3895, %v3560
  %v3904 = vmax.f32 %v3896, %v3563
  %v3905 = vmax.f32 %v3897, %v3566
  %v3906 = vmax.f32 %v3898, %v3569
  %v3907 = vmax.f32 %v3899, %v3572
  %v3908 = vmax.f32 %v3900, %v3575
  %v3909 = vmax.f32 %v3901, %v3578
  %v3910 = vsel %vm2910, 1, 0
  %v3911 = vsel %vm2911, 1, 0
  %v3912 = vsel %vm2912, 1, 0
  %v3913 = vsel %vm2913, 1, 0
  %v3914 = vsel %vm2914, 1, 0
  %v3915 = vsel %vm2915, 1, 0
  %v3916 = vsel %vm2916, 1, 0
  %v3917 = vsel %vm2917, 1, 0
  %vm3918 = vcmp.eq.s32.totalorder %v3910, 1
  %vm3919 = vcmp.eq.s32.totalorder %v3911, 1
  %vm3920 = vcmp.eq.s32.totalorder %v3912, 1
  %vm3921 = vcmp.eq.s32.totalorder %v3913, 1
  %vm3922 = vcmp.eq.s32.totalorder %v3914, 1
  %vm3923 = vcmp.eq.s32.totalorder %v3915, 1
  %vm3924 = vcmp.eq.s32.totalorder %v3916, 1
  %vm3925 = vcmp.eq.s32.totalorder %v3917, 1
  %v3926 = vsel %vm3918, %v3902, %v3894
  %v3927 = vsel %vm3919, %v3903, %v3895
  %v3928 = vsel %vm3920, %v3904, %v3896
  %v3929 = vsel %vm3921, %v3905, %v3897
  %v3930 = vsel %vm3922, %v3906, %v3898
  %v3931 = vsel %vm3923, %v3907, %v3899
  %v3932 = vsel %vm3924, %v3908, %v3900
  %v3933 = vsel %vm3925, %v3909, %v3901
  %v3934 = vmax.f32 %v3926, %v3638
  %v3935 = vmax.f32 %v3927, %v3641
  %v3936 = vmax.f32 %v3928, %v3644
  %v3937 = vmax.f32 %v3929, %v3647
  %v3938 = vmax.f32 %v3930, %v3650
  %v3939 = vmax.f32 %v3931, %v3653
  %v3940 = vmax.f32 %v3932, %v3656
  %v3941 = vmax.f32 %v3933, %v3659
  %v3942 = vsel %vm2998, 1, 0
  %v3943 = vsel %vm2999, 1, 0
  %v3944 = vsel %vm3000, 1, 0
  %v3945 = vsel %vm3001, 1, 0
  %v3946 = vsel %vm3002, 1, 0
  %v3947 = vsel %vm3003, 1, 0
  %v3948 = vsel %vm3004, 1, 0
  %v3949 = vsel %vm3005, 1, 0
  %vm3950 = vcmp.eq.s32.totalorder %v3942, 1
  %vm3951 = vcmp.eq.s32.totalorder %v3943, 1
  %vm3952 = vcmp.eq.s32.totalorder %v3944, 1
  %vm3953 = vcmp.eq.s32.totalorder %v3945, 1
  %vm3954 = vcmp.eq.s32.totalorder %v3946, 1
  %vm3955 = vcmp.eq.s32.totalorder %v3947, 1
  %vm3956 = vcmp.eq.s32.totalorder %v3948, 1
  %vm3957 = vcmp.eq.s32.totalorder %v3949, 1
  %v3958 = vsel %vm3950, %v3934, %v3926
  %v3959 = vsel %vm3951, %v3935, %v3927
  %v3960 = vsel %vm3952, %v3936, %v3928
  %v3961 = vsel %vm3953, %v3937, %v3929
  %v3962 = vsel %vm3954, %v3938, %v3930
  %v3963 = vsel %vm3955, %v3939, %v3931
  %v3964 = vsel %vm3956, %v3940, %v3932
  %v3965 = vsel %vm3957, %v3941, %v3933
  %v3966 = vmax.f32 %v3958, %v3719
  %v3967 = vmax.f32 %v3959, %v3722
  %v3968 = vmax.f32 %v3960, %v3725
  %v3969 = vmax.f32 %v3961, %v3728
  %v3970 = vmax.f32 %v3962, %v3731
  %v3971 = vmax.f32 %v3963, %v3734
  %v3972 = vmax.f32 %v3964, %v3737
  %v3973 = vmax.f32 %v3965, %v3740
  %v3974 = vsel %vm3086, 1, 0
  %v3975 = vsel %vm3087, 1, 0
  %v3976 = vsel %vm3088, 1, 0
  %v3977 = vsel %vm3089, 1, 0
  %v3978 = vsel %vm3090, 1, 0
  %v3979 = vsel %vm3091, 1, 0
  %v3980 = vsel %vm3092, 1, 0
  %v3981 = vsel %vm3093, 1, 0
  %vm3982 = vcmp.eq.s32.totalorder %v3974, 1
  %vm3983 = vcmp.eq.s32.totalorder %v3975, 1
  %vm3984 = vcmp.eq.s32.totalorder %v3976, 1
  %vm3985 = vcmp.eq.s32.totalorder %v3977, 1
  %vm3986 = vcmp.eq.s32.totalorder %v3978, 1
  %vm3987 = vcmp.eq.s32.totalorder %v3979, 1
  %vm3988 = vcmp.eq.s32.totalorder %v3980, 1
  %vm3989 = vcmp.eq.s32.totalorder %v3981, 1
  %v3990 = vsel %vm3982, %v3966, %v3958
  %v3991 = vsel %vm3983, %v3967, %v3959
  %v3992 = vsel %vm3984, %v3968, %v3960
  %v3993 = vsel %vm3985, %v3969, %v3961
  %v3994 = vsel %vm3986, %v3970, %v3962
  %v3995 = vsel %vm3987, %v3971, %v3963
  %v3996 = vsel %vm3988, %v3972, %v3964
  %v3997 = vsel %vm3989, %v3973, %v3965
  %v3998 = vadd.f32 %v2216, %v3990
  %v3999 = vadd.f32 %v2219, %v3991
  %v4000 = vadd.f32 %v2222, %v3992
  %v4001 = vadd.f32 %v2225, %v3993
  %v4002 = vadd.f32 %v2228, %v3994
  %v4003 = vadd.f32 %v2231, %v3995
  %v4004 = vadd.f32 %v2234, %v3996
  %v4005 = vadd.f32 %v2237, %v3997
  %vm4006 = vcmp.gt.f32.partialorder %v3998, 0.0
  %vm4007 = vcmp.gt.f32.partialorder %v3999, 0.0
  %vm4008 = vcmp.gt.f32.partialorder %v4000, 0.0
  %vm4009 = vcmp.gt.f32.partialorder %v4001, 0.0
  %vm4010 = vcmp.gt.f32.partialorder %v4002, 0.0
  %vm4011 = vcmp.gt.f32.partialorder %v4003, 0.0
  %vm4012 = vcmp.gt.f32.partialorder %v4004, 0.0
  %vm4013 = vcmp.gt.f32.partialorder %v4005, 0.0
  %v4014 = vmul.f32 %v3998, 1.442695
  %v4015 = vpow.pop %v4014
  %v4016 = vmul.f32 %v3999, 1.442695
  %v4017 = vpow.pop %v4016
  %v4018 = vmul.f32 %v4000, 1.442695
  %v4019 = vpow.pop %v4018
  %v4020 = vmul.f32 %v4001, 1.442695
  %v4021 = vpow.pop %v4020
  %v4022 = vmul.f32 %v4002, 1.442695
  %v4023 = vpow.pop %v4022
  %v4024 = vmul.f32 %v4003, 1.442695
  %v4025 = vpow.pop %v4024
  %v4026 = vmul.f32 %v4004, 1.442695
  %v4027 = vpow.pop %v4026
  %v4028 = vmul.f32 %v4005, 1.442695
  %v4029 = vpow.pop %v4028
  %v4030 = vsub.f32 %v4015, 1.0
  %v4031 = vsub.f32 %v4017, 1.0
  %v4032 = vsub.f32 %v4019, 1.0
  %v4033 = vsub.f32 %v4021, 1.0
  %v4034 = vsub.f32 %v4023, 1.0
  %v4035 = vsub.f32 %v4025, 1.0
  %v4036 = vsub.f32 %v4027, 1.0
  %v4037 = vsub.f32 %v4029, 1.0
  %v4038 = vsel %vm4006, %v3998, %v4030
  %v4039 = vsel %vm4007, %v3999, %v4031
  %v4040 = vsel %vm4008, %v4000, %v4032
  %v4041 = vsel %vm4009, %v4001, %v4033
  %v4042 = vsel %vm4010, %v4002, %v4034
  %v4043 = vsel %vm4011, %v4003, %v4035
  %v4044 = vsel %vm4012, %v4004, %v4036
  %v4045 = vsel %vm4013, %v4005, %v4037
  %v4046 = vlaneseq
  %v4047 = vshrl.u32 %v4046, 7
  %v4048 = vcvt.s32.f32 %v4047
  %vm4049 = vcmp.eq.f32.partialorder %v4048, %v279
  %v4050 = vsel %vm4049, 1, 0
  %v4051 = vcvt.s32.f32 %v4050
  %v4053 = vsel %vm525, %v4051, 0
  %4055 = vmatpush.msra.mxu0 0.0
  %4056 = vmatpush.msra.mxu0 0.0
  %4057 = vmatpush.msra.mxu0 0.0
  %4058 = vmatpush.msra.mxu0 0.0
  %4059 = vmatpush.msra.mxu0 0.0
  %4060 = vmatpush.msra.mxu0 0.0
  %4061 = vmatpush.msra.mxu0 0.0
  %4062 = vmatpush.msra.mxu0 0.0
  %4063 = vmatpush.msra.mxu0 1.0
  %4064 = vmatpush.msra.mxu0 1.0
  %4065 = vmatpush.msra.mxu0 1.0
  %4066 = vmatpush.msra.mxu0 1.0
  %4067 = vmatpush.msra.mxu0 1.0
  %4068 = vmatpush.msra.mxu0 1.0
  %4069 = vmatpush.msra.mxu0 1.0
  %4070 = vmatpush.msra.mxu0 1.0
  %4071 = vmatmul.f32.gmra.mxu0 %v4053
  %v4072 = vpop.f32.mrf.mxu0
  %v4073 = vadd.f32 0.0, %v4072
  %4074 = vdwg.mxu0
  %4075 = vmatpush.msra.mxu0 0.0
  %4076 = vmatpush.msra.mxu0 0.0
  %4077 = vmatpush.msra.mxu0 0.0
  %4078 = vmatpush.msra.mxu0 0.0
  %4079 = vmatpush.msra.mxu0 0.0
  %4080 = vmatpush.msra.mxu0 0.0
  %4081 = vmatpush.msra.mxu0 0.0
  %4082 = vmatpush.msra.mxu0 0.0
  %4083 = vmatpush.msra.mxu0 %v4045
  %4084 = vmatpush.msra.mxu0 %v4044
  %4085 = vmatpush.msra.mxu0 %v4043
  %4086 = vmatpush.msra.mxu0 %v4042
  %4087 = vmatpush.msra.mxu0 %v4041
  %4088 = vmatpush.msra.mxu0 %v4040
  %4089 = vmatpush.msra.mxu0 %v4039
  %4090 = vmatpush.msra.mxu0 %v4038
  %4091 = vmatmul.f32.gmra.mxu0 %v4053
  %v4092 = vpop.f32.mrf.mxu0
  %v4093 = vadd.f32 0.0, %v4092
  %4094 = vdwg.mxu0
  %v4095 = vrcp.pop %v4073
  %v4096 = vmul.f32 %v4073, %v4095
  %v4097 = vsub.f32 1.0, %v4096
  %v4098 = vmul.f32 %v4095, %v4097
  %v4099 = vadd.f32 %v4095, %v4098
  %vm4100 = vweird.f32 %v4073
  %vm4101 = vweird.f32 %v4095
  %vm4102 = vmor %vm4100, %vm4101
  %v4103 = vsel %vm4102, %v4095, %v4099
  %v4104 = vand.u32 2147483647, %v4073
  %vm4105 = vcmp.eq.f32.partialorder %v4104, 8.507059e+37
  %v4106 = vand.u32 %v4073, 2147483648
  %v4107 = vor.u32 1.1754944e-38, %v4106
  %v4108 = vsel %vm4105, %v4107, %v4103
  %4110 = vset.pattern.permute.xlu0 0
  %4111 = vperm.xlu0 %4110, %v4108
  %v4112 = vpop.permute.xlu0 %4111
  %v4114 = vmul.f32 %v4093, %v4112
  %v4115 = vld [vmem:[%s2 + $0x37] sm:$0xff]
  %v4116 = vld [vmem:[%s2 + $0x3f] sm:$0xff]
  %v4117 = vld [vmem:[%s2 + $0x47] sm:$0x1]
  %v4118 = vperm.slane %v4117, 0
  %v4120 = vsel %vm140, %v4114, 0
  %4122 = vmatpush.msra.mxu0 0.0
  %4123 = vmatpush.msra.mxu0 0.0
  %4124 = vmatpush.msra.mxu0 0.0
  %4125 = vmatpush.msra.mxu0 0.0
  %4126 = vmatpush.msra.mxu0 0.0
  %4127 = vmatpush.msra.mxu0 0.0
  %4128 = vmatpush.msra.mxu0 0.0
  %4129 = vmatpush.msra.mxu0 0.0
  %4130 = vmatpush.msra.mxu0 0.0
  %4131 = vmatpush.msra.mxu0 0.0
  %4132 = vmatpush.msra.mxu0 0.0
  %4133 = vmatpush.msra.mxu0 0.0
  %4134 = vmatpush.msra.mxu0 0.0
  %4135 = vmatpush.msra.mxu0 0.0
  %4136 = vmatpush.msra.mxu0 %v4116
  %4137 = vmatpush.msra.mxu0 %v4115
  %4138 = vmatmul.f32.gmra.mxu0 %v4120
  %v4139 = vpop.f32.mrf.mxu0
  %v4140 = vadd.f32 %v4118, %v4139
  %4141 = vdwg.mxu0
  %vm4142 = vcmp.gt.f32.partialorder %v4140, 0.0
  %v4143 = vmul.f32 %v4140, 1.442695
  %v4144 = vpow.pop %v4143
  %v4145 = vsub.f32 %v4144, 1.0
  %v4146 = vsel %vm4142, %v4140, %v4145
  %v4147 = vld [vmem:[%s2 + $0x48] sm:$0xff]
  %v4148 = vld [vmem:[%s2 + $0x50] sm:$0x1]
  %v4149 = vperm.slane %v4148, 0
  %vm4150 = vcmask 64512
  %v4152 = vsel %vm4150, %v4146, 0
  %4154 = vmatpush.msra.mxu0 0.0
  %4155 = vmatpush.msra.mxu0 0.0
  %4156 = vmatpush.msra.mxu0 0.0
  %4157 = vmatpush.msra.mxu0 0.0
  %4158 = vmatpush.msra.mxu0 0.0
  %4159 = vmatpush.msra.mxu0 0.0
  %4160 = vmatpush.msra.mxu0 0.0
  %4161 = vmatpush.msra.mxu0 0.0
  %4162 = vmatpush.msra.mxu0 0.0
  %4163 = vmatpush.msra.mxu0 0.0
  %4164 = vmatpush.msra.mxu0 0.0
  %4165 = vmatpush.msra.mxu0 0.0
  %4166 = vmatpush.msra.mxu0 0.0
  %4167 = vmatpush.msra.mxu0 0.0
  %4168 = vmatpush.msra.mxu0 0.0
  %4169 = vmatpush.msra.mxu0 %v4147
  %4170 = vmatmul.f32.gmra.mxu0 %v4152
  %v4171 = vpop.f32.mrf.mxu0
  %v4172 = vadd.f32 %v4149, %v4171
  %4173 = vdwg.mxu0
  %vm4174 = vcmp.gt.f32.partialorder %v4172, 0.0
  %v4175 = vmul.f32 %v4172, 1.442695
  %v4176 = vpow.pop %v4175
  %v4177 = vsub.f32 %v4176, 1.0
  %v4178 = vsel %vm4174, %v4172, %v4177
  %v4179 = vld [vmem:[%s2 + $0x51] sm:$0xf]
  %v4180 = vld [vmem:[%s2 + $0x55] sm:$0x1]
  %v4181 = vperm.slane %v4180, 0
  %v4183 = vsel %vm26, %v4178, 0
  %v4186 = vsel %vm51, %v4179, 0
  %4188 = vmatpush.msra.mxu0 0.0
  %4189 = vmatpush.msra.mxu0 0.0
  %4190 = vmatpush.msra.mxu0 0.0
  %4191 = vmatpush.msra.mxu0 0.0
  %4192 = vmatpush.msra.mxu0 0.0
  %4193 = vmatpush.msra.mxu0 0.0
  %4194 = vmatpush.msra.mxu0 0.0
  %4195 = vmatpush.msra.mxu0 0.0
  %4196 = vmatpush.msra.mxu0 0.0
  %4197 = vmatpush.msra.mxu0 0.0
  %4198 = vmatpush.msra.mxu0 0.0
  %4199 = vmatpush.msra.mxu0 0.0
  %4200 = vmatpush.msra.mxu0 0.0
  %4201 = vmatpush.msra.mxu0 0.0
  %4202 = vmatpush.msra.mxu0 0.0
  %4203 = vmatpush.msra.mxu0 %v4186
  %4204 = vmatmul.f32.gmra.mxu0 %v4183
  %v4205 = vpop.f32.mrf.mxu0
  %v4206 = vadd.f32 %v4181, %v4205
  %4207 = vdwg.mxu0
  %vm4208 = vcmask 1024
  %4209 = vst.msk [vmem:[%s3] sm:$0x3] %vm4208, %v4206
  // Predicated region
  $region14: #{suep_net_forward.1} parent=0 // pred_check
    _
  $region15: #{suep_net_forward.1} parent=0 // pred_check_branch
    %4211 = sbr.rel (0) target = $region17
  $region16: #{suep_net_forward.1} parent=0 // pred_region
    _
  $region17: #{suep_net_forward.1} parent=0 // pred_fallthru
    _
  // Predicated region
  $region18: #{suep_net_forward.1} parent=0 // pred_check
    _
  $region19: #{suep_net_forward.1} parent=0 // pred_check_branch
    %4213 = sbr.rel (0) target = $region21
  $region20: #{suep_net_forward.1} parent=0 // pred_region
    _
  $region21: #{suep_net_forward.1} parent=0 // pred_fallthru
    _

</llo_original>
